<compile_context>
chip_gen: v7x
topology: tpu7x:2x2x1
jax: 0.10.0
libtpu: 0.0.40
codegen_flags: <defaults>
</compile_context>

<pallas_src>
import functools
import math

import jax
import jax.numpy as jnp
import numpy as np
from jax.experimental import pallas as pl
from jax.experimental.pallas import tpu as pltpu

_LN_EPS = 1e-5
_NEG = -1e30  # bias for argmax pad rows: never wins the max


def _round_up(v, m):
    return (v + m - 1) // m * m


# ----------------------------- kernel helpers -----------------------------


def _erf_approx(x):
    # Abramowitz & Stegun 7.1.26, |abs err| < 1.5e-7 (matches PyTorch's exact-erf
    # nn.GELU() to ~1e-7; exact erf has no Mosaic lowering).
    a1, a2, a3, a4, a5 = 0.254829592, -0.284496736, 1.421413741, -1.453152027, 1.061405429
    p = 0.3275911
    s = jnp.where(x >= 0.0, 1.0, -1.0)
    ax = jnp.abs(x)
    t = 1.0 / (1.0 + p * ax)
    poly = ((((a5 * t + a4) * t + a3) * t + a2) * t + a1) * t
    y = 1.0 - poly * jnp.exp(-ax * ax)
    return s * y


def _gelu(x):
    return 0.5 * x * (1.0 + _erf_approx(x * (1.0 / math.sqrt(2.0))))


def _single_tensorcore_chip():
    """v5e / v6e have one TensorCore: fold the batch into a single grid step.
    v4 / v5p / v7x keep grid=(B,) 'parallel' so both TensorCores are used."""
    try:
        kind = jax.devices()[0].device_kind.lower()
    except Exception:
        return False
    return ("lite" in kind) or ("v5e" in kind) or ("v6e" in kind)


# ------------------------------- the kernel -------------------------------


def _head_kernel(feats_ref, ctr_ref, wat_ref, wbt_ref, lnp_ref, wh_ref, bh_ref, out_ref,
                 *, mid, bin_size, n_class, nb_pad, nc_pad, hp, mean_size, out_pad):
    f32, bf16 = jnp.float32, jnp.bfloat16
    M, nb, nc = mid, bin_size, n_class
    r_bcls = 8                 # bin_cls rows (aligned)
    r_bres = 8 + nb_pad        # bin_res rows (aligned)
    r_cls = 8 + 2 * nb_pad     # cls rows (aligned)

    def ln(v, idx):
        # LayerNorm over the feature (sublane) axis; params broadcast over lanes.
        w = lnp_ref[:, 2 * idx:2 * idx + 1]              # [M, 1]
        bias = lnp_ref[:, 2 * idx + 1:2 * idx + 2]       # [M, 1]
        mu = jnp.mean(v, axis=0, keepdims=True)
        var = jnp.mean((v - mu) ** 2, axis=0, keepdims=True)
        return (v - mu) * jax.lax.rsqrt(var + _LN_EPS) * w + bias

    # Static (1 or B) batch loop, unrolled at trace time.
    for b in range(feats_ref.shape[0]):
        x = feats_ref[b]
        if x.dtype != bf16:
            x = x.astype(bf16)                           # [C, N], points on lanes
        n = x.shape[1]

        # ---- branch chain: JIT first-layer dots + accumulating fused head dots ----
        pre = jnp.dot(wat_ref[0:M, :], x, preferred_element_type=f32)
        xyz_b = _gelu(ln(pre, 0)).astype(bf16)
        heads = bh_ref[...] + jnp.dot(wh_ref[0:hp, :], xyz_b, preferred_element_type=f32)

        pre = (jnp.dot(wat_ref[M:2 * M, :], x, preferred_element_type=f32)
               + jnp.dot(wbt_ref[0:M, :], xyz_b, preferred_element_type=f32))
        ori_b = _gelu(ln(pre, 1)).astype(bf16)
        heads = heads + jnp.dot(wh_ref[hp:2 * hp, :], ori_b, preferred_element_type=f32)

        pre = (jnp.dot(wat_ref[2 * M:3 * M, :], x, preferred_element_type=f32)
               + jnp.dot(wbt_ref[M:2 * M, :], ori_b, preferred_element_type=f32))
        whl_b = _gelu(ln(pre, 2)).astype(bf16)
        heads = heads + jnp.dot(wh_ref[2 * hp:3 * hp, :], whl_b, preferred_element_type=f32)

        pre = (jnp.dot(wat_ref[3 * M:4 * M, :], x, preferred_element_type=f32)
               + jnp.dot(wbt_ref[2 * M:3 * M, :], whl_b, preferred_element_type=f32))
        cls_b = _gelu(ln(pre, 3)).astype(bf16)
        heads = heads + jnp.dot(wh_ref[3 * hp:4 * hp, :], cls_b, preferred_element_type=f32)
        # heads [HP, N]: rows 0:3 xyz, 3:6 whl, r_bcls:+nb bin_cls, r_bres:+nb bin_res,
        # r_cls:+nc cls; pad rows inside argmax blocks carry -1e30 bias.

        # ---- PointResidual_BinOri_Coder.decode_torch (lane-parallel decode) ----
        ctr = ctr_ref[b]
        if ctr.dtype != f32:
            ctr = ctr.astype(f32)                        # [3, N]

        cls_blk = heads[r_cls:r_cls + nc_pad, :]         # aligned [nc_pad, N]
        c_iota = jax.lax.broadcasted_iota(jnp.int32, (nc_pad, n), 0).astype(f32)
        cmax = jnp.max(cls_blk, axis=0, keepdims=True)
        pred_cls = jnp.min(jnp.where(cls_blk == cmax, c_iota, float(nc_pad)),
                           axis=0, keepdims=True)        # [1, N], first-max index

        # anchor lookup with baked-in scalar mean sizes (no tiny VMEM slices)
        dxa = jnp.zeros((1, n), f32)
        dya = jnp.zeros((1, n), f32)
        dza = jnp.zeros((1, n), f32)
        for c in range(nc):
            sel = (pred_cls == float(c)).astype(f32)     # [1, N]
            dxa = dxa + sel * mean_size[c][0]
            dya = dya + sel * mean_size[c][1]
            dza = dza + sel * mean_size[c][2]
        anchors3 = jnp.concatenate([dxa, dya, dza], axis=0)      # [3, N]

        diag = jnp.sqrt(dxa * dxa + dya * dya)
        scale3 = jnp.concatenate([diag, diag, dza], axis=0)      # [3, N]
        xyz_g = heads[0:3, :] * scale3 + ctr                     # [3, N]
        dwl_g = jnp.exp(heads[3:6, :]) * anchors3                # [3, N]

        bin_blk = heads[r_bcls:r_bcls + nb_pad, :]               # aligned [nb_pad, N]
        b_iota = jax.lax.broadcasted_iota(jnp.int32, (nb_pad, n), 0).astype(f32)
        bmax = jnp.max(bin_blk, axis=0, keepdims=True)
        bin_id = jnp.min(jnp.where(bin_blk == bmax, b_iota, float(nb_pad)),
                         axis=0, keepdims=True)                  # [1, N]
        bin_oh = (b_iota == bin_id).astype(f32)
        res_blk = heads[r_bres:r_bres + nb_pad, :]               # aligned [nb_pad, N]
        bin_res = jnp.sum(bin_oh * res_blk, axis=0, keepdims=True)
        bin_inter = 2.0 * math.pi / nb
        rg = bin_id * bin_inter - math.pi + bin_inter * 0.5 + bin_res

        # Packed lane-dense output rows = [xyz|whl|bin_cls|bin_res | cls | ptbox(7)].
        pieces = [heads[0:6, :], bin_blk[0:nb, :], res_blk[0:nb, :],
                  cls_blk[0:nc, :], xyz_g, dwl_g, rg]
        if out_pad:
            pieces.append(jnp.zeros((out_pad, n), f32))
        out_ref[b] = jnp.concatenate(pieces, axis=0)


# ----------------------- one-time host-side param packing ------------------


def _pack_params(params, *, n_class, bin_size):
    """Fuse / transpose / pad / bf16-cast all weights ONCE (host numpy, init time)."""
    p = {k: np.asarray(v, np.float32) for k, v in params.items()}
    C, M = p["w_xyz"].shape
    nb, nc = bin_size, n_class
    assert M % 16 == 0 and C % 8 == 0
    nb_pad = _round_up(nb, 8)
    nc_pad = _round_up(nc, 8)
    r_bcls, r_bres, r_cls = 8, 8 + nb_pad, 8 + 2 * nb_pad
    hp = _round_up(8 + 2 * nb_pad + nc_pad, 16)          # bf16 sublane tile per WH block

    WAt = np.concatenate([p["w_xyz"].T, p["w_ori_a"].T,
                          p["w_whl_a"].T, p["w_cls_a"].T], axis=0)            # [4M, C]
    WBt = np.concatenate([p["w_ori_b"].T, p["w_whl_b"].T, p["w_cls_b"].T], 0)  # [3M, M]
    LNP = np.stack([p["lnw_xyz"][0], p["lnb_xyz"][0], p["lnw_ori"][0], p["lnb_ori"][0],
                    p["lnw_whl"][0], p["lnb_whl"][0], p["lnw_cls"][0], p["lnb_cls"][0]],
                   axis=1)                                                     # [M, 8]

    WH = np.zeros((4 * hp, M), np.float32)               # stacked per-branch head weights
    WH[0 * hp + 0:0 * hp + 3] = p["w_xyzh"].T                       # xyz branch -> rows 0:3
    WH[1 * hp + r_bcls:1 * hp + r_bcls + nb] = p["w_orih"][:, :nb].T  # ori -> bin_cls
    WH[1 * hp + r_bres:1 * hp + r_bres + nb] = p["w_orih"][:, nb:].T  # ori -> bin_res
    WH[2 * hp + 3:2 * hp + 6] = p["w_whlh"].T                       # whl branch -> rows 3:6
    WH[3 * hp + r_cls:3 * hp + r_cls + nc] = p["w_clsh"].T          # cls branch -> cls rows

    BH = np.zeros((hp, 1), np.float32)
    BH[0:3, 0] = p["b_xyzh"][0]
    BH[3:6, 0] = p["b_whlh"][0]
    BH[r_bcls:r_bcls + nb, 0] = p["b_orih"][0, :nb]
    BH[r_bcls + nb:r_bres, 0] = _NEG                     # argmax pad rows
    BH[r_bres:r_bres + nb, 0] = p["b_orih"][0, nb:]
    BH[r_cls:r_cls + nc, 0] = p["b_clsh"][0]
    BH[r_cls + nc:r_cls + nc_pad, 0] = _NEG              # argmax pad rows

    return {"WAt": jnp.asarray(WAt, jnp.bfloat16),
            "WBt": jnp.asarray(WBt, jnp.bfloat16),
            "LNP": jnp.asarray(LNP, jnp.float32),
            "WH": jnp.asarray(WH, jnp.bfloat16),
            "BH": jnp.asarray(BH, jnp.float32)}


# ------------------------------- forward ----------------------------------


def _forward_impl(ctr_feats, ctr_preds, packed, *, n_class, bin_size, mean_size, fold_batch):
    """ctr_feats: [B, C, N] (f32 or bf16), ctr_preds: [B, N, 3]."""
    B, C, N = ctr_feats.shape
    assert N % 128 == 0 and C % 8 == 0
    M = packed["LNP"].shape[0]
    hp = packed["WH"].shape[0] // 4
    nb_pad = _round_up(bin_size, 8)
    nc_pad = _round_up(n_class, 8)
    code_size = 6 + 2 * bin_size
    out_rows = code_size + n_class + 7
    out_rows_p = _round_up(out_rows, 8)

    ctr_t = jnp.transpose(ctr_preds.astype(jnp.float32), (0, 2, 1))   # [B, 3, N] (tiny)

    if fold_batch:                       # single TensorCore: whole batch in 1 grid step
        bblk, grid = B, (1,)
        io_map = lambda i: (0, 0, 0)
        sem = ("arbitrary",)
    else:                                # 2 TensorCores: one batch per core
        bblk, grid = 1, (B,)
        io_map = lambda i: (i, 0, 0)
        sem = ("parallel",)
    w_map = lambda i: (0, 0)             # constant-index weights: no re-DMA across steps

    kernel = functools.partial(
        _head_kernel, mid=M, bin_size=bin_size, n_class=n_class,
        nb_pad=nb_pad, nc_pad=nc_pad, hp=hp, mean_size=mean_size,
        out_pad=out_rows_p - out_rows)

    packed_out = pl.pallas_call(
        kernel,
        out_shape=jax.ShapeDtypeStruct((B, out_rows_p, N), jnp.float32),
        grid_spec=pltpu.PrefetchScalarGridSpec(
            num_scalar_prefetch=0,
            grid=grid,
            in_specs=[
                pl.BlockSpec((bblk, C, N), io_map),
                pl.BlockSpec((bblk, 3, N), io_map),
                pl.BlockSpec((4 * M, C), w_map),
                pl.BlockSpec((3 * M, M), w_map),
                pl.BlockSpec((M, 8), w_map),
                pl.BlockSpec((4 * hp, M), w_map),
                pl.BlockSpec((hp, 1), w_map),
            ],
            out_specs=pl.BlockSpec((bblk, out_rows_p, N), io_map),
        ),
        compiler_params=pltpu.CompilerParams(dimension_semantics=sem),
    )(ctr_feats, ctr_t, packed["WAt"], packed["WBt"], packed["LNP"],
      packed["WH"], packed["BH"])

    # ONE transpose, then contiguous slices (box rows are already in PyTorch order).
    out_t = jnp.transpose(packed_out, (0, 2, 1))                      # [B, N, rows]
    ctr_box_preds = out_t[..., 0:code_size]
    ctr_cls_preds = out_t[..., code_size:code_size + n_class]
    pt_box_preds = out_t[..., code_size + n_class:code_size + n_class + 7]

    targets = None  # gt_boxes is None
    return ctr_cls_preds, ctr_box_preds, pt_box_preds, targets


def make_ia_ssd_seq_head(params, *, n_class, bin_size, fold_batch=None):
    """Pack parameters once and return a jitted forward(ctr_feats, ctr_preds)."""
    packed = _pack_params(params, n_class=n_class, bin_size=bin_size)
    mean_size = tuple(tuple(float(v) for v in row)
                      for row in np.asarray(params["mean_size"], np.float32))
    if fold_batch is None:
        fold_batch = _single_tensorcore_chip()

    @jax.jit
    def forward(ctr_feats, ctr_preds):
        return _forward_impl(ctr_feats, ctr_preds, packed,
                             n_class=n_class, bin_size=bin_size,
                             mean_size=mean_size, fold_batch=fold_batch)

    return forward


# --------------------------- plain-JAX reference --------------------------


def reference_decode(box_preds, cls_preds, ctr_preds, mean_size, bin_size):
    pred_cls = jnp.argmax(cls_preds, axis=-1)
    anchor = mean_size[pred_cls]                              # [..., 3]
    xa, ya, za = ctr_preds[..., 0:1], ctr_preds[..., 1:2], ctr_preds[..., 2:3]
    dxa, dya, dza = anchor[..., 0:1], anchor[..., 1:2], anchor[..., 2:3]
    xt, yt, zt = box_preds[..., 0:1], box_preds[..., 1:2], box_preds[..., 2:3]
    dxt, dyt, dzt = box_preds[..., 3:4], box_preds[..., 4:5], box_preds[..., 5:6]
    ori = box_preds[..., 6:]
    diag = jnp.sqrt(dxa ** 2 + dya ** 2)
    xg = xt * diag + xa
    yg = yt * diag + ya
    zg = zt * dza + za
    dxg = jnp.exp(dxt) * dxa
    dyg = jnp.exp(dyt) * dya
    dzg = jnp.exp(dzt) * dza
    bin_id = jnp.argmax(ori[..., :bin_size], axis=-1)
    bin_res = jnp.take_along_axis(ori[..., bin_size:], bin_id[..., None], axis=-1)
    bin_inter = 2.0 * math.pi / bin_size
    rg = bin_id[..., None].astype(jnp.float32) * bin_inter - math.pi + bin_inter / 2.0 + bin_res
    return jnp.concatenate([xg, yg, zg, dxg, dyg, dzg, rg], axis=-1)


def reference_forward(ctr_feats, ctr_preds, params, *, n_class, bin_size):
    p = params
    x = jnp.transpose(ctr_feats, (0, 2, 1)).astype(jnp.float32)
    ctr = ctr_preds.astype(jnp.float32)

    def mm(a, b):
        # bf16-input / f32-accumulate matmul (mirrors the TPU kernel's MXU numerics).
        return jax.lax.dot_general(
            a.astype(jnp.bfloat16), b.astype(jnp.bfloat16),
            (((a.ndim - 1,), (0,)), ((), ())),
            preferred_element_type=jnp.float32)

    def ln(v, w, b):
        mu = v.mean(-1, keepdims=True)
        var = ((v - mu) ** 2).mean(-1, keepdims=True)
        return (v - mu) * jax.lax.rsqrt(var + _LN_EPS) * w + b

    g = lambda v: jax.nn.gelu(v, approximate=False)   # exact erf GELU (PyTorch default)

    xyz_feat = g(ln(mm(x, p["w_xyz"]), p["lnw_xyz"], p["lnb_xyz"]))
    xyz = mm(xyz_feat, p["w_xyzh"]) + p["b_xyzh"]
    ori_feat = g(ln(mm(x, p["w_ori_a"]) + mm(xyz_feat, p["w_ori_b"]),
                    p["lnw_ori"], p["lnb_ori"]))
    ori = mm(ori_feat, p["w_orih"]) + p["b_orih"]
    whl_feat = g(ln(mm(x, p["w_whl_a"]) + mm(ori_feat, p["w_whl_b"]),
                    p["lnw_whl"], p["lnb_whl"]))
    whl = mm(whl_feat, p["w_whlh"]) + p["b_whlh"]
    cls_feat = g(ln(mm(x, p["w_cls_a"]) + mm(whl_feat, p["w_cls_b"]),
                    p["lnw_cls"], p["lnb_cls"]))
    cls = mm(cls_feat, p["w_clsh"]) + p["b_clsh"]

    box = jnp.concatenate([xyz, whl, ori], axis=-1)
    ptbox = reference_decode(box, cls, ctr, p["mean_size"], bin_size)
    return cls, box, ptbox


# ------------------------------ param init --------------------------------


def init_params(key, C, M, n_class, bin_size):
    keys = iter(jax.random.split(key, 32))

    def rnd(shape, scale=0.05):
        return jax.random.normal(next(keys), shape, jnp.float32) * scale

    return {
        "w_xyz": rnd((C, M)), "lnw_xyz": 1.0 + rnd((1, M)), "lnb_xyz": rnd((1, M)),
        "w_xyzh": rnd((M, 3)), "b_xyzh": rnd((1, 3)),
        "w_ori_a": rnd((C, M)), "w_ori_b": rnd((M, M)),
        "lnw_ori": 1.0 + rnd((1, M)), "lnb_ori": rnd((1, M)),
        "w_orih": rnd((M, 2 * bin_size)), "b_orih": rnd((1, 2 * bin_size)),
        "w_whl_a": rnd((C, M)), "w_whl_b": rnd((M, M)),
        "lnw_whl": 1.0 + rnd((1, M)), "lnb_whl": rnd((1, M)),
        "w_whlh": rnd((M, 3)), "b_whlh": rnd((1, 3)),
        "w_cls_a": rnd((C, M)), "w_cls_b": rnd((M, M)),
        "lnw_cls": 1.0 + rnd((1, M)), "lnb_cls": rnd((1, M)),
        "w_clsh": rnd((M, n_class)), "b_clsh": rnd((1, n_class)),
        # mean_size buffer (3 classes x [l, w, h]), deterministic constant
        "mean_size": jnp.array([[3.9, 1.6, 1.56],
                                [0.8, 0.6, 1.73],
                                [1.76, 0.6, 1.73]], jnp.float32),
    }


# --------------------------------- main ------------------------------------

if __name__ == "__main__":
    B, C, M, N = 2, 64, 64, 256          # batch, in_channels, mid_channels, last_n_point
    n_class, bin_size = 3, 12            # code_size = 6 + 2*bin_size = 30

    key = jax.random.PRNGKey(0)
    kp, kf, kc = jax.random.split(key, 3)
    params = init_params(kp, C, M, n_class, bin_size)

    ctr_feats = jax.random.normal(kf, (B, C, N), jnp.float32)          # [B, C, last_n_point]
    ctr_preds = jax.random.normal(kc, (B, N, 3), jnp.float32) * 10.0   # [B, last_n_point, 3]

    # Parameter packing happens once, here; the returned forward is a jitted closure.
    forward = make_ia_ssd_seq_head(params, n_class=n_class, bin_size=bin_size)

    cls_preds, box_preds, pt_box_preds, targets = forward(ctr_feats, ctr_preds)
    jax.block_until_ready((cls_preds, box_preds, pt_box_preds))

    rcls, rbox, rpt = reference_forward(
        ctr_feats, ctr_preds, params, n_class=n_class, bin_size=bin_size)

    np.testing.assert_allclose(np.asarray(cls_preds), np.asarray(rcls), rtol=1e-3, atol=1e-3)
    np.testing.assert_allclose(np.asarray(box_preds), np.asarray(rbox), rtol=1e-3, atol=1e-3)

    # Validate the in-kernel box decode against a plain-JAX decode of the kernel's own
    # cls/box outputs: the argmax-based decode is tie-sensitive, so comparing decodes
    # on identical inputs removes spurious flakiness while fully checking the decode math.
    pt_check = reference_decode(box_preds, cls_preds, ctr_preds.astype(jnp.float32),
                                params["mean_size"], bin_size)
    np.testing.assert_allclose(np.asarray(pt_box_preds), np.asarray(pt_check),
                               rtol=1e-3, atol=1e-3)
    # End-to-end sanity vs the fully independent reference (tolerate rare argmax flips
    # from sub-1e-4 score differences).
    close = np.isclose(np.asarray(pt_box_preds), np.asarray(rpt), rtol=1e-2, atol=1e-2)
    assert close.mean() > 0.97

    assert cls_preds.shape == (B, N, n_class)
    assert box_preds.shape == (B, N, 6 + 2 * bin_size)
    assert pt_box_preds.shape == (B, N, 7)
    assert targets is None

    print("KERNEL_OK")
</pallas_src>

<mosaic_0001>
module attributes {stable_mosaic.version = 11 : i64} {
  func.func @_head_kernel(%arg0: i32, %arg1: memref<1x64x256xf32, #tpu.memory_space<vmem>>, %arg2: memref<1x3x256xf32, #tpu.memory_space<vmem>>, %arg3: memref<256x64xbf16, #tpu.memory_space<vmem>>, %arg4: memref<192x64xbf16, #tpu.memory_space<vmem>>, %arg5: memref<64x8xf32, #tpu.memory_space<vmem>>, %arg6: memref<192x64xbf16, #tpu.memory_space<vmem>>, %arg7: memref<48x1xf32, #tpu.memory_space<vmem>>, %arg8: memref<1x40x256xf32, #tpu.memory_space<vmem>>) attributes {dimension_semantics = [#tpu.dimension_semantics<parallel>], iteration_bounds = array<i64: 2>, scalar_prefetch = 0 : i64, scratch_operands = 0 : i64, tpu.core_type = #tpu.core_type<tc>, window_params = [{transform_indices = @transform_0, window_bounds = array<i64: 1, 64, 256>}, {transform_indices = @transform_1, window_bounds = array<i64: 1, 3, 256>}, {pipeline_mode = #tpu.pipeline_mode<synchronous>, transform_indices = @transform_2, window_bounds = array<i64: 256, 64>}, {pipeline_mode = #tpu.pipeline_mode<synchronous>, transform_indices = @transform_3, window_bounds = array<i64: 192, 64>}, {pipeline_mode = #tpu.pipeline_mode<synchronous>, transform_indices = @transform_4, window_bounds = array<i64: 64, 8>}, {pipeline_mode = #tpu.pipeline_mode<synchronous>, transform_indices = @transform_5, window_bounds = array<i64: 192, 64>}, {pipeline_mode = #tpu.pipeline_mode<synchronous>, transform_indices = @transform_6, window_bounds = array<i64: 48, 1>}, {transform_indices = @transform_7, window_bounds = array<i64: 1, 40, 256>}]} {
    %c0 = arith.constant 0 : index
    %c0_0 = arith.constant 0 : index
    %c0_1 = arith.constant 0 : index
    %0 = vector.load %arg1[%c0, %c0_0, %c0_1] : memref<1x64x256xf32, #tpu.memory_space<vmem>>, vector<1x64x256xf32>
    %1 = vector.shape_cast %0 : vector<1x64x256xf32> to vector<64x256xf32>
    %2 = arith.truncf %1 : vector<64x256xf32> to vector<64x256xbf16>
    %c0_2 = arith.constant 0 : index
    %c0_3 = arith.constant 0 : index
    %3 = vector.load %arg3[%c0_2, %c0_3] : memref<256x64xbf16, #tpu.memory_space<vmem>>, vector<64x64xbf16>
    %cst = arith.constant dense<0.000000e+00> : vector<64x256xf32>
    %4 = tpu.matmul %3, %2, %cst {dimension_numbers = #tpu.dot_dimension_numbers<[1], [0], [0], [1], [0, 0, 1, 1], [], []>} : vector<64x64xbf16>, vector<64x256xbf16>, vector<64x256xf32> -> vector<64x256xf32>
    %c0_4 = arith.constant 0 : index
    %c0_5 = arith.constant 0 : index
    %5 = vector.load %arg5[%c0_4, %c0_5] : memref<64x8xf32, #tpu.memory_space<vmem>>, vector<64x1xf32>
    %c0_6 = arith.constant 0 : index
    %c1 = arith.constant 1 : index
    %6 = vector.load %arg5[%c0_6, %c1] : memref<64x8xf32, #tpu.memory_space<vmem>>, vector<64x1xf32>
    %cst_7 = arith.constant dense<0.000000e+00> : vector<256xf32>
    %7 = vector.multi_reduction <add>, %4, %cst_7 [0] : vector<64x256xf32> to vector<256xf32>
    %8 = vector.shape_cast %7 : vector<256xf32> to vector<1x256xf32>
    %cst_8 = arith.constant 6.400000e+01 : f32
    %9 = vector.broadcast %cst_8 : f32 to vector<1x256xf32>
    %10 = arith.divf %8, %9 : vector<1x256xf32>
    %11 = vector.broadcast %10 : vector<1x256xf32> to vector<64x256xf32>
    %12 = arith.subf %4, %11 : vector<64x256xf32>
    %13 = arith.mulf %12, %12 : vector<64x256xf32>
    %cst_9 = arith.constant dense<0.000000e+00> : vector<256xf32>
    %14 = vector.multi_reduction <add>, %13, %cst_9 [0] : vector<64x256xf32> to vector<256xf32>
    %15 = vector.shape_cast %14 : vector<256xf32> to vector<1x256xf32>
    %cst_10 = arith.constant 6.400000e+01 : f32
    %16 = vector.broadcast %cst_10 : f32 to vector<1x256xf32>
    %17 = arith.divf %15, %16 : vector<1x256xf32>
    %18 = vector.broadcast %10 : vector<1x256xf32> to vector<64x256xf32>
    %19 = arith.subf %4, %18 : vector<64x256xf32>
    %cst_11 = arith.constant 9.99999974E-6 : f32
    %20 = vector.broadcast %cst_11 : f32 to vector<1x256xf32>
    %21 = arith.addf %17, %20 : vector<1x256xf32>
    %22 = math.rsqrt %21 : vector<1x256xf32>
    %23 = vector.broadcast %22 : vector<1x256xf32> to vector<64x256xf32>
    %24 = arith.mulf %19, %23 : vector<64x256xf32>
    %25 = vector.broadcast %5 : vector<64x1xf32> to vector<64x256xf32>
    %26 = arith.mulf %24, %25 : vector<64x256xf32>
    %27 = vector.broadcast %6 : vector<64x1xf32> to vector<64x256xf32>
    %28 = arith.addf %26, %27 : vector<64x256xf32>
    %cst_12 = arith.constant 5.000000e-01 : f32
    %29 = vector.broadcast %cst_12 : f32 to vector<64x256xf32>
    %30 = arith.mulf %29, %28 : vector<64x256xf32>
    %cst_13 = arith.constant 0.707106769 : f32
    %31 = vector.broadcast %cst_13 : f32 to vector<64x256xf32>
    %32 = arith.mulf %28, %31 : vector<64x256xf32>
    %cst_14 = arith.constant 0.000000e+00 : f32
    %33 = vector.broadcast %cst_14 : f32 to vector<64x256xf32>
    %34 = arith.cmpf oge, %32, %33 : vector<64x256xf32>
    %cst_15 = arith.constant 1.000000e+00 : f32
    %cst_16 = arith.constant -1.000000e+00 : f32
    %35 = vector.broadcast %cst_15 : f32 to vector<64x256xf32>
    %36 = vector.broadcast %cst_16 : f32 to vector<64x256xf32>
    %37 = arith.select %34, %35, %36 : vector<64x256xi1>, vector<64x256xf32>
    %38 = math.absf %32 : vector<64x256xf32>
    %cst_17 = arith.constant 0.327591091 : f32
    %39 = vector.broadcast %cst_17 : f32 to vector<64x256xf32>
    %40 = arith.mulf %39, %38 : vector<64x256xf32>
    %cst_18 = arith.constant 1.000000e+00 : f32
    %41 = vector.broadcast %cst_18 : f32 to vector<64x256xf32>
    %42 = arith.addf %41, %40 : vector<64x256xf32>
    %cst_19 = arith.constant 1.000000e+00 : f32
    %43 = vector.broadcast %cst_19 : f32 to vector<64x256xf32>
    %44 = arith.divf %43, %42 : vector<64x256xf32>
    %cst_20 = arith.constant 1.06140542 : f32
    %45 = vector.broadcast %cst_20 : f32 to vector<64x256xf32>
    %46 = arith.mulf %45, %44 : vector<64x256xf32>
    %cst_21 = arith.constant -1.45315206 : f32
    %47 = vector.broadcast %cst_21 : f32 to vector<64x256xf32>
    %48 = arith.addf %46, %47 : vector<64x256xf32>
    %49 = arith.mulf %48, %44 : vector<64x256xf32>
    %cst_22 = arith.constant 1.42141378 : f32
    %50 = vector.broadcast %cst_22 : f32 to vector<64x256xf32>
    %51 = arith.addf %49, %50 : vector<64x256xf32>
    %52 = arith.mulf %51, %44 : vector<64x256xf32>
    %cst_23 = arith.constant -0.284496725 : f32
    %53 = vector.broadcast %cst_23 : f32 to vector<64x256xf32>
    %54 = arith.addf %52, %53 : vector<64x256xf32>
    %55 = arith.mulf %54, %44 : vector<64x256xf32>
    %cst_24 = arith.constant 0.254829586 : f32
    %56 = vector.broadcast %cst_24 : f32 to vector<64x256xf32>
    %57 = arith.addf %55, %56 : vector<64x256xf32>
    %58 = arith.mulf %57, %44 : vector<64x256xf32>
    %cst_25 = arith.constant 0.000000e+00 : f32
    %59 = vector.broadcast %cst_25 : f32 to vector<64x256xf32>
    %60 = arith.subf %59, %38 : vector<64x256xf32>
    %61 = arith.mulf %60, %38 : vector<64x256xf32>
    %62 = math.exp %61 : vector<64x256xf32>
    %63 = arith.mulf %58, %62 : vector<64x256xf32>
    %cst_26 = arith.constant 1.000000e+00 : f32
    %64 = vector.broadcast %cst_26 : f32 to vector<64x256xf32>
    %65 = arith.subf %64, %63 : vector<64x256xf32>
    %66 = arith.mulf %37, %65 : vector<64x256xf32>
    %cst_27 = arith.constant 1.000000e+00 : f32
    %67 = vector.broadcast %cst_27 : f32 to vector<64x256xf32>
    %68 = arith.addf %67, %66 : vector<64x256xf32>
    %69 = arith.mulf %30, %68 : vector<64x256xf32>
    %70 = arith.truncf %69 : vector<64x256xf32> to vector<64x256xbf16>
    %c0_28 = arith.constant 0 : index
    %c0_29 = arith.constant 0 : index
    %71 = vector.load %arg7[%c0_28, %c0_29] : memref<48x1xf32, #tpu.memory_space<vmem>>, vector<48x1xf32>
    %c0_30 = arith.constant 0 : index
    %c0_31 = arith.constant 0 : index
    %72 = vector.load %arg6[%c0_30, %c0_31] : memref<192x64xbf16, #tpu.memory_space<vmem>>, vector<48x64xbf16>
    %cst_32 = arith.constant dense<0.000000e+00> : vector<48x256xf32>
    %73 = tpu.matmul %72, %70, %cst_32 {dimension_numbers = #tpu.dot_dimension_numbers<[1], [0], [0], [1], [0, 0, 1, 1], [], []>} : vector<48x64xbf16>, vector<64x256xbf16>, vector<48x256xf32> -> vector<48x256xf32>
    %74 = vector.broadcast %71 : vector<48x1xf32> to vector<48x256xf32>
    %75 = arith.addf %74, %73 : vector<48x256xf32>
    %c64 = arith.constant 64 : index
    %c0_33 = arith.constant 0 : index
    %76 = vector.load %arg3[%c64, %c0_33] : memref<256x64xbf16, #tpu.memory_space<vmem>>, vector<64x64xbf16>
    %cst_34 = arith.constant dense<0.000000e+00> : vector<64x256xf32>
    %77 = tpu.matmul %76, %2, %cst_34 {dimension_numbers = #tpu.dot_dimension_numbers<[1], [0], [0], [1], [0, 0, 1, 1], [], []>} : vector<64x64xbf16>, vector<64x256xbf16>, vector<64x256xf32> -> vector<64x256xf32>
    %c0_35 = arith.constant 0 : index
    %c0_36 = arith.constant 0 : index
    %78 = vector.load %arg4[%c0_35, %c0_36] : memref<192x64xbf16, #tpu.memory_space<vmem>>, vector<64x64xbf16>
    %cst_37 = arith.constant dense<0.000000e+00> : vector<64x256xf32>
    %79 = tpu.matmul %78, %70, %cst_37 {dimension_numbers = #tpu.dot_dimension_numbers<[1], [0], [0], [1], [0, 0, 1, 1], [], []>} : vector<64x64xbf16>, vector<64x256xbf16>, vector<64x256xf32> -> vector<64x256xf32>
    %80 = arith.addf %77, %79 : vector<64x256xf32>
    %c0_38 = arith.constant 0 : index
    %c2 = arith.constant 2 : index
    %81 = vector.load %arg5[%c0_38, %c2] : memref<64x8xf32, #tpu.memory_space<vmem>>, vector<64x1xf32>
    %c0_39 = arith.constant 0 : index
    %c3 = arith.constant 3 : index
    %82 = vector.load %arg5[%c0_39, %c3] : memref<64x8xf32, #tpu.memory_space<vmem>>, vector<64x1xf32>
    %cst_40 = arith.constant dense<0.000000e+00> : vector<256xf32>
    %83 = vector.multi_reduction <add>, %80, %cst_40 [0] : vector<64x256xf32> to vector<256xf32>
    %84 = vector.shape_cast %83 : vector<256xf32> to vector<1x256xf32>
    %cst_41 = arith.constant 6.400000e+01 : f32
    %85 = vector.broadcast %cst_41 : f32 to vector<1x256xf32>
    %86 = arith.divf %84, %85 : vector<1x256xf32>
    %87 = vector.broadcast %86 : vector<1x256xf32> to vector<64x256xf32>
    %88 = arith.subf %80, %87 : vector<64x256xf32>
    %89 = arith.mulf %88, %88 : vector<64x256xf32>
    %cst_42 = arith.constant dense<0.000000e+00> : vector<256xf32>
    %90 = vector.multi_reduction <add>, %89, %cst_42 [0] : vector<64x256xf32> to vector<256xf32>
    %91 = vector.shape_cast %90 : vector<256xf32> to vector<1x256xf32>
    %cst_43 = arith.constant 6.400000e+01 : f32
    %92 = vector.broadcast %cst_43 : f32 to vector<1x256xf32>
    %93 = arith.divf %91, %92 : vector<1x256xf32>
    %94 = vector.broadcast %86 : vector<1x256xf32> to vector<64x256xf32>
    %95 = arith.subf %80, %94 : vector<64x256xf32>
    %cst_44 = arith.constant 9.99999974E-6 : f32
    %96 = vector.broadcast %cst_44 : f32 to vector<1x256xf32>
    %97 = arith.addf %93, %96 : vector<1x256xf32>
    %98 = math.rsqrt %97 : vector<1x256xf32>
    %99 = vector.broadcast %98 : vector<1x256xf32> to vector<64x256xf32>
    %100 = arith.mulf %95, %99 : vector<64x256xf32>
    %101 = vector.broadcast %81 : vector<64x1xf32> to vector<64x256xf32>
    %102 = arith.mulf %100, %101 : vector<64x256xf32>
    %103 = vector.broadcast %82 : vector<64x1xf32> to vector<64x256xf32>
    %104 = arith.addf %102, %103 : vector<64x256xf32>
    %cst_45 = arith.constant 5.000000e-01 : f32
    %105 = vector.broadcast %cst_45 : f32 to vector<64x256xf32>
    %106 = arith.mulf %105, %104 : vector<64x256xf32>
    %cst_46 = arith.constant 0.707106769 : f32
    %107 = vector.broadcast %cst_46 : f32 to vector<64x256xf32>
    %108 = arith.mulf %104, %107 : vector<64x256xf32>
    %cst_47 = arith.constant 0.000000e+00 : f32
    %109 = vector.broadcast %cst_47 : f32 to vector<64x256xf32>
    %110 = arith.cmpf oge, %108, %109 : vector<64x256xf32>
    %cst_48 = arith.constant 1.000000e+00 : f32
    %cst_49 = arith.constant -1.000000e+00 : f32
    %111 = vector.broadcast %cst_48 : f32 to vector<64x256xf32>
    %112 = vector.broadcast %cst_49 : f32 to vector<64x256xf32>
    %113 = arith.select %110, %111, %112 : vector<64x256xi1>, vector<64x256xf32>
    %114 = math.absf %108 : vector<64x256xf32>
    %cst_50 = arith.constant 0.327591091 : f32
    %115 = vector.broadcast %cst_50 : f32 to vector<64x256xf32>
    %116 = arith.mulf %115, %114 : vector<64x256xf32>
    %cst_51 = arith.constant 1.000000e+00 : f32
    %117 = vector.broadcast %cst_51 : f32 to vector<64x256xf32>
    %118 = arith.addf %117, %116 : vector<64x256xf32>
    %cst_52 = arith.constant 1.000000e+00 : f32
    %119 = vector.broadcast %cst_52 : f32 to vector<64x256xf32>
    %120 = arith.divf %119, %118 : vector<64x256xf32>
    %cst_53 = arith.constant 1.06140542 : f32
    %121 = vector.broadcast %cst_53 : f32 to vector<64x256xf32>
    %122 = arith.mulf %121, %120 : vector<64x256xf32>
    %cst_54 = arith.constant -1.45315206 : f32
    %123 = vector.broadcast %cst_54 : f32 to vector<64x256xf32>
    %124 = arith.addf %122, %123 : vector<64x256xf32>
    %125 = arith.mulf %124, %120 : vector<64x256xf32>
    %cst_55 = arith.constant 1.42141378 : f32
    %126 = vector.broadcast %cst_55 : f32 to vector<64x256xf32>
    %127 = arith.addf %125, %126 : vector<64x256xf32>
    %128 = arith.mulf %127, %120 : vector<64x256xf32>
    %cst_56 = arith.constant -0.284496725 : f32
    %129 = vector.broadcast %cst_56 : f32 to vector<64x256xf32>
    %130 = arith.addf %128, %129 : vector<64x256xf32>
    %131 = arith.mulf %130, %120 : vector<64x256xf32>
    %cst_57 = arith.constant 0.254829586 : f32
    %132 = vector.broadcast %cst_57 : f32 to vector<64x256xf32>
    %133 = arith.addf %131, %132 : vector<64x256xf32>
    %134 = arith.mulf %133, %120 : vector<64x256xf32>
    %cst_58 = arith.constant 0.000000e+00 : f32
    %135 = vector.broadcast %cst_58 : f32 to vector<64x256xf32>
    %136 = arith.subf %135, %114 : vector<64x256xf32>
    %137 = arith.mulf %136, %114 : vector<64x256xf32>
    %138 = math.exp %137 : vector<64x256xf32>
    %139 = arith.mulf %134, %138 : vector<64x256xf32>
    %cst_59 = arith.constant 1.000000e+00 : f32
    %140 = vector.broadcast %cst_59 : f32 to vector<64x256xf32>
    %141 = arith.subf %140, %139 : vector<64x256xf32>
    %142 = arith.mulf %113, %141 : vector<64x256xf32>
    %cst_60 = arith.constant 1.000000e+00 : f32
    %143 = vector.broadcast %cst_60 : f32 to vector<64x256xf32>
    %144 = arith.addf %143, %142 : vector<64x256xf32>
    %145 = arith.mulf %106, %144 : vector<64x256xf32>
    %146 = arith.truncf %145 : vector<64x256xf32> to vector<64x256xbf16>
    %c48 = arith.constant 48 : index
    %c0_61 = arith.constant 0 : index
    %147 = vector.load %arg6[%c48, %c0_61] : memref<192x64xbf16, #tpu.memory_space<vmem>>, vector<48x64xbf16>
    %cst_62 = arith.constant dense<0.000000e+00> : vector<48x256xf32>
    %148 = tpu.matmul %147, %146, %cst_62 {dimension_numbers = #tpu.dot_dimension_numbers<[1], [0], [0], [1], [0, 0, 1, 1], [], []>} : vector<48x64xbf16>, vector<64x256xbf16>, vector<48x256xf32> -> vector<48x256xf32>
    %149 = arith.addf %75, %148 : vector<48x256xf32>
    %c128 = arith.constant 128 : index
    %c0_63 = arith.constant 0 : index
    %150 = vector.load %arg3[%c128, %c0_63] : memref<256x64xbf16, #tpu.memory_space<vmem>>, vector<64x64xbf16>
    %cst_64 = arith.constant dense<0.000000e+00> : vector<64x256xf32>
    %151 = tpu.matmul %150, %2, %cst_64 {dimension_numbers = #tpu.dot_dimension_numbers<[1], [0], [0], [1], [0, 0, 1, 1], [], []>} : vector<64x64xbf16>, vector<64x256xbf16>, vector<64x256xf32> -> vector<64x256xf32>
    %c64_65 = arith.constant 64 : index
    %c0_66 = arith.constant 0 : index
    %152 = vector.load %arg4[%c64_65, %c0_66] : memref<192x64xbf16, #tpu.memory_space<vmem>>, vector<64x64xbf16>
    %cst_67 = arith.constant dense<0.000000e+00> : vector<64x256xf32>
    %153 = tpu.matmul %152, %146, %cst_67 {dimension_numbers = #tpu.dot_dimension_numbers<[1], [0], [0], [1], [0, 0, 1, 1], [], []>} : vector<64x64xbf16>, vector<64x256xbf16>, vector<64x256xf32> -> vector<64x256xf32>
    %154 = arith.addf %151, %153 : vector<64x256xf32>
    %c0_68 = arith.constant 0 : index
    %c4 = arith.constant 4 : index
    %155 = vector.load %arg5[%c0_68, %c4] : memref<64x8xf32, #tpu.memory_space<vmem>>, vector<64x1xf32>
    %c0_69 = arith.constant 0 : index
    %c5 = arith.constant 5 : index
    %156 = vector.load %arg5[%c0_69, %c5] : memref<64x8xf32, #tpu.memory_space<vmem>>, vector<64x1xf32>
    %cst_70 = arith.constant dense<0.000000e+00> : vector<256xf32>
    %157 = vector.multi_reduction <add>, %154, %cst_70 [0] : vector<64x256xf32> to vector<256xf32>
    %158 = vector.shape_cast %157 : vector<256xf32> to vector<1x256xf32>
    %cst_71 = arith.constant 6.400000e+01 : f32
    %159 = vector.broadcast %cst_71 : f32 to vector<1x256xf32>
    %160 = arith.divf %158, %159 : vector<1x256xf32>
    %161 = vector.broadcast %160 : vector<1x256xf32> to vector<64x256xf32>
    %162 = arith.subf %154, %161 : vector<64x256xf32>
    %163 = arith.mulf %162, %162 : vector<64x256xf32>
    %cst_72 = arith.constant dense<0.000000e+00> : vector<256xf32>
    %164 = vector.multi_reduction <add>, %163, %cst_72 [0] : vector<64x256xf32> to vector<256xf32>
    %165 = vector.shape_cast %164 : vector<256xf32> to vector<1x256xf32>
    %cst_73 = arith.constant 6.400000e+01 : f32
    %166 = vector.broadcast %cst_73 : f32 to vector<1x256xf32>
    %167 = arith.divf %165, %166 : vector<1x256xf32>
    %168 = vector.broadcast %160 : vector<1x256xf32> to vector<64x256xf32>
    %169 = arith.subf %154, %168 : vector<64x256xf32>
    %cst_74 = arith.constant 9.99999974E-6 : f32
    %170 = vector.broadcast %cst_74 : f32 to vector<1x256xf32>
    %171 = arith.addf %167, %170 : vector<1x256xf32>
    %172 = math.rsqrt %171 : vector<1x256xf32>
    %173 = vector.broadcast %172 : vector<1x256xf32> to vector<64x256xf32>
    %174 = arith.mulf %169, %173 : vector<64x256xf32>
    %175 = vector.broadcast %155 : vector<64x1xf32> to vector<64x256xf32>
    %176 = arith.mulf %174, %175 : vector<64x256xf32>
    %177 = vector.broadcast %156 : vector<64x1xf32> to vector<64x256xf32>
    %178 = arith.addf %176, %177 : vector<64x256xf32>
    %cst_75 = arith.constant 5.000000e-01 : f32
    %179 = vector.broadcast %cst_75 : f32 to vector<64x256xf32>
    %180 = arith.mulf %179, %178 : vector<64x256xf32>
    %cst_76 = arith.constant 0.707106769 : f32
    %181 = vector.broadcast %cst_76 : f32 to vector<64x256xf32>
    %182 = arith.mulf %178, %181 : vector<64x256xf32>
    %cst_77 = arith.constant 0.000000e+00 : f32
    %183 = vector.broadcast %cst_77 : f32 to vector<64x256xf32>
    %184 = arith.cmpf oge, %182, %183 : vector<64x256xf32>
    %cst_78 = arith.constant 1.000000e+00 : f32
    %cst_79 = arith.constant -1.000000e+00 : f32
    %185 = vector.broadcast %cst_78 : f32 to vector<64x256xf32>
    %186 = vector.broadcast %cst_79 : f32 to vector<64x256xf32>
    %187 = arith.select %184, %185, %186 : vector<64x256xi1>, vector<64x256xf32>
    %188 = math.absf %182 : vector<64x256xf32>
    %cst_80 = arith.constant 0.327591091 : f32
    %189 = vector.broadcast %cst_80 : f32 to vector<64x256xf32>
    %190 = arith.mulf %189, %188 : vector<64x256xf32>
    %cst_81 = arith.constant 1.000000e+00 : f32
    %191 = vector.broadcast %cst_81 : f32 to vector<64x256xf32>
    %192 = arith.addf %191, %190 : vector<64x256xf32>
    %cst_82 = arith.constant 1.000000e+00 : f32
    %193 = vector.broadcast %cst_82 : f32 to vector<64x256xf32>
    %194 = arith.divf %193, %192 : vector<64x256xf32>
    %cst_83 = arith.constant 1.06140542 : f32
    %195 = vector.broadcast %cst_83 : f32 to vector<64x256xf32>
    %196 = arith.mulf %195, %194 : vector<64x256xf32>
    %cst_84 = arith.constant -1.45315206 : f32
    %197 = vector.broadcast %cst_84 : f32 to vector<64x256xf32>
    %198 = arith.addf %196, %197 : vector<64x256xf32>
    %199 = arith.mulf %198, %194 : vector<64x256xf32>
    %cst_85 = arith.constant 1.42141378 : f32
    %200 = vector.broadcast %cst_85 : f32 to vector<64x256xf32>
    %201 = arith.addf %199, %200 : vector<64x256xf32>
    %202 = arith.mulf %201, %194 : vector<64x256xf32>
    %cst_86 = arith.constant -0.284496725 : f32
    %203 = vector.broadcast %cst_86 : f32 to vector<64x256xf32>
    %204 = arith.addf %202, %203 : vector<64x256xf32>
    %205 = arith.mulf %204, %194 : vector<64x256xf32>
    %cst_87 = arith.constant 0.254829586 : f32
    %206 = vector.broadcast %cst_87 : f32 to vector<64x256xf32>
    %207 = arith.addf %205, %206 : vector<64x256xf32>
    %208 = arith.mulf %207, %194 : vector<64x256xf32>
    %cst_88 = arith.constant 0.000000e+00 : f32
    %209 = vector.broadcast %cst_88 : f32 to vector<64x256xf32>
    %210 = arith.subf %209, %188 : vector<64x256xf32>
    %211 = arith.mulf %210, %188 : vector<64x256xf32>
    %212 = math.exp %211 : vector<64x256xf32>
    %213 = arith.mulf %208, %212 : vector<64x256xf32>
    %cst_89 = arith.constant 1.000000e+00 : f32
    %214 = vector.broadcast %cst_89 : f32 to vector<64x256xf32>
    %215 = arith.subf %214, %213 : vector<64x256xf32>
    %216 = arith.mulf %187, %215 : vector<64x256xf32>
    %cst_90 = arith.constant 1.000000e+00 : f32
    %217 = vector.broadcast %cst_90 : f32 to vector<64x256xf32>
    %218 = arith.addf %217, %216 : vector<64x256xf32>
    %219 = arith.mulf %180, %218 : vector<64x256xf32>
    %220 = arith.truncf %219 : vector<64x256xf32> to vector<64x256xbf16>
    %c96 = arith.constant 96 : index
    %c0_91 = arith.constant 0 : index
    %221 = vector.load %arg6[%c96, %c0_91] : memref<192x64xbf16, #tpu.memory_space<vmem>>, vector<48x64xbf16>
    %cst_92 = arith.constant dense<0.000000e+00> : vector<48x256xf32>
    %222 = tpu.matmul %221, %220, %cst_92 {dimension_numbers = #tpu.dot_dimension_numbers<[1], [0], [0], [1], [0, 0, 1, 1], [], []>} : vector<48x64xbf16>, vector<64x256xbf16>, vector<48x256xf32> -> vector<48x256xf32>
    %223 = arith.addf %149, %222 : vector<48x256xf32>
    %c192 = arith.constant 192 : index
    %c0_93 = arith.constant 0 : index
    %224 = vector.load %arg3[%c192, %c0_93] : memref<256x64xbf16, #tpu.memory_space<vmem>>, vector<64x64xbf16>
    %cst_94 = arith.constant dense<0.000000e+00> : vector<64x256xf32>
    %225 = tpu.matmul %224, %2, %cst_94 {dimension_numbers = #tpu.dot_dimension_numbers<[1], [0], [0], [1], [0, 0, 1, 1], [], []>} : vector<64x64xbf16>, vector<64x256xbf16>, vector<64x256xf32> -> vector<64x256xf32>
    %c128_95 = arith.constant 128 : index
    %c0_96 = arith.constant 0 : index
    %226 = vector.load %arg4[%c128_95, %c0_96] : memref<192x64xbf16, #tpu.memory_space<vmem>>, vector<64x64xbf16>
    %cst_97 = arith.constant dense<0.000000e+00> : vector<64x256xf32>
    %227 = tpu.matmul %226, %220, %cst_97 {dimension_numbers = #tpu.dot_dimension_numbers<[1], [0], [0], [1], [0, 0, 1, 1], [], []>} : vector<64x64xbf16>, vector<64x256xbf16>, vector<64x256xf32> -> vector<64x256xf32>
    %228 = arith.addf %225, %227 : vector<64x256xf32>
    %c0_98 = arith.constant 0 : index
    %c6 = arith.constant 6 : index
    %229 = vector.load %arg5[%c0_98, %c6] : memref<64x8xf32, #tpu.memory_space<vmem>>, vector<64x1xf32>
    %c0_99 = arith.constant 0 : index
    %c7 = arith.constant 7 : index
    %230 = vector.load %arg5[%c0_99, %c7] : memref<64x8xf32, #tpu.memory_space<vmem>>, vector<64x1xf32>
    %cst_100 = arith.constant dense<0.000000e+00> : vector<256xf32>
    %231 = vector.multi_reduction <add>, %228, %cst_100 [0] : vector<64x256xf32> to vector<256xf32>
    %232 = vector.shape_cast %231 : vector<256xf32> to vector<1x256xf32>
    %cst_101 = arith.constant 6.400000e+01 : f32
    %233 = vector.broadcast %cst_101 : f32 to vector<1x256xf32>
    %234 = arith.divf %232, %233 : vector<1x256xf32>
    %235 = vector.broadcast %234 : vector<1x256xf32> to vector<64x256xf32>
    %236 = arith.subf %228, %235 : vector<64x256xf32>
    %237 = arith.mulf %236, %236 : vector<64x256xf32>
    %cst_102 = arith.constant dense<0.000000e+00> : vector<256xf32>
    %238 = vector.multi_reduction <add>, %237, %cst_102 [0] : vector<64x256xf32> to vector<256xf32>
    %239 = vector.shape_cast %238 : vector<256xf32> to vector<1x256xf32>
    %cst_103 = arith.constant 6.400000e+01 : f32
    %240 = vector.broadcast %cst_103 : f32 to vector<1x256xf32>
    %241 = arith.divf %239, %240 : vector<1x256xf32>
    %242 = vector.broadcast %234 : vector<1x256xf32> to vector<64x256xf32>
    %243 = arith.subf %228, %242 : vector<64x256xf32>
    %cst_104 = arith.constant 9.99999974E-6 : f32
    %244 = vector.broadcast %cst_104 : f32 to vector<1x256xf32>
    %245 = arith.addf %241, %244 : vector<1x256xf32>
    %246 = math.rsqrt %245 : vector<1x256xf32>
    %247 = vector.broadcast %246 : vector<1x256xf32> to vector<64x256xf32>
    %248 = arith.mulf %243, %247 : vector<64x256xf32>
    %249 = vector.broadcast %229 : vector<64x1xf32> to vector<64x256xf32>
    %250 = arith.mulf %248, %249 : vector<64x256xf32>
    %251 = vector.broadcast %230 : vector<64x1xf32> to vector<64x256xf32>
    %252 = arith.addf %250, %251 : vector<64x256xf32>
    %cst_105 = arith.constant 5.000000e-01 : f32
    %253 = vector.broadcast %cst_105 : f32 to vector<64x256xf32>
    %254 = arith.mulf %253, %252 : vector<64x256xf32>
    %cst_106 = arith.constant 0.707106769 : f32
    %255 = vector.broadcast %cst_106 : f32 to vector<64x256xf32>
    %256 = arith.mulf %252, %255 : vector<64x256xf32>
    %cst_107 = arith.constant 0.000000e+00 : f32
    %257 = vector.broadcast %cst_107 : f32 to vector<64x256xf32>
    %258 = arith.cmpf oge, %256, %257 : vector<64x256xf32>
    %cst_108 = arith.constant 1.000000e+00 : f32
    %cst_109 = arith.constant -1.000000e+00 : f32
    %259 = vector.broadcast %cst_108 : f32 to vector<64x256xf32>
    %260 = vector.broadcast %cst_109 : f32 to vector<64x256xf32>
    %261 = arith.select %258, %259, %260 : vector<64x256xi1>, vector<64x256xf32>
    %262 = math.absf %256 : vector<64x256xf32>
    %cst_110 = arith.constant 0.327591091 : f32
    %263 = vector.broadcast %cst_110 : f32 to vector<64x256xf32>
    %264 = arith.mulf %263, %262 : vector<64x256xf32>
    %cst_111 = arith.constant 1.000000e+00 : f32
    %265 = vector.broadcast %cst_111 : f32 to vector<64x256xf32>
    %266 = arith.addf %265, %264 : vector<64x256xf32>
    %cst_112 = arith.constant 1.000000e+00 : f32
    %267 = vector.broadcast %cst_112 : f32 to vector<64x256xf32>
    %268 = arith.divf %267, %266 : vector<64x256xf32>
    %cst_113 = arith.constant 1.06140542 : f32
    %269 = vector.broadcast %cst_113 : f32 to vector<64x256xf32>
    %270 = arith.mulf %269, %268 : vector<64x256xf32>
    %cst_114 = arith.constant -1.45315206 : f32
    %271 = vector.broadcast %cst_114 : f32 to vector<64x256xf32>
    %272 = arith.addf %270, %271 : vector<64x256xf32>
    %273 = arith.mulf %272, %268 : vector<64x256xf32>
    %cst_115 = arith.constant 1.42141378 : f32
    %274 = vector.broadcast %cst_115 : f32 to vector<64x256xf32>
    %275 = arith.addf %273, %274 : vector<64x256xf32>
    %276 = arith.mulf %275, %268 : vector<64x256xf32>
    %cst_116 = arith.constant -0.284496725 : f32
    %277 = vector.broadcast %cst_116 : f32 to vector<64x256xf32>
    %278 = arith.addf %276, %277 : vector<64x256xf32>
    %279 = arith.mulf %278, %268 : vector<64x256xf32>
    %cst_117 = arith.constant 0.254829586 : f32
    %280 = vector.broadcast %cst_117 : f32 to vector<64x256xf32>
    %281 = arith.addf %279, %280 : vector<64x256xf32>
    %282 = arith.mulf %281, %268 : vector<64x256xf32>
    %cst_118 = arith.constant 0.000000e+00 : f32
    %283 = vector.broadcast %cst_118 : f32 to vector<64x256xf32>
    %284 = arith.subf %283, %262 : vector<64x256xf32>
    %285 = arith.mulf %284, %262 : vector<64x256xf32>
    %286 = math.exp %285 : vector<64x256xf32>
    %287 = arith.mulf %282, %286 : vector<64x256xf32>
    %cst_119 = arith.constant 1.000000e+00 : f32
    %288 = vector.broadcast %cst_119 : f32 to vector<64x256xf32>
    %289 = arith.subf %288, %287 : vector<64x256xf32>
    %290 = arith.mulf %261, %289 : vector<64x256xf32>
    %cst_120 = arith.constant 1.000000e+00 : f32
    %291 = vector.broadcast %cst_120 : f32 to vector<64x256xf32>
    %292 = arith.addf %291, %290 : vector<64x256xf32>
    %293 = arith.mulf %254, %292 : vector<64x256xf32>
    %294 = arith.truncf %293 : vector<64x256xf32> to vector<64x256xbf16>
    %c144 = arith.constant 144 : index
    %c0_121 = arith.constant 0 : index
    %295 = vector.load %arg6[%c144, %c0_121] : memref<192x64xbf16, #tpu.memory_space<vmem>>, vector<48x64xbf16>
    %cst_122 = arith.constant dense<0.000000e+00> : vector<48x256xf32>
    %296 = tpu.matmul %295, %294, %cst_122 {dimension_numbers = #tpu.dot_dimension_numbers<[1], [0], [0], [1], [0, 0, 1, 1], [], []>} : vector<48x64xbf16>, vector<64x256xbf16>, vector<48x256xf32> -> vector<48x256xf32>
    %297 = arith.addf %223, %296 : vector<48x256xf32>
    %c0_123 = arith.constant 0 : index
    %c0_124 = arith.constant 0 : index
    %c0_125 = arith.constant 0 : index
    %298 = vector.load %arg2[%c0_123, %c0_124, %c0_125] : memref<1x3x256xf32, #tpu.memory_space<vmem>>, vector<1x3x256xf32>
    %299 = vector.shape_cast %298 : vector<1x3x256xf32> to vector<3x256xf32>
    %300 = vector.extract_strided_slice %297 {offsets = [40, 0], sizes = [8, 256], strides = [1, 1]} : vector<48x256xf32> to vector<8x256xf32>
    %301 = tpu.iota {dimensions = array<i32: 0>} : vector<8x256xi32>
    %302 = arith.sitofp %301 : vector<8x256xi32> to vector<8x256xf32>
    %cst_126 = arith.constant dense<0xFF800000> : vector<256xf32>
    %303 = vector.multi_reduction <maximumf>, %300, %cst_126 [0] : vector<8x256xf32> to vector<256xf32>
    %304 = vector.shape_cast %303 : vector<256xf32> to vector<1x256xf32>
    %305 = vector.broadcast %304 : vector<1x256xf32> to vector<8x256xf32>
    %306 = arith.cmpf oeq, %300, %305 : vector<8x256xf32>
    %cst_127 = arith.constant 8.000000e+00 : f32
    %307 = vector.broadcast %cst_127 : f32 to vector<8x256xf32>
    %308 = arith.select %306, %302, %307 : vector<8x256xi1>, vector<8x256xf32>
    %cst_128 = arith.constant dense<0x7F800000> : vector<256xf32>
    %309 = vector.multi_reduction <minimumf>, %308, %cst_128 [0] : vector<8x256xf32> to vector<256xf32>
    %310 = vector.shape_cast %309 : vector<256xf32> to vector<1x256xf32>
    %cst_129 = arith.constant 0.000000e+00 : f32
    %311 = vector.broadcast %cst_129 : f32 to vector<1x256xf32>
    %cst_130 = arith.constant 0.000000e+00 : f32
    %312 = vector.broadcast %cst_130 : f32 to vector<1x256xf32>
    %cst_131 = arith.constant 0.000000e+00 : f32
    %313 = vector.broadcast %cst_131 : f32 to vector<1x256xf32>
    %cst_132 = arith.constant 0.000000e+00 : f32
    %314 = vector.broadcast %cst_132 : f32 to vector<1x256xf32>
    %315 = arith.cmpf oeq, %310, %314 : vector<1x256xf32>
    %316 = arith.extui %315 : vector<1x256xi1> to vector<1x256xi32>
    %317 = arith.sitofp %316 : vector<1x256xi32> to vector<1x256xf32>
    %cst_133 = arith.constant 3.900000e+00 : f32
    %318 = vector.broadcast %cst_133 : f32 to vector<1x256xf32>
    %319 = arith.mulf %317, %318 : vector<1x256xf32>
    %320 = arith.addf %311, %319 : vector<1x256xf32>
    %cst_134 = arith.constant 1.600000e+00 : f32
    %321 = vector.broadcast %cst_134 : f32 to vector<1x256xf32>
    %322 = arith.mulf %317, %321 : vector<1x256xf32>
    %323 = arith.addf %312, %322 : vector<1x256xf32>
    %cst_135 = arith.constant 1.560000e+00 : f32
    %324 = vector.broadcast %cst_135 : f32 to vector<1x256xf32>
    %325 = arith.mulf %317, %324 : vector<1x256xf32>
    %326 = arith.addf %313, %325 : vector<1x256xf32>
    %cst_136 = arith.constant 1.000000e+00 : f32
    %327 = vector.broadcast %cst_136 : f32 to vector<1x256xf32>
    %328 = arith.cmpf oeq, %310, %327 : vector<1x256xf32>
    %329 = arith.extui %328 : vector<1x256xi1> to vector<1x256xi32>
    %330 = arith.sitofp %329 : vector<1x256xi32> to vector<1x256xf32>
    %cst_137 = arith.constant 8.000000e-01 : f32
    %331 = vector.broadcast %cst_137 : f32 to vector<1x256xf32>
    %332 = arith.mulf %330, %331 : vector<1x256xf32>
    %333 = arith.addf %320, %332 : vector<1x256xf32>
    %cst_138 = arith.constant 6.000000e-01 : f32
    %334 = vector.broadcast %cst_138 : f32 to vector<1x256xf32>
    %335 = arith.mulf %330, %334 : vector<1x256xf32>
    %336 = arith.addf %323, %335 : vector<1x256xf32>
    %cst_139 = arith.constant 1.730000e+00 : f32
    %337 = vector.broadcast %cst_139 : f32 to vector<1x256xf32>
    %338 = arith.mulf %330, %337 : vector<1x256xf32>
    %339 = arith.addf %326, %338 : vector<1x256xf32>
    %cst_140 = arith.constant 2.000000e+00 : f32
    %340 = vector.broadcast %cst_140 : f32 to vector<1x256xf32>
    %341 = arith.cmpf oeq, %310, %340 : vector<1x256xf32>
    %342 = arith.extui %341 : vector<1x256xi1> to vector<1x256xi32>
    %343 = arith.sitofp %342 : vector<1x256xi32> to vector<1x256xf32>
    %cst_141 = arith.constant 1.760000e+00 : f32
    %344 = vector.broadcast %cst_141 : f32 to vector<1x256xf32>
    %345 = arith.mulf %343, %344 : vector<1x256xf32>
    %346 = arith.addf %333, %345 : vector<1x256xf32>
    %cst_142 = arith.constant 6.000000e-01 : f32
    %347 = vector.broadcast %cst_142 : f32 to vector<1x256xf32>
    %348 = arith.mulf %343, %347 : vector<1x256xf32>
    %349 = arith.addf %336, %348 : vector<1x256xf32>
    %cst_143 = arith.constant 1.730000e+00 : f32
    %350 = vector.broadcast %cst_143 : f32 to vector<1x256xf32>
    %351 = arith.mulf %343, %350 : vector<1x256xf32>
    %352 = arith.addf %339, %351 : vector<1x256xf32>
    %353 = tpu.concatenate %346, %349, %352 in 0 : vector<1x256xf32>, vector<1x256xf32>, vector<1x256xf32> -> vector<3x256xf32>
    %354 = arith.mulf %346, %346 : vector<1x256xf32>
    %355 = arith.mulf %349, %349 : vector<1x256xf32>
    %356 = arith.addf %354, %355 : vector<1x256xf32>
    %357 = math.sqrt %356 : vector<1x256xf32>
    %358 = tpu.concatenate %357, %357, %352 in 0 : vector<1x256xf32>, vector<1x256xf32>, vector<1x256xf32> -> vector<3x256xf32>
    %359 = vector.extract_strided_slice %297 {offsets = [0, 0], sizes = [3, 256], strides = [1, 1]} : vector<48x256xf32> to vector<3x256xf32>
    %360 = arith.mulf %359, %358 : vector<3x256xf32>
    %361 = arith.addf %360, %299 : vector<3x256xf32>
    %362 = vector.extract_strided_slice %297 {offsets = [3, 0], sizes = [3, 256], strides = [1, 1]} : vector<48x256xf32> to vector<3x256xf32>
    %363 = math.exp %362 : vector<3x256xf32>
    %364 = arith.mulf %363, %353 : vector<3x256xf32>
    %365 = vector.extract_strided_slice %297 {offsets = [8, 0], sizes = [16, 256], strides = [1, 1]} : vector<48x256xf32> to vector<16x256xf32>
    %366 = tpu.iota {dimensions = array<i32: 0>} : vector<16x256xi32>
    %367 = arith.sitofp %366 : vector<16x256xi32> to vector<16x256xf32>
    %cst_144 = arith.constant dense<0xFF800000> : vector<256xf32>
    %368 = vector.multi_reduction <maximumf>, %365, %cst_144 [0] : vector<16x256xf32> to vector<256xf32>
    %369 = vector.shape_cast %368 : vector<256xf32> to vector<1x256xf32>
    %370 = vector.broadcast %369 : vector<1x256xf32> to vector<16x256xf32>
    %371 = arith.cmpf oeq, %365, %370 : vector<16x256xf32>
    %cst_145 = arith.constant 1.600000e+01 : f32
    %372 = vector.broadcast %cst_145 : f32 to vector<16x256xf32>
    %373 = arith.select %371, %367, %372 : vector<16x256xi1>, vector<16x256xf32>
    %cst_146 = arith.constant dense<0x7F800000> : vector<256xf32>
    %374 = vector.multi_reduction <minimumf>, %373, %cst_146 [0] : vector<16x256xf32> to vector<256xf32>
    %375 = vector.shape_cast %374 : vector<256xf32> to vector<1x256xf32>
    %376 = vector.broadcast %375 : vector<1x256xf32> to vector<16x256xf32>
    %377 = arith.cmpf oeq, %367, %376 : vector<16x256xf32>
    %378 = arith.extui %377 : vector<16x256xi1> to vector<16x256xi32>
    %379 = arith.sitofp %378 : vector<16x256xi32> to vector<16x256xf32>
    %380 = vector.extract_strided_slice %297 {offsets = [24, 0], sizes = [16, 256], strides = [1, 1]} : vector<48x256xf32> to vector<16x256xf32>
    %381 = arith.mulf %379, %380 : vector<16x256xf32>
    %cst_147 = arith.constant dense<0.000000e+00> : vector<256xf32>
    %382 = vector.multi_reduction <add>, %381, %cst_147 [0] : vector<16x256xf32> to vector<256xf32>
    %383 = vector.shape_cast %382 : vector<256xf32> to vector<1x256xf32>
    %cst_148 = arith.constant 0.52359879 : f32
    %384 = vector.broadcast %cst_148 : f32 to vector<1x256xf32>
    %385 = arith.mulf %375, %384 : vector<1x256xf32>
    %cst_149 = arith.constant 3.14159274 : f32
    %386 = vector.broadcast %cst_149 : f32 to vector<1x256xf32>
    %387 = arith.subf %385, %386 : vector<1x256xf32>
    %cst_150 = arith.constant 0.261799395 : f32
    %388 = vector.broadcast %cst_150 : f32 to vector<1x256xf32>
    %389 = arith.addf %387, %388 : vector<1x256xf32>
    %390 = arith.addf %389, %383 : vector<1x256xf32>
    %391 = vector.extract_strided_slice %297 {offsets = [0, 0], sizes = [6, 256], strides = [1, 1]} : vector<48x256xf32> to vector<6x256xf32>
    %392 = vector.extract_strided_slice %365 {offsets = [0, 0], sizes = [12, 256], strides = [1, 1]} : vector<16x256xf32> to vector<12x256xf32>
    %393 = vector.extract_strided_slice %380 {offsets = [0, 0], sizes = [12, 256], strides = [1, 1]} : vector<16x256xf32> to vector<12x256xf32>
    %394 = vector.extract_strided_slice %300 {offsets = [0, 0], sizes = [3, 256], strides = [1, 1]} : vector<8x256xf32> to vector<3x256xf32>
    %395 = tpu.concatenate %391, %392, %393, %394, %361, %364, %390 in 0 : vector<6x256xf32>, vector<12x256xf32>, vector<12x256xf32>, vector<3x256xf32>, vector<3x256xf32>, vector<3x256xf32>, vector<1x256xf32> -> vector<40x256xf32>
    %c0_151 = arith.constant 0 : index
    %c0_152 = arith.constant 0 : index
    %c0_153 = arith.constant 0 : index
    %396 = vector.load %arg8[%c0_151, %c0_152, %c0_153] : memref<1x40x256xf32, #tpu.memory_space<vmem>>, vector<1x40x256xf32>
    %397 = vector.shape_cast %396 : vector<1x40x256xf32> to vector<40x256xf32>
    %398 = vector.shape_cast %395 : vector<40x256xf32> to vector<1x40x256xf32>
    tpu.vector_store %arg8[%c0_151, %c0_152, %c0_153], %398 {strides = array<i32>} : memref<1x40x256xf32, #tpu.memory_space<vmem>>, vector<1x40x256xf32>,
    return
  }
  func.func @transform_0(%arg0: i32) -> (i32, i32, i32) {
    %c0_i32 = arith.constant 0 : i32
    %c0_i32_0 = arith.constant 0 : i32
    %c0_i32_1 = arith.constant 0 : i32
    return %arg0, %c0_i32, %c0_i32_0 : i32, i32, i32
  }
  func.func @transform_1(%arg0: i32) -> (i32, i32, i32) {
    %c0_i32 = arith.constant 0 : i32
    %c0_i32_0 = arith.constant 0 : i32
    %c0_i32_1 = arith.constant 0 : i32
    return %arg0, %c0_i32, %c0_i32_0 : i32, i32, i32
  }
  func.func @transform_2(%arg0: i32) -> (i32, i32) {
    %c0_i32 = arith.constant 0 : i32
    %c0_i32_0 = arith.constant 0 : i32
    %c0_i32_1 = arith.constant 0 : i32
    return %c0_i32, %c0_i32_0 : i32, i32
  }
  func.func @transform_3(%arg0: i32) -> (i32, i32) {
    %c0_i32 = arith.constant 0 : i32
    %c0_i32_0 = arith.constant 0 : i32
    %c0_i32_1 = arith.constant 0 : i32
    return %c0_i32, %c0_i32_0 : i32, i32
  }
  func.func @transform_4(%arg0: i32) -> (i32, i32) {
    %c0_i32 = arith.constant 0 : i32
    %c0_i32_0 = arith.constant 0 : i32
    %c0_i32_1 = arith.constant 0 : i32
    return %c0_i32, %c0_i32_0 : i32, i32
  }
  func.func @transform_5(%arg0: i32) -> (i32, i32) {
    %c0_i32 = arith.constant 0 : i32
    %c0_i32_0 = arith.constant 0 : i32
    %c0_i32_1 = arith.constant 0 : i32
    return %c0_i32, %c0_i32_0 : i32, i32
  }
  func.func @transform_6(%arg0: i32) -> (i32, i32) {
    %c0_i32 = arith.constant 0 : i32
    %c0_i32_0 = arith.constant 0 : i32
    %c0_i32_1 = arith.constant 0 : i32
    return %c0_i32, %c0_i32_0 : i32, i32
  }
  func.func @transform_7(%arg0: i32) -> (i32, i32, i32) {
    %c0_i32 = arith.constant 0 : i32
    %c0_i32_0 = arith.constant 0 : i32
    %c0_i32_1 = arith.constant 0 : i32
    return %arg0, %c0_i32, %c0_i32_0 : i32, i32, i32
  }
}

</mosaic_0001>

<llo_original>
// kernel: forward.1
$region0: #{forward.1}
  #allocation0 [shape = 'u32[]', space=smem, size = 0x4, offset = 0x4, fixed_abs, tag = 'smem constant byte address 0x4 - core index']
  #allocation1 [shape = 'u32[144,128]{1,0:T(1,128)}', space=vmem, size = 0x12000, scoped, tag = 'internal scratch']
  %s0 = inlined_call_operand.hbm [shape: f32[2,64,256], index: 0, kind: input, shape index: {}]
  %s1 = inlined_call_operand.vmem [shape: f32[2,3,256], index: 1, kind: input, shape index: {}]
  %s2 = inlined_call_operand.hbm [shape: bf16[256,64], index: 2, kind: input, shape index: {}]
  %s3 = inlined_call_operand.hbm [shape: bf16[192,64], index: 3, kind: input, shape index: {}]
  %s4 = inlined_call_operand.hbm [shape: f32[64,8], index: 4, kind: input, shape index: {}]
  %s5 = inlined_call_operand.hbm [shape: bf16[192,64], index: 5, kind: input, shape index: {}]
  %s6 = inlined_call_operand.vmem [shape: f32[48,1], index: 6, kind: input, shape index: {}]
  %s7 = inlined_call_operand.vmem [shape: f32[2,40,256], index: 7, kind: output, shape index: {}]
  %s8 = sld [smem:[#allocation0]]
  $region81: #{forward.1} parent=0
    _
  %s10 = ssub.s32 1, %s8
  %s11 = scalar_select 0, %s10, %s8
  $region1: #{forward.1} parent=0
    #allocation2 [shape = 'u8[131072]{0}', space=vmem, size = 0x20000, scoped, tag = 'input window, operand 0']
    #allocation3 [shape = 's32[2]{0}', space=sflag, size = 0x8, scoped, tag = 'scoped memory for forward.1']
    #allocation4 [shape = 'u8[65536]{0}', space=vmem, size = 0x10000, scoped, tag = 'input window, operand 2, single buffered']
    #allocation5 [shape = 's32[1]{0}', space=sflag, size = 0x4, scoped, tag = 'scoped memory for forward.1']
    #allocation6 [shape = 'u8[49152]{0}', space=vmem, size = 0xc000, scoped, tag = 'input window, operand 3, single buffered']
    #allocation7 [shape = 'u8[32768]{0}', space=vmem, size = 0x8000, scoped, tag = 'input window, operand 4, single buffered']
    #allocation8 [shape = 's32[1]{0}', space=sflag, size = 0x4, scoped, tag = 'scoped memory for forward.1']
    #allocation9 [shape = 'u8[49152]{0}', space=vmem, size = 0xc000, scoped, tag = 'input window, operand 5, single buffered']
    %12 = vsyncpa [#allocation3], 0
    %s13 = scalar_lea.sflag [#allocation3], 1
    %14 = vsyncpa %s13, 0
    %15 = vsyncpa [#allocation5], 0
    %16 = vsyncpa [#allocation8], 0
    loop: start=0, step=1, limit=4
    $region2: #{forward.1} parent=1 // loop_pre_header
      _
    $region3: #{forward.1} parent=1 // loop_header
      %s18 = sphi 0, %s22
      %p19 = scmp.ge.s32.totalorder %s18, 4
      %s28 = sphi 0, %s30
      %s31 = sphi 0, %s28
      %s32 = sphi 0, %s31
      %s48 = sphi 0, %s32
      %s54 = sphi 0, %s56
      %s57 = sphi 0, %s54
      %s58 = sphi 0, %s57
      %s74 = sphi 0, %s58
      %s78 = sphi 0, %s78
      %s80 = sphi 0, %s78
      %s81 = sphi 0, %s80
      %s95 = sphi 0, %s81
      %s99 = sphi 0, %s99
      %s101 = sphi 0, %s99
      %s102 = sphi 0, %s101
      %s116 = sphi 0, %s102
      %s120 = sphi 0, %s120
      %s122 = sphi 0, %s120
      %s123 = sphi 0, %s122
      %s137 = sphi 0, %s123
      %s141 = sphi 0, %s141
      %s143 = sphi 0, %s141
      %s144 = sphi 0, %s143
      %s158 = sphi 0, %s144
      %s162 = sphi 0, %s162
      %s164 = sphi 0, %s162
      %s165 = sphi 0, %s164
      %s179 = sphi 0, %s165
      %s185 = sphi 0, %s187
      %s188 = sphi 0, %s185
      %s189 = sphi 0, %s188
      %s205 = sphi 0, %s189
    $region4: #{forward.1} parent=1 // loop_header_branch
      %21 = sbr.rel (%p19) target = $region8
    $region5: #{forward.1} parent=1 // loop_body
      %s23 = ssub.s32 %s18, 1
      %s24 = ssub.s32 %s18, 2
      %s25 = sadd.s32 %s18, 1
      %s26 = ssub.s32 %s18, %s25
      %p27 = scmp.eq.s32.totalorder %s26, 0
      %s29 = sadd.s32 %s28, 1
      %s30 = scalar_select %p27, %s28, %s29
      %p33 = pneg %p27
      %p34 = scmp.eq.s32.totalorder %s18, 1
      %p35 = por %p33, %p34
      %p36 = scmp.ne.s32.totalorder %s28, %s31
      %p37 = scmp.eq.s32.totalorder %s18, 0
      %p38 = por %p36, %p37
      %p39 = scmp.ne.s32.totalorder %s28, %s31
      %p40 = scmp.eq.s32.totalorder %s23, 1
      %p41 = por %p39, %p40
      %p42 = scmp.ne.s32.totalorder %s31, %s32
      %p43 = scmp.eq.s32.totalorder %s23, 0
      %p44 = por %p42, %p43
      %p45 = scmp.ne.s32.totalorder %s31, %s32
      %p46 = scmp.eq.s32.totalorder %s24, 1
      %p47 = por %p45, %p46
      %p49 = scmp.ne.s32.totalorder %s32, %s48
      %p50 = scmp.eq.s32.totalorder %s24, 0
      %p51 = por %p49, %p50
      %s52 = ssub.s32 %s18, %s25
      %p53 = scmp.eq.s32.totalorder %s52, 0
      %s55 = sadd.s32 %s54, 1
      %s56 = scalar_select %p53, %s54, %s55
      %p59 = pneg %p53
      %p60 = scmp.eq.s32.totalorder %s18, 1
      %p61 = por %p59, %p60
      %p62 = scmp.ne.s32.totalorder %s54, %s57
      %p63 = scmp.eq.s32.totalorder %s18, 0
      %p64 = por %p62, %p63
      %p65 = scmp.ne.s32.totalorder %s54, %s57
      %p66 = scmp.eq.s32.totalorder %s23, 1
      %p67 = por %p65, %p66
      %p68 = scmp.ne.s32.totalorder %s57, %s58
      %p69 = scmp.eq.s32.totalorder %s23, 0
      %p70 = por %p68, %p69
      %p71 = scmp.ne.s32.totalorder %s57, %s58
      %p72 = scmp.eq.s32.totalorder %s24, 1
      %p73 = por %p71, %p72
      %p75 = scmp.ne.s32.totalorder %s58, %s74
      %p76 = scmp.eq.s32.totalorder %s24, 0
      %p77 = por %p75, %p76
      %s79 = sadd.s32 %s78, 1
      %p82 = scmp.eq.s32.totalorder %s18, 1
      %p83 = scmp.ne.s32.totalorder %s78, %s80
      %p84 = scmp.eq.s32.totalorder %s18, 0
      %p85 = por %p83, %p84
      %p86 = scmp.ne.s32.totalorder %s78, %s80
      %p87 = scmp.eq.s32.totalorder %s23, 1
      %p88 = por %p86, %p87
      %p89 = scmp.ne.s32.totalorder %s80, %s81
      %p90 = scmp.eq.s32.totalorder %s23, 0
      %p91 = por %p89, %p90
      %p92 = scmp.ne.s32.totalorder %s80, %s81
      %p93 = scmp.eq.s32.totalorder %s24, 1
      %p94 = por %p92, %p93
      %p96 = scmp.ne.s32.totalorder %s81, %s95
      %p97 = scmp.eq.s32.totalorder %s24, 0
      %p98 = por %p96, %p97
      %s100 = sadd.s32 %s99, 1
      %p103 = scmp.eq.s32.totalorder %s18, 1
      %p104 = scmp.ne.s32.totalorder %s99, %s101
      %p105 = scmp.eq.s32.totalorder %s18, 0
      %p106 = por %p104, %p105
      %p107 = scmp.ne.s32.totalorder %s99, %s101
      %p108 = scmp.eq.s32.totalorder %s23, 1
      %p109 = por %p107, %p108
      %p110 = scmp.ne.s32.totalorder %s101, %s102
      %p111 = scmp.eq.s32.totalorder %s23, 0
      %p112 = por %p110, %p111
      %p113 = scmp.ne.s32.totalorder %s101, %s102
      %p114 = scmp.eq.s32.totalorder %s24, 1
      %p115 = por %p113, %p114
      %p117 = scmp.ne.s32.totalorder %s102, %s116
      %p118 = scmp.eq.s32.totalorder %s24, 0
      %p119 = por %p117, %p118
      %s121 = sadd.s32 %s120, 1
      %p124 = scmp.eq.s32.totalorder %s18, 1
      %p125 = scmp.ne.s32.totalorder %s120, %s122
      %p126 = scmp.eq.s32.totalorder %s18, 0
      %p127 = por %p125, %p126
      %p128 = scmp.ne.s32.totalorder %s120, %s122
      %p129 = scmp.eq.s32.totalorder %s23, 1
      %p130 = por %p128, %p129
      %p131 = scmp.ne.s32.totalorder %s122, %s123
      %p132 = scmp.eq.s32.totalorder %s23, 0
      %p133 = por %p131, %p132
      %p134 = scmp.ne.s32.totalorder %s122, %s123
      %p135 = scmp.eq.s32.totalorder %s24, 1
      %p136 = por %p134, %p135
      %p138 = scmp.ne.s32.totalorder %s123, %s137
      %p139 = scmp.eq.s32.totalorder %s24, 0
      %p140 = por %p138, %p139
      %s142 = sadd.s32 %s141, 1
      %p145 = scmp.eq.s32.totalorder %s18, 1
      %p146 = scmp.ne.s32.totalorder %s141, %s143
      %p147 = scmp.eq.s32.totalorder %s18, 0
      %p148 = por %p146, %p147
      %p149 = scmp.ne.s32.totalorder %s141, %s143
      %p150 = scmp.eq.s32.totalorder %s23, 1
      %p151 = por %p149, %p150
      %p152 = scmp.ne.s32.totalorder %s143, %s144
      %p153 = scmp.eq.s32.totalorder %s23, 0
      %p154 = por %p152, %p153
      %p155 = scmp.ne.s32.totalorder %s143, %s144
      %p156 = scmp.eq.s32.totalorder %s24, 1
      %p157 = por %p155, %p156
      %p159 = scmp.ne.s32.totalorder %s144, %s158
      %p160 = scmp.eq.s32.totalorder %s24, 0
      %p161 = por %p159, %p160
      %s163 = sadd.s32 %s162, 1
      %p166 = scmp.eq.s32.totalorder %s18, 1
      %p167 = scmp.ne.s32.totalorder %s162, %s164
      %p168 = scmp.eq.s32.totalorder %s18, 0
      %p169 = por %p167, %p168
      %p170 = scmp.ne.s32.totalorder %s162, %s164
      %p171 = scmp.eq.s32.totalorder %s23, 1
      %p172 = por %p170, %p171
      %p173 = scmp.ne.s32.totalorder %s164, %s165
      %p174 = scmp.eq.s32.totalorder %s23, 0
      %p175 = por %p173, %p174
      %p176 = scmp.ne.s32.totalorder %s164, %s165
      %p177 = scmp.eq.s32.totalorder %s24, 1
      %p178 = por %p176, %p177
      %p180 = scmp.ne.s32.totalorder %s165, %s179
      %p181 = scmp.eq.s32.totalorder %s24, 0
      %p182 = por %p180, %p181
      %s183 = ssub.s32 %s18, %s25
      %p184 = scmp.eq.s32.totalorder %s183, 0
      %s186 = sadd.s32 %s185, 1
      %s187 = scalar_select %p184, %s185, %s186
      %p190 = pneg %p184
      %p191 = scmp.eq.s32.totalorder %s18, 1
      %p192 = por %p190, %p191
      %p193 = scmp.ne.s32.totalorder %s185, %s188
      %p194 = scmp.eq.s32.totalorder %s18, 0
      %p195 = por %p193, %p194
      %p196 = scmp.ne.s32.totalorder %s185, %s188
      %p197 = scmp.eq.s32.totalorder %s23, 1
      %p198 = por %p196, %p197
      %p199 = scmp.ne.s32.totalorder %s188, %s189
      %p200 = scmp.eq.s32.totalorder %s23, 0
      %p201 = por %p199, %p200
      %p202 = scmp.ne.s32.totalorder %s188, %s189
      %p203 = scmp.eq.s32.totalorder %s24, 1
      %p204 = por %p202, %p203
      %p206 = scmp.ne.s32.totalorder %s189, %s205
      %p207 = scmp.eq.s32.totalorder %s24, 0
      %p208 = por %p206, %p207
      %p209 = scmp.le.s32.totalorder 1, %s18
      %p210 = scmp.lt.s32.totalorder %s18, 3
      %p211 = pnand %p209, %p210
      %p212 = pneg %p211
      // Predicated region
      $region9: #{forward.1} parent=5 // pred_check
        _
      $region10: #{forward.1} parent=5 // pred_check_branch
        %214 = sbr.rel (%p211) target = $region12
      $region11: #{forward.1} parent=5 // pred_region
        %s215 = ssub.s32 %s18, 1
        // Predicated region
        $region13: #{forward.1} parent=11 // pred_check
          %p216 = pneg %p91
        $region14: #{forward.1} parent=11 // pred_check_branch
          %218 = sbr.rel (%p216) target = $region16
        $region15: #{forward.1} parent=11 // pred_region
          %s220 = ssub.s32 2048, 2048
          %221 = vsyncadd [#allocation5], %s220
          %s222 = sshll.u32 [#allocation4], 4
          %s223 = int_to_ptr.vmem [resolvable:$true] %s222
          %228 = dma.hbm_to_vmem [thread:$0]  %s2, 2048, %s223, [#allocation5], 64, 64, 4
        $region16: #{forward.1} parent=11 // pred_fallthru
          _
        // Predicated region
        $region17: #{forward.1} parent=11 // pred_check
          %p229 = pneg %p112
        $region18: #{forward.1} parent=11 // pred_check_branch
          %231 = sbr.rel (%p229) target = $region20
        $region19: #{forward.1} parent=11 // pred_region
          %s233 = ssub.s32 1536, 1536
          %234 = vsyncadd [#allocation5], %s233
          %s235 = sshll.u32 [#allocation6], 4
          %s236 = int_to_ptr.vmem [resolvable:$true] %s235
          %241 = dma.hbm_to_vmem [thread:$0]  %s3, 1536, %s236, [#allocation5], 64, 64, 4
        $region20: #{forward.1} parent=11 // pred_fallthru
          _
        // Predicated region
        $region21: #{forward.1} parent=11 // pred_check
          %p242 = pneg %p133
        $region22: #{forward.1} parent=11 // pred_check_branch
          %244 = sbr.rel (%p242) target = $region24
        $region23: #{forward.1} parent=11 // pred_region
          %s246 = ssub.s32 1024, 1024
          %247 = vsyncadd [#allocation8], %s246
          %s248 = sshll.u32 [#allocation7], 4
          %s249 = int_to_ptr.vmem [resolvable:$true] %s248
          %254 = dma.hbm_to_vmem [thread:$0]  %s4, 1024, %s249, [#allocation8], 128, 128, 8
        $region24: #{forward.1} parent=11 // pred_fallthru
          _
        // Predicated region
        $region25: #{forward.1} parent=11 // pred_check
          %p255 = pneg %p154
        $region26: #{forward.1} parent=11 // pred_check_branch
          %257 = sbr.rel (%p255) target = $region28
        $region27: #{forward.1} parent=11 // pred_region
          %s259 = ssub.s32 1536, 1536
          %260 = vsyncadd [#allocation8], %s259
          %s261 = sshll.u32 [#allocation9], 4
          %s262 = int_to_ptr.vmem [resolvable:$true] %s261
          %267 = dma.hbm_to_vmem [thread:$0]  %s5, 1536, %s262, [#allocation8], 64, 64, 4
        $region28: #{forward.1} parent=11 // pred_fallthru
          _
        // Predicated region
        $region29: #{forward.1} parent=11 // pred_check
          %p268 = pneg %p175
        $region30: #{forward.1} parent=11 // pred_check_branch
          %270 = sbr.rel (%p268) target = $region32
        $region31: #{forward.1} parent=11 // pred_region
          _
        $region32: #{forward.1} parent=11 // pred_fallthru
          _
      $region12: #{forward.1} parent=5 // pred_fallthru
        _
      %p271 = scmp.lt.s32.totalorder %s18, 2
      // Predicated region
      $region33: #{forward.1} parent=5 // pred_check
        %p272 = pneg %p271
      $region34: #{forward.1} parent=5 // pred_check_branch
        %274 = sbr.rel (%p272) target = $region36
      $region35: #{forward.1} parent=5 // pred_region
        // Predicated region
        $region37: #{forward.1} parent=35 // pred_check
          %p275 = pneg %p38
        $region38: #{forward.1} parent=35 // pred_check_branch
          %277 = sbr.rel (%p275) target = $region40
        $region39: #{forward.1} parent=35 // pred_region
          %s278 = sand.u32 %s28, 1
          %s279 = scalar_lea.sflag [#allocation3], %s278
          %s280 = sand.u32 %s28, 1
          %s281 = smul.addr %s280, 128
          %s282 = scalar_lea.vmem [#allocation2], %s281
          %s284 = ssub.s32 2048, 2048
          %285 = vsyncadd %s279, %s284
          %s286 = smul.addr %s18, 16
          %s287 = smul.addr %s286, 128
          %s288 = scalar_lea.hbm %s0, %s287
          %s289 = sshll.u32 %s282, 4
          %s290 = int_to_ptr.vmem [resolvable:$true] %s289
          %295 = dma.hbm_to_vmem [thread:$0]  %s288, 2048, %s290, %s279, 256, 256, 16
        $region40: #{forward.1} parent=35 // pred_fallthru
          _
        // Predicated region
        $region41: #{forward.1} parent=35 // pred_check
          %p296 = pneg %p64
        $region42: #{forward.1} parent=35 // pred_check_branch
          %298 = sbr.rel (%p296) target = $region44
        $region43: #{forward.1} parent=35 // pred_region
          %p299 = scmp.lt.s32.totalorder %s18, 1
          %s300 = scalar_select %p299, %s18, 1
          %s301 = smul.addr %s300, 2
          %s302 = smul.addr %s301, 4
          %s303 = scalar_lea.vmem %s1, %s302
        $region44: #{forward.1} parent=35 // pred_fallthru
          _
      $region36: #{forward.1} parent=5 // pred_fallthru
        _
      %p304 = scmp.le.s32.totalorder 1, %s18
      %p305 = scmp.lt.s32.totalorder %s18, 3
      %p306 = pnand %p304, %p305
      %p307 = pneg %p306
      // Predicated region
      $region45: #{forward.1} parent=5 // pred_check
        _
      $region46: #{forward.1} parent=5 // pred_check_branch
        %309 = sbr.rel (%p306) target = $region48
      $region47: #{forward.1} parent=5 // pred_region
        %s310 = ssub.s32 %s18, 1
        %s311 = sand.u32 %s31, 1
        %s312 = scalar_lea.sflag [#allocation3], %s311
        %s313 = sand.u32 %s31, 1
        %s314 = smul.addr %s313, 128
        %s315 = scalar_lea.vmem [#allocation2], %s314
        // Predicated region
        $region49: #{forward.1} parent=47 // pred_check
          %p316 = pneg %p44
        $region50: #{forward.1} parent=47 // pred_check_branch
          %318 = sbr.rel (%p316) target = $region52
        $region51: #{forward.1} parent=47 // pred_region
          %319 = dma.done %s312, 2048
        $region52: #{forward.1} parent=47 // pred_fallthru
          _
        // Predicated region
        $region53: #{forward.1} parent=47 // pred_check
          %p320 = pneg %p91
        $region54: #{forward.1} parent=47 // pred_check_branch
          %322 = sbr.rel (%p320) target = $region56
        $region55: #{forward.1} parent=47 // pred_region
          %323 = dma.done [#allocation5], 2048
        $region56: #{forward.1} parent=47 // pred_fallthru
          _
        // Predicated region
        $region57: #{forward.1} parent=47 // pred_check
          %p324 = pneg %p112
        $region58: #{forward.1} parent=47 // pred_check_branch
          %326 = sbr.rel (%p324) target = $region60
        $region59: #{forward.1} parent=47 // pred_region
          %327 = dma.done [#allocation5], 1536
        $region60: #{forward.1} parent=47 // pred_fallthru
          _
        // Predicated region
        $region61: #{forward.1} parent=47 // pred_check
          %p328 = pneg %p133
        $region62: #{forward.1} parent=47 // pred_check_branch
          %330 = sbr.rel (%p328) target = $region64
        $region63: #{forward.1} parent=47 // pred_region
          %331 = dma.done [#allocation8], 1024
        $region64: #{forward.1} parent=47 // pred_fallthru
          _
        // Predicated region
        $region65: #{forward.1} parent=47 // pred_check
          %p332 = pneg %p154
        $region66: #{forward.1} parent=47 // pred_check_branch
          %334 = sbr.rel (%p332) target = $region68
        $region67: #{forward.1} parent=47 // pred_region
          %335 = dma.done [#allocation8], 1536
        $region68: #{forward.1} parent=47 // pred_fallthru
          _
        %s336 = sand.u32 %s31, 1
        %s337 = scalar_lea.sflag [#allocation3], %s336
        %s338 = sand.u32 %s31, 1
        %s339 = smul.addr %s338, 128
        %s340 = scalar_lea.vmem [#allocation2], %s339
        %p341 = pneg %p44
        %p342 = pneg %p41
        %p343 = scmp.lt.s32.totalorder %s23, 1
        %s344 = scalar_select %p343, %s23, 1
        %s345 = smul.addr %s344, 2
        %s346 = smul.addr %s345, 4
        %s347 = scalar_lea.vmem %s1, %s346
        %p348 = pneg %p70
        %p349 = pneg %p67
        %p350 = pneg %p91
        %p351 = pneg %p88
        %p352 = pneg %p112
        %p353 = pneg %p109
        %p354 = pneg %p133
        %p355 = pneg %p130
        %p356 = pneg %p154
        %p357 = pneg %p151
        %p358 = pneg %p175
        %p359 = pneg %p172
        %p360 = pneg %p201
        %p361 = pneg %p198
        %p362 = scmp.lt.s32.totalorder %s23, 1
        %s363 = scalar_select %p362, %s23, 1
        %s364 = smul.addr %s363, 10
        %s365 = smul.addr %s364, 8
        %s366 = scalar_lea.vmem %s7, %s365
        %p367 = scmp.lt.s32.totalorder %s23, 1
        %s368 = scalar_select %p367, %s23, 1
        %s369 = smul.addr %s368, 2
        %s370 = smul.addr %s369, 4
        %s371 = scalar_lea.vmem %s1, %s370
        %p372 = scmp.lt.s32.totalorder %s23, 1
        %s373 = scalar_select %p372, %s23, 1
        %s374 = smul.addr %s373, 10
        %s375 = smul.addr %s374, 8
        %s376 = scalar_lea.vmem %s7, %s375
        %v378 = vld [vmem:[%s315] sm:$0xff]
        %v379 = vld [vmem:[%s315 + $0x8] sm:$0xff]
        %v380 = vld [vmem:[%s315 + $0x10] sm:$0xff]
        %v381 = vld [vmem:[%s315 + $0x18] sm:$0xff]
        %v382 = vld [vmem:[%s315 + $0x20] sm:$0xff]
        %v383 = vld [vmem:[%s315 + $0x28] sm:$0xff]
        %v384 = vld [vmem:[%s315 + $0x30] sm:$0xff]
        %v385 = vld [vmem:[%s315 + $0x38] sm:$0xff]
        %v386 = vld [vmem:[%s315 + $0x40] sm:$0xff]
        %v387 = vld [vmem:[%s315 + $0x48] sm:$0xff]
        %v388 = vld [vmem:[%s315 + $0x50] sm:$0xff]
        %v389 = vld [vmem:[%s315 + $0x58] sm:$0xff]
        %v390 = vld [vmem:[%s315 + $0x60] sm:$0xff]
        %v391 = vld [vmem:[%s315 + $0x68] sm:$0xff]
        %v392 = vld [vmem:[%s315 + $0x70] sm:$0xff]
        %v393 = vld [vmem:[%s315 + $0x78] sm:$0xff]
        %v394 = vpack.c.bf16 %v380, %v378
        %v395 = vpack.c.bf16 %v381, %v379
        %v396 = vpack.c.bf16 %v384, %v382
        %v397 = vpack.c.bf16 %v385, %v383
        %v398 = vpack.c.bf16 %v388, %v386
        %v399 = vpack.c.bf16 %v389, %v387
        %v400 = vpack.c.bf16 %v392, %v390
        %v401 = vpack.c.bf16 %v393, %v391
        %v402 = vld [vmem:[#allocation4] sm:$0xf]
        %v403 = vld [vmem:[#allocation4 + $0x4] sm:$0xf]
        %v404 = vld [vmem:[#allocation4 + $0x8] sm:$0xf]
        %v405 = vld [vmem:[#allocation4 + $0xc] sm:$0xf]
        %v406 = vld [vmem:[#allocation4 + $0x10] sm:$0xf]
        %v407 = vld [vmem:[#allocation4 + $0x14] sm:$0xf]
        %v408 = vld [vmem:[#allocation4 + $0x18] sm:$0xf]
        %v409 = vld [vmem:[#allocation4 + $0x1c] sm:$0xf]
        %v418 = vunpack.c.l.b16 %v402
        %v419 = vunpack.c.l.b16 %v403
        %v420 = vunpack.c.l.b16 %v404
        %v421 = vunpack.c.l.b16 %v405
        %v422 = vunpack.c.l.b16 %v406
        %v423 = vunpack.c.l.b16 %v407
        %v424 = vunpack.c.l.b16 %v408
        %v425 = vunpack.c.l.b16 %v409
        %v426 = vpack.c.b16 %v419, %v418
        %v427 = vpack.c.b16 %v421, %v420
        %v428 = vpack.c.b16 %v423, %v422
        %v429 = vpack.c.b16 %v425, %v424
        %vm430 = vcmask 523264
        %v432 = vsel %vm430, %v426, 0
        %v435 = vsel %vm430, %v427, 0
        %v438 = vsel %vm430, %v428, 0
        %v441 = vsel %vm430, %v429, 0
        %443 = vmatprep.subr.bf16.mxu0 %v395
        %444 = vmatpush1.bf16.msra.mxu0 %v394
        %445 = vmatprep.subr.bf16.mxu0 %v397
        %446 = vmatpush1.bf16.msra.mxu0 %v396
        %447 = vmatprep.subr.bf16.mxu0 %v399
        %448 = vmatpush1.bf16.msra.mxu0 %v398
        %449 = vmatprep.subr.bf16.mxu0 %v401
        %450 = vmatpush1.bf16.msra.mxu0 %v400
        %451 = vmatprep.subr.bf16.mxu0 0
        %452 = vmatpush1.bf16.msra.mxu0 0
        %453 = vmatprep.subr.bf16.mxu0 0
        %454 = vmatpush1.bf16.msra.mxu0 0
        %455 = vmatprep.subr.bf16.mxu0 0
        %456 = vmatpush1.bf16.msra.mxu0 0
        %457 = vmatprep.subr.bf16.mxu0 0
        %458 = vmatpush1.bf16.msra.mxu0 0
        %459 = vmatprep.subr.bf16.mxu0 0
        %460 = vmatpush1.bf16.msra.mxu0 0
        %461 = vmatprep.subr.bf16.mxu0 0
        %462 = vmatpush1.bf16.msra.mxu0 0
        %463 = vmatprep.subr.bf16.mxu0 0
        %464 = vmatpush1.bf16.msra.mxu0 0
        %465 = vmatprep.subr.bf16.mxu0 0
        %466 = vmatpush1.bf16.msra.mxu0 0
        %467 = vmatprep.subr.bf16.mxu0 0
        %468 = vmatpush1.bf16.msra.mxu0 0
        %469 = vmatprep.subr.bf16.mxu0 0
        %470 = vmatpush1.bf16.msra.mxu0 0
        %471 = vmatprep.subr.bf16.mxu0 0
        %472 = vmatpush1.bf16.msra.mxu0 0
        %473 = vmatprep.subr.bf16.mxu0 0
        %474 = vmatpush1.bf16.msra.mxu0 0
        %475 = vmatprep.mubr.bf16.mxu0 0
        %476 = vmatmul.mubr.bf16.gmra.mrb[0].mxu0 %v432
        %v477 = vpop.f32.mrb[0].mxu0
        %v478 = vadd.f32 0.0, %v477
        %v479 = vpop.f32.mrb[0].mxu0
        %v480 = vadd.f32 0.0, %v479
        %v481 = vpop.f32.mrb[0].mxu0
        %v482 = vadd.f32 0.0, %v481
        %v483 = vpop.f32.mrb[0].mxu0
        %v484 = vadd.f32 0.0, %v483
        %485 = vmatprep.mubr.bf16.mxu0 0
        %486 = vmatmul.mubr.bf16.gmra.mrb[0].mxu0 %v435
        %v487 = vpop.f32.mrb[0].mxu0
        %v488 = vadd.f32 0.0, %v487
        %v489 = vpop.f32.mrb[0].mxu0
        %v490 = vadd.f32 0.0, %v489
        %v491 = vpop.f32.mrb[0].mxu0
        %v492 = vadd.f32 0.0, %v491
        %v493 = vpop.f32.mrb[0].mxu0
        %v494 = vadd.f32 0.0, %v493
        %495 = vmatprep.mubr.bf16.mxu0 0
        %496 = vmatmul.mubr.bf16.gmra.mrb[0].mxu0 %v438
        %v497 = vpop.f32.mrb[0].mxu0
        %v498 = vadd.f32 0.0, %v497
        %v499 = vpop.f32.mrb[0].mxu0
        %v500 = vadd.f32 0.0, %v499
        %v501 = vpop.f32.mrb[0].mxu0
        %v502 = vadd.f32 0.0, %v501
        %v503 = vpop.f32.mrb[0].mxu0
        %v504 = vadd.f32 0.0, %v503
        %505 = vmatprep.mubr.bf16.mxu0 0
        %506 = vmatmul.mubr.bf16.gmra.mrb[0].mxu0 %v441
        %v507 = vpop.f32.mrb[0].mxu0
        %v508 = vadd.f32 0.0, %v507
        %v509 = vpop.f32.mrb[0].mxu0
        %v510 = vadd.f32 0.0, %v509
        %v511 = vpop.f32.mrb[0].mxu0
        %v512 = vadd.f32 0.0, %v511
        %v513 = vpop.f32.mrb[0].mxu0
        %v514 = vadd.f32 0.0, %v513
        %515 = vdwg.mxu0
        %v516 = vld [vmem:[#allocation7] sm:$0xff]
        %v517 = vld [vmem:[#allocation7 + $0x8] sm:$0xff]
        %v518 = vld [vmem:[#allocation7 + $0x10] sm:$0xff]
        %v519 = vld [vmem:[#allocation7 + $0x18] sm:$0xff]
        %v520 = vld [vmem:[#allocation7 + $0x20] sm:$0xff]
        %v521 = vld [vmem:[#allocation7 + $0x28] sm:$0xff]
        %v522 = vld [vmem:[#allocation7 + $0x30] sm:$0xff]
        %v523 = vld [vmem:[#allocation7 + $0x38] sm:$0xff]
        %v524 = vadd.f32 %v478, %v482
        %v525 = vadd.f32 %v524, %v488
        %v526 = vadd.f32 %v525, %v492
        %v527 = vadd.f32 %v526, %v498
        %v528 = vadd.f32 %v527, %v502
        %v529 = vadd.f32 %v528, %v508
        %v530 = vadd.f32 %v529, %v512
        %v531 = vrot.slane %v530, 4
        %v532 = vadd.f32 %v530, %v531
        %v533 = vrot.slane %v532, 2
        %v534 = vadd.f32 %v532, %v533
        %v535 = vrot.slane %v534, 1
        %v536 = vadd.f32 %v534, %v535
        %v537 = vadd.f32 %v480, %v484
        %v538 = vadd.f32 %v537, %v490
        %v539 = vadd.f32 %v538, %v494
        %v540 = vadd.f32 %v539, %v500
        %v541 = vadd.f32 %v540, %v504
        %v542 = vadd.f32 %v541, %v510
        %v543 = vadd.f32 %v542, %v514
        %v544 = vrot.slane %v543, 4
        %v545 = vadd.f32 %v543, %v544
        %v546 = vrot.slane %v545, 2
        %v547 = vadd.f32 %v545, %v546
        %v548 = vrot.slane %v547, 1
        %v549 = vadd.f32 %v547, %v548
        %v550 = vrcp.pop 64.0
        %v551 = vmul.f32 %v536, %v550
        %v552 = vmul.f32 %v549, %v550
        %v553 = vsub.f32 %v478, %v551
        %v554 = vsub.f32 %v480, %v552
        %v555 = vsub.f32 %v482, %v551
        %v556 = vsub.f32 %v484, %v552
        %v557 = vsub.f32 %v488, %v551
        %v558 = vsub.f32 %v490, %v552
        %v559 = vsub.f32 %v492, %v551
        %v560 = vsub.f32 %v494, %v552
        %v561 = vsub.f32 %v498, %v551
        %v562 = vsub.f32 %v500, %v552
        %v563 = vsub.f32 %v502, %v551
        %v564 = vsub.f32 %v504, %v552
        %v565 = vsub.f32 %v508, %v551
        %v566 = vsub.f32 %v510, %v552
        %v567 = vsub.f32 %v512, %v551
        %v568 = vsub.f32 %v514, %v552
        %v569 = vmul.f32 %v553, %v553
        %v570 = vmul.f32 %v554, %v554
        %v571 = vmul.f32 %v555, %v555
        %v572 = vmul.f32 %v556, %v556
        %v573 = vmul.f32 %v557, %v557
        %v574 = vmul.f32 %v558, %v558
        %v575 = vmul.f32 %v559, %v559
        %v576 = vmul.f32 %v560, %v560
        %v577 = vmul.f32 %v561, %v561
        %v578 = vmul.f32 %v562, %v562
        %v579 = vmul.f32 %v563, %v563
        %v580 = vmul.f32 %v564, %v564
        %v581 = vmul.f32 %v565, %v565
        %v582 = vmul.f32 %v566, %v566
        %v583 = vmul.f32 %v567, %v567
        %v584 = vmul.f32 %v568, %v568
        %v585 = vadd.f32 %v569, %v571
        %v586 = vadd.f32 %v585, %v573
        %v587 = vadd.f32 %v586, %v575
        %v588 = vadd.f32 %v587, %v577
        %v589 = vadd.f32 %v588, %v579
        %v590 = vadd.f32 %v589, %v581
        %v591 = vadd.f32 %v590, %v583
        %v592 = vrot.slane %v591, 4
        %v593 = vadd.f32 %v591, %v592
        %v594 = vrot.slane %v593, 2
        %v595 = vadd.f32 %v593, %v594
        %v596 = vrot.slane %v595, 1
        %v597 = vadd.f32 %v595, %v596
        %v598 = vadd.f32 %v570, %v572
        %v599 = vadd.f32 %v598, %v574
        %v600 = vadd.f32 %v599, %v576
        %v601 = vadd.f32 %v600, %v578
        %v602 = vadd.f32 %v601, %v580
        %v603 = vadd.f32 %v602, %v582
        %v604 = vadd.f32 %v603, %v584
        %v605 = vrot.slane %v604, 4
        %v606 = vadd.f32 %v604, %v605
        %v607 = vrot.slane %v606, 2
        %v608 = vadd.f32 %v606, %v607
        %v609 = vrot.slane %v608, 1
        %v610 = vadd.f32 %v608, %v609
        %v611 = vmul.f32 %v597, %v550
        %v612 = vmul.f32 %v610, %v550
        %v613 = vadd.f32 %v611, 1e-05
        %v614 = vadd.f32 %v612, 1e-05
        %v615 = vrsqrt.pop %v613
        %v616 = vrsqrt.pop %v614
        %v617 = vmul.f32 %v553, %v615
        %v618 = vmul.f32 %v554, %v616
        %v619 = vmul.f32 %v555, %v615
        %v620 = vmul.f32 %v556, %v616
        %v621 = vmul.f32 %v557, %v615
        %v622 = vmul.f32 %v558, %v616
        %v623 = vmul.f32 %v559, %v615
        %v624 = vmul.f32 %v560, %v616
        %v625 = vmul.f32 %v561, %v615
        %v626 = vmul.f32 %v562, %v616
        %v627 = vmul.f32 %v563, %v615
        %v628 = vmul.f32 %v564, %v616
        %v629 = vmul.f32 %v565, %v615
        %v630 = vmul.f32 %v566, %v616
        %v631 = vmul.f32 %v567, %v615
        %v632 = vmul.f32 %v568, %v616
        %634 = vset.pattern.permute.xlu0 0
        %635 = vperm.xlu0 %634, %v516
        %v636 = vpop.permute.xlu0 %635
        %639 = vset.pattern.permute.xlu0 0
        %640 = vperm.xlu0 %639, %v517
        %v641 = vpop.permute.xlu0 %640
        %644 = vset.pattern.permute.xlu0 0
        %645 = vperm.xlu0 %644, %v518
        %v646 = vpop.permute.xlu0 %645
        %649 = vset.pattern.permute.xlu0 0
        %650 = vperm.xlu0 %649, %v519
        %v651 = vpop.permute.xlu0 %650
        %654 = vset.pattern.permute.xlu0 0
        %655 = vperm.xlu0 %654, %v520
        %v656 = vpop.permute.xlu0 %655
        %659 = vset.pattern.permute.xlu0 0
        %660 = vperm.xlu0 %659, %v521
        %v661 = vpop.permute.xlu0 %660
        %664 = vset.pattern.permute.xlu0 0
        %665 = vperm.xlu0 %664, %v522
        %v666 = vpop.permute.xlu0 %665
        %669 = vset.pattern.permute.xlu0 0
        %670 = vperm.xlu0 %669, %v523
        %v671 = vpop.permute.xlu0 %670
        %v673 = vmul.f32 %v617, %v636
        %v674 = vmul.f32 %v618, %v636
        %v675 = vmul.f32 %v619, %v641
        %v676 = vmul.f32 %v620, %v641
        %v677 = vmul.f32 %v621, %v646
        %v678 = vmul.f32 %v622, %v646
        %v679 = vmul.f32 %v623, %v651
        %v680 = vmul.f32 %v624, %v651
        %v681 = vmul.f32 %v625, %v656
        %v682 = vmul.f32 %v626, %v656
        %v683 = vmul.f32 %v627, %v661
        %v684 = vmul.f32 %v628, %v661
        %v685 = vmul.f32 %v629, %v666
        %v686 = vmul.f32 %v630, %v666
        %v687 = vmul.f32 %v631, %v671
        %v688 = vmul.f32 %v632, %v671
        %689 = vset.pattern.permute.xlu0 1
        %690 = vperm.xlu0 %689, %v516
        %v691 = vpop.permute.xlu0 %690
        %693 = vset.pattern.permute.xlu0 1
        %694 = vperm.xlu0 %693, %v517
        %v695 = vpop.permute.xlu0 %694
        %697 = vset.pattern.permute.xlu0 1
        %698 = vperm.xlu0 %697, %v518
        %v699 = vpop.permute.xlu0 %698
        %701 = vset.pattern.permute.xlu0 1
        %702 = vperm.xlu0 %701, %v519
        %v703 = vpop.permute.xlu0 %702
        %705 = vset.pattern.permute.xlu0 1
        %706 = vperm.xlu0 %705, %v520
        %v707 = vpop.permute.xlu0 %706
        %709 = vset.pattern.permute.xlu0 1
        %710 = vperm.xlu0 %709, %v521
        %v711 = vpop.permute.xlu0 %710
        %713 = vset.pattern.permute.xlu0 1
        %714 = vperm.xlu0 %713, %v522
        %v715 = vpop.permute.xlu0 %714
        %717 = vset.pattern.permute.xlu0 1
        %718 = vperm.xlu0 %717, %v523
        %v719 = vpop.permute.xlu0 %718
        %v721 = vadd.f32 %v673, %v691
        %v722 = vadd.f32 %v674, %v691
        %v723 = vadd.f32 %v675, %v695
        %v724 = vadd.f32 %v676, %v695
        %v725 = vadd.f32 %v677, %v699
        %v726 = vadd.f32 %v678, %v699
        %v727 = vadd.f32 %v679, %v703
        %v728 = vadd.f32 %v680, %v703
        %v729 = vadd.f32 %v681, %v707
        %v730 = vadd.f32 %v682, %v707
        %v731 = vadd.f32 %v683, %v711
        %v732 = vadd.f32 %v684, %v711
        %v733 = vadd.f32 %v685, %v715
        %v734 = vadd.f32 %v686, %v715
        %v735 = vadd.f32 %v687, %v719
        %v736 = vadd.f32 %v688, %v719
        %v737 = vmul.f32 %v721, 0.5
        %v738 = vmul.f32 %v722, 0.5
        %v739 = vmul.f32 %v723, 0.5
        %v740 = vmul.f32 %v724, 0.5
        %v741 = vmul.f32 %v725, 0.5
        %v742 = vmul.f32 %v726, 0.5
        %v743 = vmul.f32 %v727, 0.5
        %v744 = vmul.f32 %v728, 0.5
        %v745 = vmul.f32 %v729, 0.5
        %v746 = vmul.f32 %v730, 0.5
        %v747 = vmul.f32 %v731, 0.5
        %v748 = vmul.f32 %v732, 0.5
        %v749 = vmul.f32 %v733, 0.5
        %v750 = vmul.f32 %v734, 0.5
        %v751 = vmul.f32 %v735, 0.5
        %v752 = vmul.f32 %v736, 0.5
        %v753 = vmul.f32 %v721, 0.70710677
        %v754 = vmul.f32 %v722, 0.70710677
        %v755 = vmul.f32 %v723, 0.70710677
        %v756 = vmul.f32 %v724, 0.70710677
        %v757 = vmul.f32 %v725, 0.70710677
        %v758 = vmul.f32 %v726, 0.70710677
        %v759 = vmul.f32 %v727, 0.70710677
        %v760 = vmul.f32 %v728, 0.70710677
        %v761 = vmul.f32 %v729, 0.70710677
        %v762 = vmul.f32 %v730, 0.70710677
        %v763 = vmul.f32 %v731, 0.70710677
        %v764 = vmul.f32 %v732, 0.70710677
        %v765 = vmul.f32 %v733, 0.70710677
        %v766 = vmul.f32 %v734, 0.70710677
        %v767 = vmul.f32 %v735, 0.70710677
        %v768 = vmul.f32 %v736, 0.70710677
        %vm769 = vcmp.ge.f32.partialorder %v753, 0.0
        %vm770 = vcmp.ge.f32.partialorder %v754, 0.0
        %vm771 = vcmp.ge.f32.partialorder %v755, 0.0
        %vm772 = vcmp.ge.f32.partialorder %v756, 0.0
        %vm773 = vcmp.ge.f32.partialorder %v757, 0.0
        %vm774 = vcmp.ge.f32.partialorder %v758, 0.0
        %vm775 = vcmp.ge.f32.partialorder %v759, 0.0
        %vm776 = vcmp.ge.f32.partialorder %v760, 0.0
        %vm777 = vcmp.ge.f32.partialorder %v761, 0.0
        %vm778 = vcmp.ge.f32.partialorder %v762, 0.0
        %vm779 = vcmp.ge.f32.partialorder %v763, 0.0
        %vm780 = vcmp.ge.f32.partialorder %v764, 0.0
        %vm781 = vcmp.ge.f32.partialorder %v765, 0.0
        %vm782 = vcmp.ge.f32.partialorder %v766, 0.0
        %vm783 = vcmp.ge.f32.partialorder %v767, 0.0
        %vm784 = vcmp.ge.f32.partialorder %v768, 0.0
        %v785 = vsel %vm769, 1.0, -1.0
        %v786 = vsel %vm770, 1.0, -1.0
        %v787 = vsel %vm771, 1.0, -1.0
        %v788 = vsel %vm772, 1.0, -1.0
        %v789 = vsel %vm773, 1.0, -1.0
        %v790 = vsel %vm774, 1.0, -1.0
        %v791 = vsel %vm775, 1.0, -1.0
        %v792 = vsel %vm776, 1.0, -1.0
        %v793 = vsel %vm777, 1.0, -1.0
        %v794 = vsel %vm778, 1.0, -1.0
        %v795 = vsel %vm779, 1.0, -1.0
        %v796 = vsel %vm780, 1.0, -1.0
        %v797 = vsel %vm781, 1.0, -1.0
        %v798 = vsel %vm782, 1.0, -1.0
        %v799 = vsel %vm783, 1.0, -1.0
        %v800 = vsel %vm784, 1.0, -1.0
        %v801 = vand.u32 2147483647, %v753
        %v802 = vand.u32 2147483647, %v754
        %v803 = vand.u32 2147483647, %v755
        %v804 = vand.u32 2147483647, %v756
        %v805 = vand.u32 2147483647, %v757
        %v806 = vand.u32 2147483647, %v758
        %v807 = vand.u32 2147483647, %v759
        %v808 = vand.u32 2147483647, %v760
        %v809 = vand.u32 2147483647, %v761
        %v810 = vand.u32 2147483647, %v762
        %v811 = vand.u32 2147483647, %v763
        %v812 = vand.u32 2147483647, %v764
        %v813 = vand.u32 2147483647, %v765
        %v814 = vand.u32 2147483647, %v766
        %v815 = vand.u32 2147483647, %v767
        %v816 = vand.u32 2147483647, %v768
        %v817 = vmul.f32 %v801, 0.3275911
        %v818 = vmul.f32 %v802, 0.3275911
        %v819 = vmul.f32 %v803, 0.3275911
        %v820 = vmul.f32 %v804, 0.3275911
        %v821 = vmul.f32 %v805, 0.3275911
        %v822 = vmul.f32 %v806, 0.3275911
        %v823 = vmul.f32 %v807, 0.3275911
        %v824 = vmul.f32 %v808, 0.3275911
        %v825 = vmul.f32 %v809, 0.3275911
        %v826 = vmul.f32 %v810, 0.3275911
        %v827 = vmul.f32 %v811, 0.3275911
        %v828 = vmul.f32 %v812, 0.3275911
        %v829 = vmul.f32 %v813, 0.3275911
        %v830 = vmul.f32 %v814, 0.3275911
        %v831 = vmul.f32 %v815, 0.3275911
        %v832 = vmul.f32 %v816, 0.3275911
        %v833 = vadd.f32 %v817, 1.0
        %v834 = vadd.f32 %v818, 1.0
        %v835 = vadd.f32 %v819, 1.0
        %v836 = vadd.f32 %v820, 1.0
        %v837 = vadd.f32 %v821, 1.0
        %v838 = vadd.f32 %v822, 1.0
        %v839 = vadd.f32 %v823, 1.0
        %v840 = vadd.f32 %v824, 1.0
        %v841 = vadd.f32 %v825, 1.0
        %v842 = vadd.f32 %v826, 1.0
        %v843 = vadd.f32 %v827, 1.0
        %v844 = vadd.f32 %v828, 1.0
        %v845 = vadd.f32 %v829, 1.0
        %v846 = vadd.f32 %v830, 1.0
        %v847 = vadd.f32 %v831, 1.0
        %v848 = vadd.f32 %v832, 1.0
        %v849 = vrcp.pop %v833
        %v850 = vmul.f32 1.0, %v849
        %v851 = vrcp.pop %v834
        %v852 = vmul.f32 1.0, %v851
        %v853 = vrcp.pop %v835
        %v854 = vmul.f32 1.0, %v853
        %v855 = vrcp.pop %v836
        %v856 = vmul.f32 1.0, %v855
        %v857 = vrcp.pop %v837
        %v858 = vmul.f32 1.0, %v857
        %v859 = vrcp.pop %v838
        %v860 = vmul.f32 1.0, %v859
        %v861 = vrcp.pop %v839
        %v862 = vmul.f32 1.0, %v861
        %v863 = vrcp.pop %v840
        %v864 = vmul.f32 1.0, %v863
        %v865 = vrcp.pop %v841
        %v866 = vmul.f32 1.0, %v865
        %v867 = vrcp.pop %v842
        %v868 = vmul.f32 1.0, %v867
        %v869 = vrcp.pop %v843
        %v870 = vmul.f32 1.0, %v869
        %v871 = vrcp.pop %v844
        %v872 = vmul.f32 1.0, %v871
        %v873 = vrcp.pop %v845
        %v874 = vmul.f32 1.0, %v873
        %v875 = vrcp.pop %v846
        %v876 = vmul.f32 1.0, %v875
        %v877 = vrcp.pop %v847
        %v878 = vmul.f32 1.0, %v877
        %v879 = vrcp.pop %v848
        %v880 = vmul.f32 1.0, %v879
        %v881 = vmul.f32 %v850, 1.0614054
        %v882 = vmul.f32 %v852, 1.0614054
        %v883 = vmul.f32 %v854, 1.0614054
        %v884 = vmul.f32 %v856, 1.0614054
        %v885 = vmul.f32 %v858, 1.0614054
        %v886 = vmul.f32 %v860, 1.0614054
        %v887 = vmul.f32 %v862, 1.0614054
        %v888 = vmul.f32 %v864, 1.0614054
        %v889 = vmul.f32 %v866, 1.0614054
        %v890 = vmul.f32 %v868, 1.0614054
        %v891 = vmul.f32 %v870, 1.0614054
        %v892 = vmul.f32 %v872, 1.0614054
        %v893 = vmul.f32 %v874, 1.0614054
        %v894 = vmul.f32 %v876, 1.0614054
        %v895 = vmul.f32 %v878, 1.0614054
        %v896 = vmul.f32 %v880, 1.0614054
        %v897 = vadd.f32 %v881, -1.4531521
        %v898 = vadd.f32 %v882, -1.4531521
        %v899 = vadd.f32 %v883, -1.4531521
        %v900 = vadd.f32 %v884, -1.4531521
        %v901 = vadd.f32 %v885, -1.4531521
        %v902 = vadd.f32 %v886, -1.4531521
        %v903 = vadd.f32 %v887, -1.4531521
        %v904 = vadd.f32 %v888, -1.4531521
        %v905 = vadd.f32 %v889, -1.4531521
        %v906 = vadd.f32 %v890, -1.4531521
        %v907 = vadd.f32 %v891, -1.4531521
        %v908 = vadd.f32 %v892, -1.4531521
        %v909 = vadd.f32 %v893, -1.4531521
        %v910 = vadd.f32 %v894, -1.4531521
        %v911 = vadd.f32 %v895, -1.4531521
        %v912 = vadd.f32 %v896, -1.4531521
        %v913 = vmul.f32 %v897, %v850
        %v914 = vmul.f32 %v898, %v852
        %v915 = vmul.f32 %v899, %v854
        %v916 = vmul.f32 %v900, %v856
        %v917 = vmul.f32 %v901, %v858
        %v918 = vmul.f32 %v902, %v860
        %v919 = vmul.f32 %v903, %v862
        %v920 = vmul.f32 %v904, %v864
        %v921 = vmul.f32 %v905, %v866
        %v922 = vmul.f32 %v906, %v868
        %v923 = vmul.f32 %v907, %v870
        %v924 = vmul.f32 %v908, %v872
        %v925 = vmul.f32 %v909, %v874
        %v926 = vmul.f32 %v910, %v876
        %v927 = vmul.f32 %v911, %v878
        %v928 = vmul.f32 %v912, %v880
        %v929 = vadd.f32 %v913, 1.4214138
        %v930 = vadd.f32 %v914, 1.4214138
        %v931 = vadd.f32 %v915, 1.4214138
        %v932 = vadd.f32 %v916, 1.4214138
        %v933 = vadd.f32 %v917, 1.4214138
        %v934 = vadd.f32 %v918, 1.4214138
        %v935 = vadd.f32 %v919, 1.4214138
        %v936 = vadd.f32 %v920, 1.4214138
        %v937 = vadd.f32 %v921, 1.4214138
        %v938 = vadd.f32 %v922, 1.4214138
        %v939 = vadd.f32 %v923, 1.4214138
        %v940 = vadd.f32 %v924, 1.4214138
        %v941 = vadd.f32 %v925, 1.4214138
        %v942 = vadd.f32 %v926, 1.4214138
        %v943 = vadd.f32 %v927, 1.4214138
        %v944 = vadd.f32 %v928, 1.4214138
        %v945 = vmul.f32 %v929, %v850
        %v946 = vmul.f32 %v930, %v852
        %v947 = vmul.f32 %v931, %v854
        %v948 = vmul.f32 %v932, %v856
        %v949 = vmul.f32 %v933, %v858
        %v950 = vmul.f32 %v934, %v860
        %v951 = vmul.f32 %v935, %v862
        %v952 = vmul.f32 %v936, %v864
        %v953 = vmul.f32 %v937, %v866
        %v954 = vmul.f32 %v938, %v868
        %v955 = vmul.f32 %v939, %v870
        %v956 = vmul.f32 %v940, %v872
        %v957 = vmul.f32 %v941, %v874
        %v958 = vmul.f32 %v942, %v876
        %v959 = vmul.f32 %v943, %v878
        %v960 = vmul.f32 %v944, %v880
        %v961 = vadd.f32 %v945, -0.28449672
        %v962 = vadd.f32 %v946, -0.28449672
        %v963 = vadd.f32 %v947, -0.28449672
        %v964 = vadd.f32 %v948, -0.28449672
        %v965 = vadd.f32 %v949, -0.28449672
        %v966 = vadd.f32 %v950, -0.28449672
        %v967 = vadd.f32 %v951, -0.28449672
        %v968 = vadd.f32 %v952, -0.28449672
        %v969 = vadd.f32 %v953, -0.28449672
        %v970 = vadd.f32 %v954, -0.28449672
        %v971 = vadd.f32 %v955, -0.28449672
        %v972 = vadd.f32 %v956, -0.28449672
        %v973 = vadd.f32 %v957, -0.28449672
        %v974 = vadd.f32 %v958, -0.28449672
        %v975 = vadd.f32 %v959, -0.28449672
        %v976 = vadd.f32 %v960, -0.28449672
        %v977 = vmul.f32 %v961, %v850
        %v978 = vmul.f32 %v962, %v852
        %v979 = vmul.f32 %v963, %v854
        %v980 = vmul.f32 %v964, %v856
        %v981 = vmul.f32 %v965, %v858
        %v982 = vmul.f32 %v966, %v860
        %v983 = vmul.f32 %v967, %v862
        %v984 = vmul.f32 %v968, %v864
        %v985 = vmul.f32 %v969, %v866
        %v986 = vmul.f32 %v970, %v868
        %v987 = vmul.f32 %v971, %v870
        %v988 = vmul.f32 %v972, %v872
        %v989 = vmul.f32 %v973, %v874
        %v990 = vmul.f32 %v974, %v876
        %v991 = vmul.f32 %v975, %v878
        %v992 = vmul.f32 %v976, %v880
        %v993 = vadd.f32 %v977, 0.2548296
        %v994 = vadd.f32 %v978, 0.2548296
        %v995 = vadd.f32 %v979, 0.2548296
        %v996 = vadd.f32 %v980, 0.2548296
        %v997 = vadd.f32 %v981, 0.2548296
        %v998 = vadd.f32 %v982, 0.2548296
        %v999 = vadd.f32 %v983, 0.2548296
        %v1000 = vadd.f32 %v984, 0.2548296
        %v1001 = vadd.f32 %v985, 0.2548296
        %v1002 = vadd.f32 %v986, 0.2548296
        %v1003 = vadd.f32 %v987, 0.2548296
        %v1004 = vadd.f32 %v988, 0.2548296
        %v1005 = vadd.f32 %v989, 0.2548296
        %v1006 = vadd.f32 %v990, 0.2548296
        %v1007 = vadd.f32 %v991, 0.2548296
        %v1008 = vadd.f32 %v992, 0.2548296
        %v1009 = vmul.f32 %v993, %v850
        %v1010 = vmul.f32 %v994, %v852
        %v1011 = vmul.f32 %v995, %v854
        %v1012 = vmul.f32 %v996, %v856
        %v1013 = vmul.f32 %v997, %v858
        %v1014 = vmul.f32 %v998, %v860
        %v1015 = vmul.f32 %v999, %v862
        %v1016 = vmul.f32 %v1000, %v864
        %v1017 = vmul.f32 %v1001, %v866
        %v1018 = vmul.f32 %v1002, %v868
        %v1019 = vmul.f32 %v1003, %v870
        %v1020 = vmul.f32 %v1004, %v872
        %v1021 = vmul.f32 %v1005, %v874
        %v1022 = vmul.f32 %v1006, %v876
        %v1023 = vmul.f32 %v1007, %v878
        %v1024 = vmul.f32 %v1008, %v880
        %v1025 = vsub.f32 0.0, %v801
        %v1026 = vsub.f32 0.0, %v802
        %v1027 = vsub.f32 0.0, %v803
        %v1028 = vsub.f32 0.0, %v804
        %v1029 = vsub.f32 0.0, %v805
        %v1030 = vsub.f32 0.0, %v806
        %v1031 = vsub.f32 0.0, %v807
        %v1032 = vsub.f32 0.0, %v808
        %v1033 = vsub.f32 0.0, %v809
        %v1034 = vsub.f32 0.0, %v810
        %v1035 = vsub.f32 0.0, %v811
        %v1036 = vsub.f32 0.0, %v812
        %v1037 = vsub.f32 0.0, %v813
        %v1038 = vsub.f32 0.0, %v814
        %v1039 = vsub.f32 0.0, %v815
        %v1040 = vsub.f32 0.0, %v816
        %v1041 = vmul.f32 %v1025, %v801
        %v1042 = vmul.f32 %v1026, %v802
        %v1043 = vmul.f32 %v1027, %v803
        %v1044 = vmul.f32 %v1028, %v804
        %v1045 = vmul.f32 %v1029, %v805
        %v1046 = vmul.f32 %v1030, %v806
        %v1047 = vmul.f32 %v1031, %v807
        %v1048 = vmul.f32 %v1032, %v808
        %v1049 = vmul.f32 %v1033, %v809
        %v1050 = vmul.f32 %v1034, %v810
        %v1051 = vmul.f32 %v1035, %v811
        %v1052 = vmul.f32 %v1036, %v812
        %v1053 = vmul.f32 %v1037, %v813
        %v1054 = vmul.f32 %v1038, %v814
        %v1055 = vmul.f32 %v1039, %v815
        %v1056 = vmul.f32 %v1040, %v816
        %v1057 = vmul.f32 %v1041, 1.442695
        %v1058 = vpow.pop %v1057
        %v1059 = vmul.f32 %v1042, 1.442695
        %v1060 = vpow.pop %v1059
        %v1061 = vmul.f32 %v1043, 1.442695
        %v1062 = vpow.pop %v1061
        %v1063 = vmul.f32 %v1044, 1.442695
        %v1064 = vpow.pop %v1063
        %v1065 = vmul.f32 %v1045, 1.442695
        %v1066 = vpow.pop %v1065
        %v1067 = vmul.f32 %v1046, 1.442695
        %v1068 = vpow.pop %v1067
        %v1069 = vmul.f32 %v1047, 1.442695
        %v1070 = vpow.pop %v1069
        %v1071 = vmul.f32 %v1048, 1.442695
        %v1072 = vpow.pop %v1071
        %v1073 = vmul.f32 %v1049, 1.442695
        %v1074 = vpow.pop %v1073
        %v1075 = vmul.f32 %v1050, 1.442695
        %v1076 = vpow.pop %v1075
        %v1077 = vmul.f32 %v1051, 1.442695
        %v1078 = vpow.pop %v1077
        %v1079 = vmul.f32 %v1052, 1.442695
        %v1080 = vpow.pop %v1079
        %v1081 = vmul.f32 %v1053, 1.442695
        %v1082 = vpow.pop %v1081
        %v1083 = vmul.f32 %v1054, 1.442695
        %v1084 = vpow.pop %v1083
        %v1085 = vmul.f32 %v1055, 1.442695
        %v1086 = vpow.pop %v1085
        %v1087 = vmul.f32 %v1056, 1.442695
        %v1088 = vpow.pop %v1087
        %v1089 = vmul.f32 %v1009, %v1058
        %v1090 = vmul.f32 %v1010, %v1060
        %v1091 = vmul.f32 %v1011, %v1062
        %v1092 = vmul.f32 %v1012, %v1064
        %v1093 = vmul.f32 %v1013, %v1066
        %v1094 = vmul.f32 %v1014, %v1068
        %v1095 = vmul.f32 %v1015, %v1070
        %v1096 = vmul.f32 %v1016, %v1072
        %v1097 = vmul.f32 %v1017, %v1074
        %v1098 = vmul.f32 %v1018, %v1076
        %v1099 = vmul.f32 %v1019, %v1078
        %v1100 = vmul.f32 %v1020, %v1080
        %v1101 = vmul.f32 %v1021, %v1082
        %v1102 = vmul.f32 %v1022, %v1084
        %v1103 = vmul.f32 %v1023, %v1086
        %v1104 = vmul.f32 %v1024, %v1088
        %v1105 = vsub.f32 1.0, %v1089
        %v1106 = vsub.f32 1.0, %v1090
        %v1107 = vsub.f32 1.0, %v1091
        %v1108 = vsub.f32 1.0, %v1092
        %v1109 = vsub.f32 1.0, %v1093
        %v1110 = vsub.f32 1.0, %v1094
        %v1111 = vsub.f32 1.0, %v1095
        %v1112 = vsub.f32 1.0, %v1096
        %v1113 = vsub.f32 1.0, %v1097
        %v1114 = vsub.f32 1.0, %v1098
        %v1115 = vsub.f32 1.0, %v1099
        %v1116 = vsub.f32 1.0, %v1100
        %v1117 = vsub.f32 1.0, %v1101
        %v1118 = vsub.f32 1.0, %v1102
        %v1119 = vsub.f32 1.0, %v1103
        %v1120 = vsub.f32 1.0, %v1104
        %v1121 = vmul.f32 %v785, %v1105
        %v1122 = vmul.f32 %v786, %v1106
        %v1123 = vmul.f32 %v787, %v1107
        %v1124 = vmul.f32 %v788, %v1108
        %v1125 = vmul.f32 %v789, %v1109
        %v1126 = vmul.f32 %v790, %v1110
        %v1127 = vmul.f32 %v791, %v1111
        %v1128 = vmul.f32 %v792, %v1112
        %v1129 = vmul.f32 %v793, %v1113
        %v1130 = vmul.f32 %v794, %v1114
        %v1131 = vmul.f32 %v795, %v1115
        %v1132 = vmul.f32 %v796, %v1116
        %v1133 = vmul.f32 %v797, %v1117
        %v1134 = vmul.f32 %v798, %v1118
        %v1135 = vmul.f32 %v799, %v1119
        %v1136 = vmul.f32 %v800, %v1120
        %v1137 = vadd.f32 %v1121, 1.0
        %v1138 = vadd.f32 %v1122, 1.0
        %v1139 = vadd.f32 %v1123, 1.0
        %v1140 = vadd.f32 %v1124, 1.0
        %v1141 = vadd.f32 %v1125, 1.0
        %v1142 = vadd.f32 %v1126, 1.0
        %v1143 = vadd.f32 %v1127, 1.0
        %v1144 = vadd.f32 %v1128, 1.0
        %v1145 = vadd.f32 %v1129, 1.0
        %v1146 = vadd.f32 %v1130, 1.0
        %v1147 = vadd.f32 %v1131, 1.0
        %v1148 = vadd.f32 %v1132, 1.0
        %v1149 = vadd.f32 %v1133, 1.0
        %v1150 = vadd.f32 %v1134, 1.0
        %v1151 = vadd.f32 %v1135, 1.0
        %v1152 = vadd.f32 %v1136, 1.0
        %v1153 = vmul.f32 %v737, %v1137
        %v1154 = vmul.f32 %v738, %v1138
        %v1155 = vmul.f32 %v739, %v1139
        %v1156 = vmul.f32 %v740, %v1140
        %v1157 = vmul.f32 %v741, %v1141
        %v1158 = vmul.f32 %v742, %v1142
        %v1159 = vmul.f32 %v743, %v1143
        %v1160 = vmul.f32 %v744, %v1144
        %v1161 = vmul.f32 %v745, %v1145
        %v1162 = vmul.f32 %v746, %v1146
        %v1163 = vmul.f32 %v747, %v1147
        %v1164 = vmul.f32 %v748, %v1148
        %v1165 = vmul.f32 %v749, %v1149
        %v1166 = vmul.f32 %v750, %v1150
        %v1167 = vmul.f32 %v751, %v1151
        %v1168 = vmul.f32 %v752, %v1152
        %v1169 = vpack.c.bf16 %v1155, %v1153
        %v1170 = vpack.c.bf16 %v1156, %v1154
        %v1171 = vpack.c.bf16 %v1159, %v1157
        %v1172 = vpack.c.bf16 %v1160, %v1158
        %v1173 = vpack.c.bf16 %v1163, %v1161
        %v1174 = vpack.c.bf16 %v1164, %v1162
        %v1175 = vpack.c.bf16 %v1167, %v1165
        %v1176 = vpack.c.bf16 %v1168, %v1166
        %v1177 = vld [vmem:[%s6] sm:$0xff]
        %v1178 = vld [vmem:[%s6 + $0x8] sm:$0xff]
        %v1179 = vld [vmem:[%s6 + $0x10] sm:$0xff]
        %v1180 = vld [vmem:[%s6 + $0x18] sm:$0xff]
        %v1181 = vld [vmem:[%s6 + $0x20] sm:$0xff]
        %v1182 = vld [vmem:[%s6 + $0x28] sm:$0xff]
        %v1183 = vld [vmem:[#allocation9] sm:$0xf]
        %v1184 = vld [vmem:[#allocation9 + $0x4] sm:$0xf]
        %v1185 = vld [vmem:[#allocation9 + $0x8] sm:$0xf]
        %v1186 = vld [vmem:[#allocation9 + $0xc] sm:$0xf]
        %v1187 = vld [vmem:[#allocation9 + $0x10] sm:$0xf]
        %v1188 = vld [vmem:[#allocation9 + $0x14] sm:$0xf]
        %v1195 = vunpack.c.l.b16 %v1183
        %v1196 = vunpack.c.l.b16 %v1184
        %v1197 = vunpack.c.l.b16 %v1185
        %v1198 = vunpack.c.l.b16 %v1186
        %v1199 = vunpack.c.l.b16 %v1187
        %v1200 = vunpack.c.l.b16 %v1188
        %v1201 = vpack.c.b16 %v1196, %v1195
        %v1202 = vpack.c.b16 %v1198, %v1197
        %v1203 = vpack.c.b16 %v1200, %v1199
        %v1205 = vsel %vm430, %v1201, 0
        %v1208 = vsel %vm430, %v1202, 0
        %v1211 = vsel %vm430, %v1203, 0
        %1213 = vmatprep.subr.bf16.mxu0 %v1170
        %1214 = vmatpush1.bf16.msra.mxu0 %v1169
        %1215 = vmatprep.subr.bf16.mxu0 %v1172
        %1216 = vmatpush1.bf16.msra.mxu0 %v1171
        %1217 = vmatprep.subr.bf16.mxu0 %v1174
        %1218 = vmatpush1.bf16.msra.mxu0 %v1173
        %1219 = vmatprep.subr.bf16.mxu0 %v1176
        %1220 = vmatpush1.bf16.msra.mxu0 %v1175
        %1221 = vmatprep.subr.bf16.mxu0 0
        %1222 = vmatpush1.bf16.msra.mxu0 0
        %1223 = vmatprep.subr.bf16.mxu0 0
        %1224 = vmatpush1.bf16.msra.mxu0 0
        %1225 = vmatprep.subr.bf16.mxu0 0
        %1226 = vmatpush1.bf16.msra.mxu0 0
        %1227 = vmatprep.subr.bf16.mxu0 0
        %1228 = vmatpush1.bf16.msra.mxu0 0
        %1229 = vmatprep.subr.bf16.mxu0 0
        %1230 = vmatpush1.bf16.msra.mxu0 0
        %1231 = vmatprep.subr.bf16.mxu0 0
        %1232 = vmatpush1.bf16.msra.mxu0 0
        %1233 = vmatprep.subr.bf16.mxu0 0
        %1234 = vmatpush1.bf16.msra.mxu0 0
        %1235 = vmatprep.subr.bf16.mxu0 0
        %1236 = vmatpush1.bf16.msra.mxu0 0
        %1237 = vmatprep.subr.bf16.mxu0 0
        %1238 = vmatpush1.bf16.msra.mxu0 0
        %1239 = vmatprep.subr.bf16.mxu0 0
        %1240 = vmatpush1.bf16.msra.mxu0 0
        %1241 = vmatprep.subr.bf16.mxu0 0
        %1242 = vmatpush1.bf16.msra.mxu0 0
        %1243 = vmatprep.subr.bf16.mxu0 0
        %1244 = vmatpush1.bf16.msra.mxu0 0
        %1245 = vmatprep.mubr.bf16.mxu0 0
        %1246 = vmatmul.mubr.bf16.gmra.mrb[0].mxu0 %v1205
        %v1247 = vpop.f32.mrb[0].mxu0
        %v1248 = vadd.f32 0.0, %v1247
        %v1249 = vpop.f32.mrb[0].mxu0
        %v1250 = vadd.f32 0.0, %v1249
        %v1251 = vpop.f32.mrb[0].mxu0
        %v1252 = vadd.f32 0.0, %v1251
        %v1253 = vpop.f32.mrb[0].mxu0
        %v1254 = vadd.f32 0.0, %v1253
        %1255 = vmatprep.mubr.bf16.mxu0 0
        %1256 = vmatmul.mubr.bf16.gmra.mrb[0].mxu0 %v1208
        %v1257 = vpop.f32.mrb[0].mxu0
        %v1258 = vadd.f32 0.0, %v1257
        %v1259 = vpop.f32.mrb[0].mxu0
        %v1260 = vadd.f32 0.0, %v1259
        %v1261 = vpop.f32.mrb[0].mxu0
        %v1262 = vadd.f32 0.0, %v1261
        %v1263 = vpop.f32.mrb[0].mxu0
        %v1264 = vadd.f32 0.0, %v1263
        %1265 = vmatprep.mubr.bf16.mxu0 0
        %1266 = vmatmul.mubr.bf16.gmra.mrb[0].mxu0 %v1211
        %v1267 = vpop.f32.mrb[0].mxu0
        %v1268 = vadd.f32 0.0, %v1267
        %v1269 = vpop.f32.mrb[0].mxu0
        %v1270 = vadd.f32 0.0, %v1269
        %v1271 = vpop.f32.mrb[0].mxu0
        %v1272 = vadd.f32 0.0, %v1271
        %v1273 = vpop.f32.mrb[0].mxu0
        %v1274 = vadd.f32 0.0, %v1273
        %1275 = vdwg.mxu0
        %1277 = vset.pattern.permute.xlu0 0
        %1278 = vperm.xlu0 %1277, %v1177
        %v1279 = vpop.permute.xlu0 %1278
        %1282 = vset.pattern.permute.xlu0 0
        %1283 = vperm.xlu0 %1282, %v1178
        %v1284 = vpop.permute.xlu0 %1283
        %1287 = vset.pattern.permute.xlu0 0
        %1288 = vperm.xlu0 %1287, %v1179
        %v1289 = vpop.permute.xlu0 %1288
        %1292 = vset.pattern.permute.xlu0 0
        %1293 = vperm.xlu0 %1292, %v1180
        %v1294 = vpop.permute.xlu0 %1293
        %1297 = vset.pattern.permute.xlu0 0
        %1298 = vperm.xlu0 %1297, %v1181
        %v1299 = vpop.permute.xlu0 %1298
        %1302 = vset.pattern.permute.xlu0 0
        %1303 = vperm.xlu0 %1302, %v1182
        %v1304 = vpop.permute.xlu0 %1303
        %v1306 = vadd.f32 %v1279, %v1248
        %v1307 = vadd.f32 %v1279, %v1250
        %v1308 = vadd.f32 %v1284, %v1252
        %v1309 = vadd.f32 %v1284, %v1254
        %v1310 = vadd.f32 %v1289, %v1258
        %v1311 = vadd.f32 %v1289, %v1260
        %v1312 = vadd.f32 %v1294, %v1262
        %v1313 = vadd.f32 %v1294, %v1264
        %v1314 = vadd.f32 %v1299, %v1268
        %v1315 = vadd.f32 %v1299, %v1270
        %v1316 = vadd.f32 %v1304, %v1272
        %v1317 = vadd.f32 %v1304, %v1274
        %v1318 = vld [vmem:[#allocation4 + $0x20] sm:$0xf]
        %v1319 = vld [vmem:[#allocation4 + $0x24] sm:$0xf]
        %v1320 = vld [vmem:[#allocation4 + $0x28] sm:$0xf]
        %v1321 = vld [vmem:[#allocation4 + $0x2c] sm:$0xf]
        %v1322 = vld [vmem:[#allocation4 + $0x30] sm:$0xf]
        %v1323 = vld [vmem:[#allocation4 + $0x34] sm:$0xf]
        %v1324 = vld [vmem:[#allocation4 + $0x38] sm:$0xf]
        %v1325 = vld [vmem:[#allocation4 + $0x3c] sm:$0xf]
        %v1326 = vld [vmem:[#allocation6] sm:$0xf]
        %v1327 = vld [vmem:[#allocation6 + $0x4] sm:$0xf]
        %v1328 = vld [vmem:[#allocation6 + $0x8] sm:$0xf]
        %v1329 = vld [vmem:[#allocation6 + $0xc] sm:$0xf]
        %v1330 = vld [vmem:[#allocation6 + $0x10] sm:$0xf]
        %v1331 = vld [vmem:[#allocation6 + $0x14] sm:$0xf]
        %v1332 = vld [vmem:[#allocation6 + $0x18] sm:$0xf]
        %v1333 = vld [vmem:[#allocation6 + $0x1c] sm:$0xf]
        %v1342 = vunpack.c.l.b16 %v1326
        %v1343 = vunpack.c.l.b16 %v1327
        %v1344 = vunpack.c.l.b16 %v1328
        %v1345 = vunpack.c.l.b16 %v1329
        %v1346 = vunpack.c.l.b16 %v1330
        %v1347 = vunpack.c.l.b16 %v1331
        %v1348 = vunpack.c.l.b16 %v1332
        %v1349 = vunpack.c.l.b16 %v1333
        %v1350 = vpack.c.b16 %v1343, %v1342
        %v1351 = vpack.c.b16 %v1345, %v1344
        %v1352 = vpack.c.b16 %v1347, %v1346
        %v1353 = vpack.c.b16 %v1349, %v1348
        %v1355 = vsel %vm430, %v1350, 0
        %v1358 = vsel %vm430, %v1351, 0
        %v1361 = vsel %vm430, %v1352, 0
        %v1364 = vsel %vm430, %v1353, 0
        %1366 = vmatprep.subr.bf16.mxu0 %v1170
        %1367 = vmatpush1.bf16.msra.mxu0 %v1169
        %1368 = vmatprep.subr.bf16.mxu0 %v1172
        %1369 = vmatpush1.bf16.msra.mxu0 %v1171
        %1370 = vmatprep.subr.bf16.mxu0 %v1174
        %1371 = vmatpush1.bf16.msra.mxu0 %v1173
        %1372 = vmatprep.subr.bf16.mxu0 %v1176
        %1373 = vmatpush1.bf16.msra.mxu0 %v1175
        %1374 = vmatprep.subr.bf16.mxu0 0
        %1375 = vmatpush1.bf16.msra.mxu0 0
        %1376 = vmatprep.subr.bf16.mxu0 0
        %1377 = vmatpush1.bf16.msra.mxu0 0
        %1378 = vmatprep.subr.bf16.mxu0 0
        %1379 = vmatpush1.bf16.msra.mxu0 0
        %1380 = vmatprep.subr.bf16.mxu0 0
        %1381 = vmatpush1.bf16.msra.mxu0 0
        %1382 = vmatprep.subr.bf16.mxu0 0
        %1383 = vmatpush1.bf16.msra.mxu0 0
        %1384 = vmatprep.subr.bf16.mxu0 0
        %1385 = vmatpush1.bf16.msra.mxu0 0
        %1386 = vmatprep.subr.bf16.mxu0 0
        %1387 = vmatpush1.bf16.msra.mxu0 0
        %1388 = vmatprep.subr.bf16.mxu0 0
        %1389 = vmatpush1.bf16.msra.mxu0 0
        %1390 = vmatprep.subr.bf16.mxu0 0
        %1391 = vmatpush1.bf16.msra.mxu0 0
        %1392 = vmatprep.subr.bf16.mxu0 0
        %1393 = vmatpush1.bf16.msra.mxu0 0
        %1394 = vmatprep.subr.bf16.mxu0 0
        %1395 = vmatpush1.bf16.msra.mxu0 0
        %1396 = vmatprep.subr.bf16.mxu0 0
        %1397 = vmatpush1.bf16.msra.mxu0 0
        %1398 = vmatprep.mubr.bf16.mxu0 0
        %1399 = vmatmul.mubr.bf16.gmra.mrb[0].mxu0 %v1355
        %v1400 = vpop.f32.mrb[0].mxu0
        %v1401 = vadd.f32 0.0, %v1400
        %v1402 = vpop.f32.mrb[0].mxu0
        %v1403 = vadd.f32 0.0, %v1402
        %v1404 = vpop.f32.mrb[0].mxu0
        %v1405 = vadd.f32 0.0, %v1404
        %v1406 = vpop.f32.mrb[0].mxu0
        %v1407 = vadd.f32 0.0, %v1406
        %1408 = vmatprep.mubr.bf16.mxu0 0
        %1409 = vmatmul.mubr.bf16.gmra.mrb[0].mxu0 %v1358
        %v1410 = vpop.f32.mrb[0].mxu0
        %v1411 = vadd.f32 0.0, %v1410
        %v1412 = vpop.f32.mrb[0].mxu0
        %v1413 = vadd.f32 0.0, %v1412
        %v1414 = vpop.f32.mrb[0].mxu0
        %v1415 = vadd.f32 0.0, %v1414
        %v1416 = vpop.f32.mrb[0].mxu0
        %v1417 = vadd.f32 0.0, %v1416
        %1418 = vmatprep.mubr.bf16.mxu0 0
        %1419 = vmatmul.mubr.bf16.gmra.mrb[0].mxu0 %v1361
        %v1420 = vpop.f32.mrb[0].mxu0
        %v1421 = vadd.f32 0.0, %v1420
        %v1422 = vpop.f32.mrb[0].mxu0
        %v1423 = vadd.f32 0.0, %v1422
        %v1424 = vpop.f32.mrb[0].mxu0
        %v1425 = vadd.f32 0.0, %v1424
        %v1426 = vpop.f32.mrb[0].mxu0
        %v1427 = vadd.f32 0.0, %v1426
        %1428 = vmatprep.mubr.bf16.mxu0 0
        %1429 = vmatmul.mubr.bf16.gmra.mrb[0].mxu0 %v1364
        %v1430 = vpop.f32.mrb[0].mxu0
        %v1431 = vadd.f32 0.0, %v1430
        %v1432 = vpop.f32.mrb[0].mxu0
        %v1433 = vadd.f32 0.0, %v1432
        %v1434 = vpop.f32.mrb[0].mxu0
        %v1435 = vadd.f32 0.0, %v1434
        %v1436 = vpop.f32.mrb[0].mxu0
        %v1437 = vadd.f32 0.0, %v1436
        %1438 = vdwg.mxu0
        %v1447 = vunpack.c.l.b16 %v1318
        %v1448 = vunpack.c.l.b16 %v1319
        %v1449 = vunpack.c.l.b16 %v1320
        %v1450 = vunpack.c.l.b16 %v1321
        %v1451 = vunpack.c.l.b16 %v1322
        %v1452 = vunpack.c.l.b16 %v1323
        %v1453 = vunpack.c.l.b16 %v1324
        %v1454 = vunpack.c.l.b16 %v1325
        %v1455 = vpack.c.b16 %v1448, %v1447
        %v1456 = vpack.c.b16 %v1450, %v1449
        %v1457 = vpack.c.b16 %v1452, %v1451
        %v1458 = vpack.c.b16 %v1454, %v1453
        %v1460 = vsel %vm430, %v1455, 0
        %v1463 = vsel %vm430, %v1456, 0
        %v1466 = vsel %vm430, %v1457, 0
        %v1469 = vsel %vm430, %v1458, 0
        %1471 = vmatprep.subr.bf16.mxu0 %v395
        %1472 = vmatpush1.bf16.msra.mxu0 %v394
        %1473 = vmatprep.subr.bf16.mxu0 %v397
        %1474 = vmatpush1.bf16.msra.mxu0 %v396
        %1475 = vmatprep.subr.bf16.mxu0 %v399
        %1476 = vmatpush1.bf16.msra.mxu0 %v398
        %1477 = vmatprep.subr.bf16.mxu0 %v401
        %1478 = vmatpush1.bf16.msra.mxu0 %v400
        %1479 = vmatprep.subr.bf16.mxu0 0
        %1480 = vmatpush1.bf16.msra.mxu0 0
        %1481 = vmatprep.subr.bf16.mxu0 0
        %1482 = vmatpush1.bf16.msra.mxu0 0
        %1483 = vmatprep.subr.bf16.mxu0 0
        %1484 = vmatpush1.bf16.msra.mxu0 0
        %1485 = vmatprep.subr.bf16.mxu0 0
        %1486 = vmatpush1.bf16.msra.mxu0 0
        %1487 = vmatprep.subr.bf16.mxu0 0
        %1488 = vmatpush1.bf16.msra.mxu0 0
        %1489 = vmatprep.subr.bf16.mxu0 0
        %1490 = vmatpush1.bf16.msra.mxu0 0
        %1491 = vmatprep.subr.bf16.mxu0 0
        %1492 = vmatpush1.bf16.msra.mxu0 0
        %1493 = vmatprep.subr.bf16.mxu0 0
        %1494 = vmatpush1.bf16.msra.mxu0 0
        %1495 = vmatprep.subr.bf16.mxu0 0
        %1496 = vmatpush1.bf16.msra.mxu0 0
        %1497 = vmatprep.subr.bf16.mxu0 0
        %1498 = vmatpush1.bf16.msra.mxu0 0
        %1499 = vmatprep.subr.bf16.mxu0 0
        %1500 = vmatpush1.bf16.msra.mxu0 0
        %1501 = vmatprep.subr.bf16.mxu0 0
        %1502 = vmatpush1.bf16.msra.mxu0 0
        %1503 = vmatprep.mubr.bf16.mxu0 0
        %1504 = vmatmul.mubr.bf16.gmra.mrb[0].mxu0 %v1460
        %v1505 = vpop.f32.mrb[0].mxu0
        %v1506 = vadd.f32 %v1401, %v1505
        %v1507 = vpop.f32.mrb[0].mxu0
        %v1508 = vadd.f32 %v1403, %v1507
        %v1509 = vpop.f32.mrb[0].mxu0
        %v1510 = vadd.f32 %v1405, %v1509
        %v1511 = vpop.f32.mrb[0].mxu0
        %v1512 = vadd.f32 %v1407, %v1511
        %1513 = vmatprep.mubr.bf16.mxu0 0
        %1514 = vmatmul.mubr.bf16.gmra.mrb[0].mxu0 %v1463
        %v1515 = vpop.f32.mrb[0].mxu0
        %v1516 = vadd.f32 %v1411, %v1515
        %v1517 = vpop.f32.mrb[0].mxu0
        %v1518 = vadd.f32 %v1413, %v1517
        %v1519 = vpop.f32.mrb[0].mxu0
        %v1520 = vadd.f32 %v1415, %v1519
        %v1521 = vpop.f32.mrb[0].mxu0
        %v1522 = vadd.f32 %v1417, %v1521
        %1523 = vmatprep.mubr.bf16.mxu0 0
        %1524 = vmatmul.mubr.bf16.gmra.mrb[0].mxu0 %v1466
        %v1525 = vpop.f32.mrb[0].mxu0
        %v1526 = vadd.f32 %v1421, %v1525
        %v1527 = vpop.f32.mrb[0].mxu0
        %v1528 = vadd.f32 %v1423, %v1527
        %v1529 = vpop.f32.mrb[0].mxu0
        %v1530 = vadd.f32 %v1425, %v1529
        %v1531 = vpop.f32.mrb[0].mxu0
        %v1532 = vadd.f32 %v1427, %v1531
        %1533 = vmatprep.mubr.bf16.mxu0 0
        %1534 = vmatmul.mubr.bf16.gmra.mrb[0].mxu0 %v1469
        %v1535 = vpop.f32.mrb[0].mxu0
        %v1536 = vadd.f32 %v1431, %v1535
        %v1537 = vpop.f32.mrb[0].mxu0
        %v1538 = vadd.f32 %v1433, %v1537
        %v1539 = vpop.f32.mrb[0].mxu0
        %v1540 = vadd.f32 %v1435, %v1539
        %v1541 = vpop.f32.mrb[0].mxu0
        %v1542 = vadd.f32 %v1437, %v1541
        %1543 = vdwg.mxu0
        %v1544 = vadd.f32 %v1506, %v1510
        %v1545 = vadd.f32 %v1544, %v1516
        %v1546 = vadd.f32 %v1545, %v1520
        %v1547 = vadd.f32 %v1546, %v1526
        %v1548 = vadd.f32 %v1547, %v1530
        %v1549 = vadd.f32 %v1548, %v1536
        %v1550 = vadd.f32 %v1549, %v1540
        %v1551 = vrot.slane %v1550, 4
        %v1552 = vadd.f32 %v1550, %v1551
        %v1553 = vrot.slane %v1552, 2
        %v1554 = vadd.f32 %v1552, %v1553
        %v1555 = vrot.slane %v1554, 1
        %v1556 = vadd.f32 %v1554, %v1555
        %v1557 = vadd.f32 %v1508, %v1512
        %v1558 = vadd.f32 %v1557, %v1518
        %v1559 = vadd.f32 %v1558, %v1522
        %v1560 = vadd.f32 %v1559, %v1528
        %v1561 = vadd.f32 %v1560, %v1532
        %v1562 = vadd.f32 %v1561, %v1538
        %v1563 = vadd.f32 %v1562, %v1542
        %v1564 = vrot.slane %v1563, 4
        %v1565 = vadd.f32 %v1563, %v1564
        %v1566 = vrot.slane %v1565, 2
        %v1567 = vadd.f32 %v1565, %v1566
        %v1568 = vrot.slane %v1567, 1
        %v1569 = vadd.f32 %v1567, %v1568
        %v1570 = vmul.f32 %v1556, %v550
        %v1571 = vmul.f32 %v1569, %v550
        %v1572 = vsub.f32 %v1506, %v1570
        %v1573 = vsub.f32 %v1508, %v1571
        %v1574 = vsub.f32 %v1510, %v1570
        %v1575 = vsub.f32 %v1512, %v1571
        %v1576 = vsub.f32 %v1516, %v1570
        %v1577 = vsub.f32 %v1518, %v1571
        %v1578 = vsub.f32 %v1520, %v1570
        %v1579 = vsub.f32 %v1522, %v1571
        %v1580 = vsub.f32 %v1526, %v1570
        %v1581 = vsub.f32 %v1528, %v1571
        %v1582 = vsub.f32 %v1530, %v1570
        %v1583 = vsub.f32 %v1532, %v1571
        %v1584 = vsub.f32 %v1536, %v1570
        %v1585 = vsub.f32 %v1538, %v1571
        %v1586 = vsub.f32 %v1540, %v1570
        %v1587 = vsub.f32 %v1542, %v1571
        %v1588 = vmul.f32 %v1572, %v1572
        %v1589 = vmul.f32 %v1573, %v1573
        %v1590 = vmul.f32 %v1574, %v1574
        %v1591 = vmul.f32 %v1575, %v1575
        %v1592 = vmul.f32 %v1576, %v1576
        %v1593 = vmul.f32 %v1577, %v1577
        %v1594 = vmul.f32 %v1578, %v1578
        %v1595 = vmul.f32 %v1579, %v1579
        %v1596 = vmul.f32 %v1580, %v1580
        %v1597 = vmul.f32 %v1581, %v1581
        %v1598 = vmul.f32 %v1582, %v1582
        %v1599 = vmul.f32 %v1583, %v1583
        %v1600 = vmul.f32 %v1584, %v1584
        %v1601 = vmul.f32 %v1585, %v1585
        %v1602 = vmul.f32 %v1586, %v1586
        %v1603 = vmul.f32 %v1587, %v1587
        %v1604 = vadd.f32 %v1588, %v1590
        %v1605 = vadd.f32 %v1604, %v1592
        %v1606 = vadd.f32 %v1605, %v1594
        %v1607 = vadd.f32 %v1606, %v1596
        %v1608 = vadd.f32 %v1607, %v1598
        %v1609 = vadd.f32 %v1608, %v1600
        %v1610 = vadd.f32 %v1609, %v1602
        %v1611 = vrot.slane %v1610, 4
        %v1612 = vadd.f32 %v1610, %v1611
        %v1613 = vrot.slane %v1612, 2
        %v1614 = vadd.f32 %v1612, %v1613
        %v1615 = vrot.slane %v1614, 1
        %v1616 = vadd.f32 %v1614, %v1615
        %v1617 = vadd.f32 %v1589, %v1591
        %v1618 = vadd.f32 %v1617, %v1593
        %v1619 = vadd.f32 %v1618, %v1595
        %v1620 = vadd.f32 %v1619, %v1597
        %v1621 = vadd.f32 %v1620, %v1599
        %v1622 = vadd.f32 %v1621, %v1601
        %v1623 = vadd.f32 %v1622, %v1603
        %v1624 = vrot.slane %v1623, 4
        %v1625 = vadd.f32 %v1623, %v1624
        %v1626 = vrot.slane %v1625, 2
        %v1627 = vadd.f32 %v1625, %v1626
        %v1628 = vrot.slane %v1627, 1
        %v1629 = vadd.f32 %v1627, %v1628
        %v1630 = vmul.f32 %v1616, %v550
        %v1631 = vmul.f32 %v1629, %v550
        %v1632 = vadd.f32 %v1630, 1e-05
        %v1633 = vadd.f32 %v1631, 1e-05
        %v1634 = vrsqrt.pop %v1632
        %v1635 = vrsqrt.pop %v1633
        %v1636 = vmul.f32 %v1572, %v1634
        %v1637 = vmul.f32 %v1573, %v1635
        %v1638 = vmul.f32 %v1574, %v1634
        %v1639 = vmul.f32 %v1575, %v1635
        %v1640 = vmul.f32 %v1576, %v1634
        %v1641 = vmul.f32 %v1577, %v1635
        %v1642 = vmul.f32 %v1578, %v1634
        %v1643 = vmul.f32 %v1579, %v1635
        %v1644 = vmul.f32 %v1580, %v1634
        %v1645 = vmul.f32 %v1581, %v1635
        %v1646 = vmul.f32 %v1582, %v1634
        %v1647 = vmul.f32 %v1583, %v1635
        %v1648 = vmul.f32 %v1584, %v1634
        %v1649 = vmul.f32 %v1585, %v1635
        %v1650 = vmul.f32 %v1586, %v1634
        %v1651 = vmul.f32 %v1587, %v1635
        %1652 = vset.pattern.permute.xlu0 2
        %1653 = vperm.xlu0 %1652, %v516
        %v1654 = vpop.permute.xlu0 %1653
        %1656 = vset.pattern.permute.xlu0 2
        %1657 = vperm.xlu0 %1656, %v517
        %v1658 = vpop.permute.xlu0 %1657
        %1660 = vset.pattern.permute.xlu0 2
        %1661 = vperm.xlu0 %1660, %v518
        %v1662 = vpop.permute.xlu0 %1661
        %1664 = vset.pattern.permute.xlu0 2
        %1665 = vperm.xlu0 %1664, %v519
        %v1666 = vpop.permute.xlu0 %1665
        %1668 = vset.pattern.permute.xlu0 2
        %1669 = vperm.xlu0 %1668, %v520
        %v1670 = vpop.permute.xlu0 %1669
        %1672 = vset.pattern.permute.xlu0 2
        %1673 = vperm.xlu0 %1672, %v521
        %v1674 = vpop.permute.xlu0 %1673
        %1676 = vset.pattern.permute.xlu0 2
        %1677 = vperm.xlu0 %1676, %v522
        %v1678 = vpop.permute.xlu0 %1677
        %1680 = vset.pattern.permute.xlu0 2
        %1681 = vperm.xlu0 %1680, %v523
        %v1682 = vpop.permute.xlu0 %1681
        %v1684 = vmul.f32 %v1636, %v1654
        %v1685 = vmul.f32 %v1637, %v1654
        %v1686 = vmul.f32 %v1638, %v1658
        %v1687 = vmul.f32 %v1639, %v1658
        %v1688 = vmul.f32 %v1640, %v1662
        %v1689 = vmul.f32 %v1641, %v1662
        %v1690 = vmul.f32 %v1642, %v1666
        %v1691 = vmul.f32 %v1643, %v1666
        %v1692 = vmul.f32 %v1644, %v1670
        %v1693 = vmul.f32 %v1645, %v1670
        %v1694 = vmul.f32 %v1646, %v1674
        %v1695 = vmul.f32 %v1647, %v1674
        %v1696 = vmul.f32 %v1648, %v1678
        %v1697 = vmul.f32 %v1649, %v1678
        %v1698 = vmul.f32 %v1650, %v1682
        %v1699 = vmul.f32 %v1651, %v1682
        %1700 = vset.pattern.permute.xlu0 3
        %1701 = vperm.xlu0 %1700, %v516
        %v1702 = vpop.permute.xlu0 %1701
        %1704 = vset.pattern.permute.xlu0 3
        %1705 = vperm.xlu0 %1704, %v517
        %v1706 = vpop.permute.xlu0 %1705
        %1708 = vset.pattern.permute.xlu0 3
        %1709 = vperm.xlu0 %1708, %v518
        %v1710 = vpop.permute.xlu0 %1709
        %1712 = vset.pattern.permute.xlu0 3
        %1713 = vperm.xlu0 %1712, %v519
        %v1714 = vpop.permute.xlu0 %1713
        %1716 = vset.pattern.permute.xlu0 3
        %1717 = vperm.xlu0 %1716, %v520
        %v1718 = vpop.permute.xlu0 %1717
        %1720 = vset.pattern.permute.xlu0 3
        %1721 = vperm.xlu0 %1720, %v521
        %v1722 = vpop.permute.xlu0 %1721
        %1724 = vset.pattern.permute.xlu0 3
        %1725 = vperm.xlu0 %1724, %v522
        %v1726 = vpop.permute.xlu0 %1725
        %1728 = vset.pattern.permute.xlu0 3
        %1729 = vperm.xlu0 %1728, %v523
        %v1730 = vpop.permute.xlu0 %1729
        %v1732 = vadd.f32 %v1684, %v1702
        %v1733 = vadd.f32 %v1685, %v1702
        %v1734 = vadd.f32 %v1686, %v1706
        %v1735 = vadd.f32 %v1687, %v1706
        %v1736 = vadd.f32 %v1688, %v1710
        %v1737 = vadd.f32 %v1689, %v1710
        %v1738 = vadd.f32 %v1690, %v1714
        %v1739 = vadd.f32 %v1691, %v1714
        %v1740 = vadd.f32 %v1692, %v1718
        %v1741 = vadd.f32 %v1693, %v1718
        %v1742 = vadd.f32 %v1694, %v1722
        %v1743 = vadd.f32 %v1695, %v1722
        %v1744 = vadd.f32 %v1696, %v1726
        %v1745 = vadd.f32 %v1697, %v1726
        %v1746 = vadd.f32 %v1698, %v1730
        %v1747 = vadd.f32 %v1699, %v1730
        %v1748 = vmul.f32 %v1732, 0.5
        %v1749 = vmul.f32 %v1733, 0.5
        %v1750 = vmul.f32 %v1734, 0.5
        %v1751 = vmul.f32 %v1735, 0.5
        %v1752 = vmul.f32 %v1736, 0.5
        %v1753 = vmul.f32 %v1737, 0.5
        %v1754 = vmul.f32 %v1738, 0.5
        %v1755 = vmul.f32 %v1739, 0.5
        %v1756 = vmul.f32 %v1740, 0.5
        %v1757 = vmul.f32 %v1741, 0.5
        %v1758 = vmul.f32 %v1742, 0.5
        %v1759 = vmul.f32 %v1743, 0.5
        %v1760 = vmul.f32 %v1744, 0.5
        %v1761 = vmul.f32 %v1745, 0.5
        %v1762 = vmul.f32 %v1746, 0.5
        %v1763 = vmul.f32 %v1747, 0.5
        %v1764 = vmul.f32 %v1732, 0.70710677
        %v1765 = vmul.f32 %v1733, 0.70710677
        %v1766 = vmul.f32 %v1734, 0.70710677
        %v1767 = vmul.f32 %v1735, 0.70710677
        %v1768 = vmul.f32 %v1736, 0.70710677
        %v1769 = vmul.f32 %v1737, 0.70710677
        %v1770 = vmul.f32 %v1738, 0.70710677
        %v1771 = vmul.f32 %v1739, 0.70710677
        %v1772 = vmul.f32 %v1740, 0.70710677
        %v1773 = vmul.f32 %v1741, 0.70710677
        %v1774 = vmul.f32 %v1742, 0.70710677
        %v1775 = vmul.f32 %v1743, 0.70710677
        %v1776 = vmul.f32 %v1744, 0.70710677
        %v1777 = vmul.f32 %v1745, 0.70710677
        %v1778 = vmul.f32 %v1746, 0.70710677
        %v1779 = vmul.f32 %v1747, 0.70710677
        %vm1780 = vcmp.ge.f32.partialorder %v1764, 0.0
        %vm1781 = vcmp.ge.f32.partialorder %v1765, 0.0
        %vm1782 = vcmp.ge.f32.partialorder %v1766, 0.0
        %vm1783 = vcmp.ge.f32.partialorder %v1767, 0.0
        %vm1784 = vcmp.ge.f32.partialorder %v1768, 0.0
        %vm1785 = vcmp.ge.f32.partialorder %v1769, 0.0
        %vm1786 = vcmp.ge.f32.partialorder %v1770, 0.0
        %vm1787 = vcmp.ge.f32.partialorder %v1771, 0.0
        %vm1788 = vcmp.ge.f32.partialorder %v1772, 0.0
        %vm1789 = vcmp.ge.f32.partialorder %v1773, 0.0
        %vm1790 = vcmp.ge.f32.partialorder %v1774, 0.0
        %vm1791 = vcmp.ge.f32.partialorder %v1775, 0.0
        %vm1792 = vcmp.ge.f32.partialorder %v1776, 0.0
        %vm1793 = vcmp.ge.f32.partialorder %v1777, 0.0
        %vm1794 = vcmp.ge.f32.partialorder %v1778, 0.0
        %vm1795 = vcmp.ge.f32.partialorder %v1779, 0.0
        %v1796 = vsel %vm1780, 1.0, -1.0
        %v1797 = vsel %vm1781, 1.0, -1.0
        %v1798 = vsel %vm1782, 1.0, -1.0
        %v1799 = vsel %vm1783, 1.0, -1.0
        %v1800 = vsel %vm1784, 1.0, -1.0
        %v1801 = vsel %vm1785, 1.0, -1.0
        %v1802 = vsel %vm1786, 1.0, -1.0
        %v1803 = vsel %vm1787, 1.0, -1.0
        %v1804 = vsel %vm1788, 1.0, -1.0
        %v1805 = vsel %vm1789, 1.0, -1.0
        %v1806 = vsel %vm1790, 1.0, -1.0
        %v1807 = vsel %vm1791, 1.0, -1.0
        %v1808 = vsel %vm1792, 1.0, -1.0
        %v1809 = vsel %vm1793, 1.0, -1.0
        %v1810 = vsel %vm1794, 1.0, -1.0
        %v1811 = vsel %vm1795, 1.0, -1.0
        %v1812 = vand.u32 2147483647, %v1764
        %v1813 = vand.u32 2147483647, %v1765
        %v1814 = vand.u32 2147483647, %v1766
        %v1815 = vand.u32 2147483647, %v1767
        %v1816 = vand.u32 2147483647, %v1768
        %v1817 = vand.u32 2147483647, %v1769
        %v1818 = vand.u32 2147483647, %v1770
        %v1819 = vand.u32 2147483647, %v1771
        %v1820 = vand.u32 2147483647, %v1772
        %v1821 = vand.u32 2147483647, %v1773
        %v1822 = vand.u32 2147483647, %v1774
        %v1823 = vand.u32 2147483647, %v1775
        %v1824 = vand.u32 2147483647, %v1776
        %v1825 = vand.u32 2147483647, %v1777
        %v1826 = vand.u32 2147483647, %v1778
        %v1827 = vand.u32 2147483647, %v1779
        %v1828 = vmul.f32 %v1812, 0.3275911
        %v1829 = vmul.f32 %v1813, 0.3275911
        %v1830 = vmul.f32 %v1814, 0.3275911
        %v1831 = vmul.f32 %v1815, 0.3275911
        %v1832 = vmul.f32 %v1816, 0.3275911
        %v1833 = vmul.f32 %v1817, 0.3275911
        %v1834 = vmul.f32 %v1818, 0.3275911
        %v1835 = vmul.f32 %v1819, 0.3275911
        %v1836 = vmul.f32 %v1820, 0.3275911
        %v1837 = vmul.f32 %v1821, 0.3275911
        %v1838 = vmul.f32 %v1822, 0.3275911
        %v1839 = vmul.f32 %v1823, 0.3275911
        %v1840 = vmul.f32 %v1824, 0.3275911
        %v1841 = vmul.f32 %v1825, 0.3275911
        %v1842 = vmul.f32 %v1826, 0.3275911
        %v1843 = vmul.f32 %v1827, 0.3275911
        %v1844 = vadd.f32 %v1828, 1.0
        %v1845 = vadd.f32 %v1829, 1.0
        %v1846 = vadd.f32 %v1830, 1.0
        %v1847 = vadd.f32 %v1831, 1.0
        %v1848 = vadd.f32 %v1832, 1.0
        %v1849 = vadd.f32 %v1833, 1.0
        %v1850 = vadd.f32 %v1834, 1.0
        %v1851 = vadd.f32 %v1835, 1.0
        %v1852 = vadd.f32 %v1836, 1.0
        %v1853 = vadd.f32 %v1837, 1.0
        %v1854 = vadd.f32 %v1838, 1.0
        %v1855 = vadd.f32 %v1839, 1.0
        %v1856 = vadd.f32 %v1840, 1.0
        %v1857 = vadd.f32 %v1841, 1.0
        %v1858 = vadd.f32 %v1842, 1.0
        %v1859 = vadd.f32 %v1843, 1.0
        %v1860 = vrcp.pop %v1844
        %v1861 = vmul.f32 1.0, %v1860
        %v1862 = vrcp.pop %v1845
        %v1863 = vmul.f32 1.0, %v1862
        %v1864 = vrcp.pop %v1846
        %v1865 = vmul.f32 1.0, %v1864
        %v1866 = vrcp.pop %v1847
        %v1867 = vmul.f32 1.0, %v1866
        %v1868 = vrcp.pop %v1848
        %v1869 = vmul.f32 1.0, %v1868
        %v1870 = vrcp.pop %v1849
        %v1871 = vmul.f32 1.0, %v1870
        %v1872 = vrcp.pop %v1850
        %v1873 = vmul.f32 1.0, %v1872
        %v1874 = vrcp.pop %v1851
        %v1875 = vmul.f32 1.0, %v1874
        %v1876 = vrcp.pop %v1852
        %v1877 = vmul.f32 1.0, %v1876
        %v1878 = vrcp.pop %v1853
        %v1879 = vmul.f32 1.0, %v1878
        %v1880 = vrcp.pop %v1854
        %v1881 = vmul.f32 1.0, %v1880
        %v1882 = vrcp.pop %v1855
        %v1883 = vmul.f32 1.0, %v1882
        %v1884 = vrcp.pop %v1856
        %v1885 = vmul.f32 1.0, %v1884
        %v1886 = vrcp.pop %v1857
        %v1887 = vmul.f32 1.0, %v1886
        %v1888 = vrcp.pop %v1858
        %v1889 = vmul.f32 1.0, %v1888
        %v1890 = vrcp.pop %v1859
        %v1891 = vmul.f32 1.0, %v1890
        %v1892 = vmul.f32 %v1861, 1.0614054
        %v1893 = vmul.f32 %v1863, 1.0614054
        %v1894 = vmul.f32 %v1865, 1.0614054
        %v1895 = vmul.f32 %v1867, 1.0614054
        %v1896 = vmul.f32 %v1869, 1.0614054
        %v1897 = vmul.f32 %v1871, 1.0614054
        %v1898 = vmul.f32 %v1873, 1.0614054
        %v1899 = vmul.f32 %v1875, 1.0614054
        %v1900 = vmul.f32 %v1877, 1.0614054
        %v1901 = vmul.f32 %v1879, 1.0614054
        %v1902 = vmul.f32 %v1881, 1.0614054
        %v1903 = vmul.f32 %v1883, 1.0614054
        %v1904 = vmul.f32 %v1885, 1.0614054
        %v1905 = vmul.f32 %v1887, 1.0614054
        %v1906 = vmul.f32 %v1889, 1.0614054
        %v1907 = vmul.f32 %v1891, 1.0614054
        %v1908 = vadd.f32 %v1892, -1.4531521
        %v1909 = vadd.f32 %v1893, -1.4531521
        %v1910 = vadd.f32 %v1894, -1.4531521
        %v1911 = vadd.f32 %v1895, -1.4531521
        %v1912 = vadd.f32 %v1896, -1.4531521
        %v1913 = vadd.f32 %v1897, -1.4531521
        %v1914 = vadd.f32 %v1898, -1.4531521
        %v1915 = vadd.f32 %v1899, -1.4531521
        %v1916 = vadd.f32 %v1900, -1.4531521
        %v1917 = vadd.f32 %v1901, -1.4531521
        %v1918 = vadd.f32 %v1902, -1.4531521
        %v1919 = vadd.f32 %v1903, -1.4531521
        %v1920 = vadd.f32 %v1904, -1.4531521
        %v1921 = vadd.f32 %v1905, -1.4531521
        %v1922 = vadd.f32 %v1906, -1.4531521
        %v1923 = vadd.f32 %v1907, -1.4531521
        %v1924 = vmul.f32 %v1908, %v1861
        %v1925 = vmul.f32 %v1909, %v1863
        %v1926 = vmul.f32 %v1910, %v1865
        %v1927 = vmul.f32 %v1911, %v1867
        %v1928 = vmul.f32 %v1912, %v1869
        %v1929 = vmul.f32 %v1913, %v1871
        %v1930 = vmul.f32 %v1914, %v1873
        %v1931 = vmul.f32 %v1915, %v1875
        %v1932 = vmul.f32 %v1916, %v1877
        %v1933 = vmul.f32 %v1917, %v1879
        %v1934 = vmul.f32 %v1918, %v1881
        %v1935 = vmul.f32 %v1919, %v1883
        %v1936 = vmul.f32 %v1920, %v1885
        %v1937 = vmul.f32 %v1921, %v1887
        %v1938 = vmul.f32 %v1922, %v1889
        %v1939 = vmul.f32 %v1923, %v1891
        %v1940 = vadd.f32 %v1924, 1.4214138
        %v1941 = vadd.f32 %v1925, 1.4214138
        %v1942 = vadd.f32 %v1926, 1.4214138
        %v1943 = vadd.f32 %v1927, 1.4214138
        %v1944 = vadd.f32 %v1928, 1.4214138
        %v1945 = vadd.f32 %v1929, 1.4214138
        %v1946 = vadd.f32 %v1930, 1.4214138
        %v1947 = vadd.f32 %v1931, 1.4214138
        %v1948 = vadd.f32 %v1932, 1.4214138
        %v1949 = vadd.f32 %v1933, 1.4214138
        %v1950 = vadd.f32 %v1934, 1.4214138
        %v1951 = vadd.f32 %v1935, 1.4214138
        %v1952 = vadd.f32 %v1936, 1.4214138
        %v1953 = vadd.f32 %v1937, 1.4214138
        %v1954 = vadd.f32 %v1938, 1.4214138
        %v1955 = vadd.f32 %v1939, 1.4214138
        %v1956 = vmul.f32 %v1940, %v1861
        %v1957 = vmul.f32 %v1941, %v1863
        %v1958 = vmul.f32 %v1942, %v1865
        %v1959 = vmul.f32 %v1943, %v1867
        %v1960 = vmul.f32 %v1944, %v1869
        %v1961 = vmul.f32 %v1945, %v1871
        %v1962 = vmul.f32 %v1946, %v1873
        %v1963 = vmul.f32 %v1947, %v1875
        %v1964 = vmul.f32 %v1948, %v1877
        %v1965 = vmul.f32 %v1949, %v1879
        %v1966 = vmul.f32 %v1950, %v1881
        %v1967 = vmul.f32 %v1951, %v1883
        %v1968 = vmul.f32 %v1952, %v1885
        %v1969 = vmul.f32 %v1953, %v1887
        %v1970 = vmul.f32 %v1954, %v1889
        %v1971 = vmul.f32 %v1955, %v1891
        %v1972 = vadd.f32 %v1956, -0.28449672
        %v1973 = vadd.f32 %v1957, -0.28449672
        %v1974 = vadd.f32 %v1958, -0.28449672
        %v1975 = vadd.f32 %v1959, -0.28449672
        %v1976 = vadd.f32 %v1960, -0.28449672
        %v1977 = vadd.f32 %v1961, -0.28449672
        %v1978 = vadd.f32 %v1962, -0.28449672
        %v1979 = vadd.f32 %v1963, -0.28449672
        %v1980 = vadd.f32 %v1964, -0.28449672
        %v1981 = vadd.f32 %v1965, -0.28449672
        %v1982 = vadd.f32 %v1966, -0.28449672
        %v1983 = vadd.f32 %v1967, -0.28449672
        %v1984 = vadd.f32 %v1968, -0.28449672
        %v1985 = vadd.f32 %v1969, -0.28449672
        %v1986 = vadd.f32 %v1970, -0.28449672
        %v1987 = vadd.f32 %v1971, -0.28449672
        %v1988 = vmul.f32 %v1972, %v1861
        %v1989 = vmul.f32 %v1973, %v1863
        %v1990 = vmul.f32 %v1974, %v1865
        %v1991 = vmul.f32 %v1975, %v1867
        %v1992 = vmul.f32 %v1976, %v1869
        %v1993 = vmul.f32 %v1977, %v1871
        %v1994 = vmul.f32 %v1978, %v1873
        %v1995 = vmul.f32 %v1979, %v1875
        %v1996 = vmul.f32 %v1980, %v1877
        %v1997 = vmul.f32 %v1981, %v1879
        %v1998 = vmul.f32 %v1982, %v1881
        %v1999 = vmul.f32 %v1983, %v1883
        %v2000 = vmul.f32 %v1984, %v1885
        %v2001 = vmul.f32 %v1985, %v1887
        %v2002 = vmul.f32 %v1986, %v1889
        %v2003 = vmul.f32 %v1987, %v1891
        %v2004 = vadd.f32 %v1988, 0.2548296
        %v2005 = vadd.f32 %v1989, 0.2548296
        %v2006 = vadd.f32 %v1990, 0.2548296
        %v2007 = vadd.f32 %v1991, 0.2548296
        %v2008 = vadd.f32 %v1992, 0.2548296
        %v2009 = vadd.f32 %v1993, 0.2548296
        %v2010 = vadd.f32 %v1994, 0.2548296
        %v2011 = vadd.f32 %v1995, 0.2548296
        %v2012 = vadd.f32 %v1996, 0.2548296
        %v2013 = vadd.f32 %v1997, 0.2548296
        %v2014 = vadd.f32 %v1998, 0.2548296
        %v2015 = vadd.f32 %v1999, 0.2548296
        %v2016 = vadd.f32 %v2000, 0.2548296
        %v2017 = vadd.f32 %v2001, 0.2548296
        %v2018 = vadd.f32 %v2002, 0.2548296
        %v2019 = vadd.f32 %v2003, 0.2548296
        %v2020 = vmul.f32 %v2004, %v1861
        %v2021 = vmul.f32 %v2005, %v1863
        %v2022 = vmul.f32 %v2006, %v1865
        %v2023 = vmul.f32 %v2007, %v1867
        %v2024 = vmul.f32 %v2008, %v1869
        %v2025 = vmul.f32 %v2009, %v1871
        %v2026 = vmul.f32 %v2010, %v1873
        %v2027 = vmul.f32 %v2011, %v1875
        %v2028 = vmul.f32 %v2012, %v1877
        %v2029 = vmul.f32 %v2013, %v1879
        %v2030 = vmul.f32 %v2014, %v1881
        %v2031 = vmul.f32 %v2015, %v1883
        %v2032 = vmul.f32 %v2016, %v1885
        %v2033 = vmul.f32 %v2017, %v1887
        %v2034 = vmul.f32 %v2018, %v1889
        %v2035 = vmul.f32 %v2019, %v1891
        %v2036 = vsub.f32 0.0, %v1812
        %v2037 = vsub.f32 0.0, %v1813
        %v2038 = vsub.f32 0.0, %v1814
        %v2039 = vsub.f32 0.0, %v1815
        %v2040 = vsub.f32 0.0, %v1816
        %v2041 = vsub.f32 0.0, %v1817
        %v2042 = vsub.f32 0.0, %v1818
        %v2043 = vsub.f32 0.0, %v1819
        %v2044 = vsub.f32 0.0, %v1820
        %v2045 = vsub.f32 0.0, %v1821
        %v2046 = vsub.f32 0.0, %v1822
        %v2047 = vsub.f32 0.0, %v1823
        %v2048 = vsub.f32 0.0, %v1824
        %v2049 = vsub.f32 0.0, %v1825
        %v2050 = vsub.f32 0.0, %v1826
        %v2051 = vsub.f32 0.0, %v1827
        %v2052 = vmul.f32 %v2036, %v1812
        %v2053 = vmul.f32 %v2037, %v1813
        %v2054 = vmul.f32 %v2038, %v1814
        %v2055 = vmul.f32 %v2039, %v1815
        %v2056 = vmul.f32 %v2040, %v1816
        %v2057 = vmul.f32 %v2041, %v1817
        %v2058 = vmul.f32 %v2042, %v1818
        %v2059 = vmul.f32 %v2043, %v1819
        %v2060 = vmul.f32 %v2044, %v1820
        %v2061 = vmul.f32 %v2045, %v1821
        %v2062 = vmul.f32 %v2046, %v1822
        %v2063 = vmul.f32 %v2047, %v1823
        %v2064 = vmul.f32 %v2048, %v1824
        %v2065 = vmul.f32 %v2049, %v1825
        %v2066 = vmul.f32 %v2050, %v1826
        %v2067 = vmul.f32 %v2051, %v1827
        %v2068 = vmul.f32 %v2052, 1.442695
        %v2069 = vpow.pop %v2068
        %v2070 = vmul.f32 %v2053, 1.442695
        %v2071 = vpow.pop %v2070
        %v2072 = vmul.f32 %v2054, 1.442695
        %v2073 = vpow.pop %v2072
        %v2074 = vmul.f32 %v2055, 1.442695
        %v2075 = vpow.pop %v2074
        %v2076 = vmul.f32 %v2056, 1.442695
        %v2077 = vpow.pop %v2076
        %v2078 = vmul.f32 %v2057, 1.442695
        %v2079 = vpow.pop %v2078
        %v2080 = vmul.f32 %v2058, 1.442695
        %v2081 = vpow.pop %v2080
        %v2082 = vmul.f32 %v2059, 1.442695
        %v2083 = vpow.pop %v2082
        %v2084 = vmul.f32 %v2060, 1.442695
        %v2085 = vpow.pop %v2084
        %v2086 = vmul.f32 %v2061, 1.442695
        %v2087 = vpow.pop %v2086
        %v2088 = vmul.f32 %v2062, 1.442695
        %v2089 = vpow.pop %v2088
        %v2090 = vmul.f32 %v2063, 1.442695
        %v2091 = vpow.pop %v2090
        %v2092 = vmul.f32 %v2064, 1.442695
        %v2093 = vpow.pop %v2092
        %v2094 = vmul.f32 %v2065, 1.442695
        %v2095 = vpow.pop %v2094
        %v2096 = vmul.f32 %v2066, 1.442695
        %v2097 = vpow.pop %v2096
        %v2098 = vmul.f32 %v2067, 1.442695
        %v2099 = vpow.pop %v2098
        %v2100 = vmul.f32 %v2020, %v2069
        %v2101 = vmul.f32 %v2021, %v2071
        %v2102 = vmul.f32 %v2022, %v2073
        %v2103 = vmul.f32 %v2023, %v2075
        %v2104 = vmul.f32 %v2024, %v2077
        %v2105 = vmul.f32 %v2025, %v2079
        %v2106 = vmul.f32 %v2026, %v2081
        %v2107 = vmul.f32 %v2027, %v2083
        %v2108 = vmul.f32 %v2028, %v2085
        %v2109 = vmul.f32 %v2029, %v2087
        %v2110 = vmul.f32 %v2030, %v2089
        %v2111 = vmul.f32 %v2031, %v2091
        %v2112 = vmul.f32 %v2032, %v2093
        %v2113 = vmul.f32 %v2033, %v2095
        %v2114 = vmul.f32 %v2034, %v2097
        %v2115 = vmul.f32 %v2035, %v2099
        %v2116 = vsub.f32 1.0, %v2100
        %v2117 = vsub.f32 1.0, %v2101
        %v2118 = vsub.f32 1.0, %v2102
        %v2119 = vsub.f32 1.0, %v2103
        %v2120 = vsub.f32 1.0, %v2104
        %v2121 = vsub.f32 1.0, %v2105
        %v2122 = vsub.f32 1.0, %v2106
        %v2123 = vsub.f32 1.0, %v2107
        %v2124 = vsub.f32 1.0, %v2108
        %v2125 = vsub.f32 1.0, %v2109
        %v2126 = vsub.f32 1.0, %v2110
        %v2127 = vsub.f32 1.0, %v2111
        %v2128 = vsub.f32 1.0, %v2112
        %v2129 = vsub.f32 1.0, %v2113
        %v2130 = vsub.f32 1.0, %v2114
        %v2131 = vsub.f32 1.0, %v2115
        %v2132 = vmul.f32 %v1796, %v2116
        %v2133 = vmul.f32 %v1797, %v2117
        %v2134 = vmul.f32 %v1798, %v2118
        %v2135 = vmul.f32 %v1799, %v2119
        %v2136 = vmul.f32 %v1800, %v2120
        %v2137 = vmul.f32 %v1801, %v2121
        %v2138 = vmul.f32 %v1802, %v2122
        %v2139 = vmul.f32 %v1803, %v2123
        %v2140 = vmul.f32 %v1804, %v2124
        %v2141 = vmul.f32 %v1805, %v2125
        %v2142 = vmul.f32 %v1806, %v2126
        %v2143 = vmul.f32 %v1807, %v2127
        %v2144 = vmul.f32 %v1808, %v2128
        %v2145 = vmul.f32 %v1809, %v2129
        %v2146 = vmul.f32 %v1810, %v2130
        %v2147 = vmul.f32 %v1811, %v2131
        %v2148 = vadd.f32 %v2132, 1.0
        %v2149 = vadd.f32 %v2133, 1.0
        %v2150 = vadd.f32 %v2134, 1.0
        %v2151 = vadd.f32 %v2135, 1.0
        %v2152 = vadd.f32 %v2136, 1.0
        %v2153 = vadd.f32 %v2137, 1.0
        %v2154 = vadd.f32 %v2138, 1.0
        %v2155 = vadd.f32 %v2139, 1.0
        %v2156 = vadd.f32 %v2140, 1.0
        %v2157 = vadd.f32 %v2141, 1.0
        %v2158 = vadd.f32 %v2142, 1.0
        %v2159 = vadd.f32 %v2143, 1.0
        %v2160 = vadd.f32 %v2144, 1.0
        %v2161 = vadd.f32 %v2145, 1.0
        %v2162 = vadd.f32 %v2146, 1.0
        %v2163 = vadd.f32 %v2147, 1.0
        %v2164 = vmul.f32 %v1748, %v2148
        %v2165 = vmul.f32 %v1749, %v2149
        %v2166 = vmul.f32 %v1750, %v2150
        %v2167 = vmul.f32 %v1751, %v2151
        %v2168 = vmul.f32 %v1752, %v2152
        %v2169 = vmul.f32 %v1753, %v2153
        %v2170 = vmul.f32 %v1754, %v2154
        %v2171 = vmul.f32 %v1755, %v2155
        %v2172 = vmul.f32 %v1756, %v2156
        %v2173 = vmul.f32 %v1757, %v2157
        %v2174 = vmul.f32 %v1758, %v2158
        %v2175 = vmul.f32 %v1759, %v2159
        %v2176 = vmul.f32 %v1760, %v2160
        %v2177 = vmul.f32 %v1761, %v2161
        %v2178 = vmul.f32 %v1762, %v2162
        %v2179 = vmul.f32 %v1763, %v2163
        %v2180 = vpack.c.bf16 %v2166, %v2164
        %v2181 = vpack.c.bf16 %v2167, %v2165
        %v2182 = vpack.c.bf16 %v2170, %v2168
        %v2183 = vpack.c.bf16 %v2171, %v2169
        %v2184 = vpack.c.bf16 %v2174, %v2172
        %v2185 = vpack.c.bf16 %v2175, %v2173
        %v2186 = vpack.c.bf16 %v2178, %v2176
        %v2187 = vpack.c.bf16 %v2179, %v2177
        %v2188 = vld [vmem:[#allocation9 + $0x18] sm:$0xf]
        %v2189 = vld [vmem:[#allocation9 + $0x1c] sm:$0xf]
        %v2190 = vld [vmem:[#allocation9 + $0x20] sm:$0xf]
        %v2191 = vld [vmem:[#allocation9 + $0x24] sm:$0xf]
        %v2192 = vld [vmem:[#allocation9 + $0x28] sm:$0xf]
        %v2193 = vld [vmem:[#allocation9 + $0x2c] sm:$0xf]
        %v2200 = vunpack.c.l.b16 %v2188
        %v2201 = vunpack.c.l.b16 %v2189
        %v2202 = vunpack.c.l.b16 %v2190
        %v2203 = vunpack.c.l.b16 %v2191
        %v2204 = vunpack.c.l.b16 %v2192
        %v2205 = vunpack.c.l.b16 %v2193
        %v2206 = vpack.c.b16 %v2201, %v2200
        %v2207 = vpack.c.b16 %v2203, %v2202
        %v2208 = vpack.c.b16 %v2205, %v2204
        %v2210 = vsel %vm430, %v2206, 0
        %v2213 = vsel %vm430, %v2207, 0
        %v2216 = vsel %vm430, %v2208, 0
        %2218 = vmatprep.subr.bf16.mxu0 %v2181
        %2219 = vmatpush1.bf16.msra.mxu0 %v2180
        %2220 = vmatprep.subr.bf16.mxu0 %v2183
        %2221 = vmatpush1.bf16.msra.mxu0 %v2182
        %2222 = vmatprep.subr.bf16.mxu0 %v2185
        %2223 = vmatpush1.bf16.msra.mxu0 %v2184
        %2224 = vmatprep.subr.bf16.mxu0 %v2187
        %2225 = vmatpush1.bf16.msra.mxu0 %v2186
        %2226 = vmatprep.subr.bf16.mxu0 0
        %2227 = vmatpush1.bf16.msra.mxu0 0
        %2228 = vmatprep.subr.bf16.mxu0 0
        %2229 = vmatpush1.bf16.msra.mxu0 0
        %2230 = vmatprep.subr.bf16.mxu0 0
        %2231 = vmatpush1.bf16.msra.mxu0 0
        %2232 = vmatprep.subr.bf16.mxu0 0
        %2233 = vmatpush1.bf16.msra.mxu0 0
        %2234 = vmatprep.subr.bf16.mxu0 0
        %2235 = vmatpush1.bf16.msra.mxu0 0
        %2236 = vmatprep.subr.bf16.mxu0 0
        %2237 = vmatpush1.bf16.msra.mxu0 0
        %2238 = vmatprep.subr.bf16.mxu0 0
        %2239 = vmatpush1.bf16.msra.mxu0 0
        %2240 = vmatprep.subr.bf16.mxu0 0
        %2241 = vmatpush1.bf16.msra.mxu0 0
        %2242 = vmatprep.subr.bf16.mxu0 0
        %2243 = vmatpush1.bf16.msra.mxu0 0
        %2244 = vmatprep.subr.bf16.mxu0 0
        %2245 = vmatpush1.bf16.msra.mxu0 0
        %2246 = vmatprep.subr.bf16.mxu0 0
        %2247 = vmatpush1.bf16.msra.mxu0 0
        %2248 = vmatprep.subr.bf16.mxu0 0
        %2249 = vmatpush1.bf16.msra.mxu0 0
        %2250 = vmatprep.mubr.bf16.mxu0 0
        %2251 = vmatmul.mubr.bf16.gmra.mrb[0].mxu0 %v2210
        %v2252 = vpop.f32.mrb[0].mxu0
        %v2253 = vadd.f32 0.0, %v2252
        %v2254 = vpop.f32.mrb[0].mxu0
        %v2255 = vadd.f32 0.0, %v2254
        %v2256 = vpop.f32.mrb[0].mxu0
        %v2257 = vadd.f32 0.0, %v2256
        %v2258 = vpop.f32.mrb[0].mxu0
        %v2259 = vadd.f32 0.0, %v2258
        %2260 = vmatprep.mubr.bf16.mxu0 0
        %2261 = vmatmul.mubr.bf16.gmra.mrb[0].mxu0 %v2213
        %v2262 = vpop.f32.mrb[0].mxu0
        %v2263 = vadd.f32 0.0, %v2262
        %v2264 = vpop.f32.mrb[0].mxu0
        %v2265 = vadd.f32 0.0, %v2264
        %v2266 = vpop.f32.mrb[0].mxu0
        %v2267 = vadd.f32 0.0, %v2266
        %v2268 = vpop.f32.mrb[0].mxu0
        %v2269 = vadd.f32 0.0, %v2268
        %2270 = vmatprep.mubr.bf16.mxu0 0
        %2271 = vmatmul.mubr.bf16.gmra.mrb[0].mxu0 %v2216
        %v2272 = vpop.f32.mrb[0].mxu0
        %v2273 = vadd.f32 0.0, %v2272
        %v2274 = vpop.f32.mrb[0].mxu0
        %v2275 = vadd.f32 0.0, %v2274
        %v2276 = vpop.f32.mrb[0].mxu0
        %v2277 = vadd.f32 0.0, %v2276
        %v2278 = vpop.f32.mrb[0].mxu0
        %v2279 = vadd.f32 0.0, %v2278
        %2280 = vdwg.mxu0
        %v2281 = vadd.f32 %v1306, %v2253
        %v2282 = vadd.f32 %v1307, %v2255
        %v2283 = vadd.f32 %v1308, %v2257
        %v2284 = vadd.f32 %v1309, %v2259
        %v2285 = vadd.f32 %v1310, %v2263
        %v2286 = vadd.f32 %v1311, %v2265
        %v2287 = vadd.f32 %v1312, %v2267
        %v2288 = vadd.f32 %v1313, %v2269
        %v2289 = vadd.f32 %v1314, %v2273
        %v2290 = vadd.f32 %v1315, %v2275
        %v2291 = vadd.f32 %v1316, %v2277
        %v2292 = vadd.f32 %v1317, %v2279
        %v2293 = vld [vmem:[#allocation4 + $0x40] sm:$0xf]
        %v2294 = vld [vmem:[#allocation4 + $0x44] sm:$0xf]
        %v2295 = vld [vmem:[#allocation4 + $0x48] sm:$0xf]
        %v2296 = vld [vmem:[#allocation4 + $0x4c] sm:$0xf]
        %v2297 = vld [vmem:[#allocation4 + $0x50] sm:$0xf]
        %v2298 = vld [vmem:[#allocation4 + $0x54] sm:$0xf]
        %v2299 = vld [vmem:[#allocation4 + $0x58] sm:$0xf]
        %v2300 = vld [vmem:[#allocation4 + $0x5c] sm:$0xf]
        %v2301 = vld [vmem:[#allocation6 + $0x20] sm:$0xf]
        %v2302 = vld [vmem:[#allocation6 + $0x24] sm:$0xf]
        %v2303 = vld [vmem:[#allocation6 + $0x28] sm:$0xf]
        %v2304 = vld [vmem:[#allocation6 + $0x2c] sm:$0xf]
        %v2305 = vld [vmem:[#allocation6 + $0x30] sm:$0xf]
        %v2306 = vld [vmem:[#allocation6 + $0x34] sm:$0xf]
        %v2307 = vld [vmem:[#allocation6 + $0x38] sm:$0xf]
        %v2308 = vld [vmem:[#allocation6 + $0x3c] sm:$0xf]
        %v2317 = vunpack.c.l.b16 %v2301
        %v2318 = vunpack.c.l.b16 %v2302
        %v2319 = vunpack.c.l.b16 %v2303
        %v2320 = vunpack.c.l.b16 %v2304
        %v2321 = vunpack.c.l.b16 %v2305
        %v2322 = vunpack.c.l.b16 %v2306
        %v2323 = vunpack.c.l.b16 %v2307
        %v2324 = vunpack.c.l.b16 %v2308
        %v2325 = vpack.c.b16 %v2318, %v2317
        %v2326 = vpack.c.b16 %v2320, %v2319
        %v2327 = vpack.c.b16 %v2322, %v2321
        %v2328 = vpack.c.b16 %v2324, %v2323
        %v2330 = vsel %vm430, %v2325, 0
        %v2333 = vsel %vm430, %v2326, 0
        %v2336 = vsel %vm430, %v2327, 0
        %v2339 = vsel %vm430, %v2328, 0
        %2341 = vmatprep.subr.bf16.mxu0 %v2181
        %2342 = vmatpush1.bf16.msra.mxu0 %v2180
        %2343 = vmatprep.subr.bf16.mxu0 %v2183
        %2344 = vmatpush1.bf16.msra.mxu0 %v2182
        %2345 = vmatprep.subr.bf16.mxu0 %v2185
        %2346 = vmatpush1.bf16.msra.mxu0 %v2184
        %2347 = vmatprep.subr.bf16.mxu0 %v2187
        %2348 = vmatpush1.bf16.msra.mxu0 %v2186
        %2349 = vmatprep.subr.bf16.mxu0 0
        %2350 = vmatpush1.bf16.msra.mxu0 0
        %2351 = vmatprep.subr.bf16.mxu0 0
        %2352 = vmatpush1.bf16.msra.mxu0 0
        %2353 = vmatprep.subr.bf16.mxu0 0
        %2354 = vmatpush1.bf16.msra.mxu0 0
        %2355 = vmatprep.subr.bf16.mxu0 0
        %2356 = vmatpush1.bf16.msra.mxu0 0
        %2357 = vmatprep.subr.bf16.mxu0 0
        %2358 = vmatpush1.bf16.msra.mxu0 0
        %2359 = vmatprep.subr.bf16.mxu0 0
        %2360 = vmatpush1.bf16.msra.mxu0 0
        %2361 = vmatprep.subr.bf16.mxu0 0
        %2362 = vmatpush1.bf16.msra.mxu0 0
        %2363 = vmatprep.subr.bf16.mxu0 0
        %2364 = vmatpush1.bf16.msra.mxu0 0
        %2365 = vmatprep.subr.bf16.mxu0 0
        %2366 = vmatpush1.bf16.msra.mxu0 0
        %2367 = vmatprep.subr.bf16.mxu0 0
        %2368 = vmatpush1.bf16.msra.mxu0 0
        %2369 = vmatprep.subr.bf16.mxu0 0
        %2370 = vmatpush1.bf16.msra.mxu0 0
        %2371 = vmatprep.subr.bf16.mxu0 0
        %2372 = vmatpush1.bf16.msra.mxu0 0
        %2373 = vmatprep.mubr.bf16.mxu0 0
        %2374 = vmatmul.mubr.bf16.gmra.mrb[0].mxu0 %v2330
        %v2375 = vpop.f32.mrb[0].mxu0
        %v2376 = vadd.f32 0.0, %v2375
        %v2377 = vpop.f32.mrb[0].mxu0
        %v2378 = vadd.f32 0.0, %v2377
        %v2379 = vpop.f32.mrb[0].mxu0
        %v2380 = vadd.f32 0.0, %v2379
        %v2381 = vpop.f32.mrb[0].mxu0
        %v2382 = vadd.f32 0.0, %v2381
        %2383 = vmatprep.mubr.bf16.mxu0 0
        %2384 = vmatmul.mubr.bf16.gmra.mrb[0].mxu0 %v2333
        %v2385 = vpop.f32.mrb[0].mxu0
        %v2386 = vadd.f32 0.0, %v2385
        %v2387 = vpop.f32.mrb[0].mxu0
        %v2388 = vadd.f32 0.0, %v2387
        %v2389 = vpop.f32.mrb[0].mxu0
        %v2390 = vadd.f32 0.0, %v2389
        %v2391 = vpop.f32.mrb[0].mxu0
        %v2392 = vadd.f32 0.0, %v2391
        %2393 = vmatprep.mubr.bf16.mxu0 0
        %2394 = vmatmul.mubr.bf16.gmra.mrb[0].mxu0 %v2336
        %v2395 = vpop.f32.mrb[0].mxu0
        %v2396 = vadd.f32 0.0, %v2395
        %v2397 = vpop.f32.mrb[0].mxu0
        %v2398 = vadd.f32 0.0, %v2397
        %v2399 = vpop.f32.mrb[0].mxu0
        %v2400 = vadd.f32 0.0, %v2399
        %v2401 = vpop.f32.mrb[0].mxu0
        %v2402 = vadd.f32 0.0, %v2401
        %2403 = vmatprep.mubr.bf16.mxu0 0
        %2404 = vmatmul.mubr.bf16.gmra.mrb[0].mxu0 %v2339
        %v2405 = vpop.f32.mrb[0].mxu0
        %v2406 = vadd.f32 0.0, %v2405
        %v2407 = vpop.f32.mrb[0].mxu0
        %v2408 = vadd.f32 0.0, %v2407
        %v2409 = vpop.f32.mrb[0].mxu0
        %v2410 = vadd.f32 0.0, %v2409
        %v2411 = vpop.f32.mrb[0].mxu0
        %v2412 = vadd.f32 0.0, %v2411
        %2413 = vdwg.mxu0
        %v2422 = vunpack.c.l.b16 %v2293
        %v2423 = vunpack.c.l.b16 %v2294
        %v2424 = vunpack.c.l.b16 %v2295
        %v2425 = vunpack.c.l.b16 %v2296
        %v2426 = vunpack.c.l.b16 %v2297
        %v2427 = vunpack.c.l.b16 %v2298
        %v2428 = vunpack.c.l.b16 %v2299
        %v2429 = vunpack.c.l.b16 %v2300
        %v2430 = vpack.c.b16 %v2423, %v2422
        %v2431 = vpack.c.b16 %v2425, %v2424
        %v2432 = vpack.c.b16 %v2427, %v2426
        %v2433 = vpack.c.b16 %v2429, %v2428
        %v2435 = vsel %vm430, %v2430, 0
        %v2438 = vsel %vm430, %v2431, 0
        %v2441 = vsel %vm430, %v2432, 0
        %v2444 = vsel %vm430, %v2433, 0
        %2446 = vmatprep.subr.bf16.mxu0 %v395
        %2447 = vmatpush1.bf16.msra.mxu0 %v394
        %2448 = vmatprep.subr.bf16.mxu0 %v397
        %2449 = vmatpush1.bf16.msra.mxu0 %v396
        %2450 = vmatprep.subr.bf16.mxu0 %v399
        %2451 = vmatpush1.bf16.msra.mxu0 %v398
        %2452 = vmatprep.subr.bf16.mxu0 %v401
        %2453 = vmatpush1.bf16.msra.mxu0 %v400
        %2454 = vmatprep.subr.bf16.mxu0 0
        %2455 = vmatpush1.bf16.msra.mxu0 0
        %2456 = vmatprep.subr.bf16.mxu0 0
        %2457 = vmatpush1.bf16.msra.mxu0 0
        %2458 = vmatprep.subr.bf16.mxu0 0
        %2459 = vmatpush1.bf16.msra.mxu0 0
        %2460 = vmatprep.subr.bf16.mxu0 0
        %2461 = vmatpush1.bf16.msra.mxu0 0
        %2462 = vmatprep.subr.bf16.mxu0 0
        %2463 = vmatpush1.bf16.msra.mxu0 0
        %2464 = vmatprep.subr.bf16.mxu0 0
        %2465 = vmatpush1.bf16.msra.mxu0 0
        %2466 = vmatprep.subr.bf16.mxu0 0
        %2467 = vmatpush1.bf16.msra.mxu0 0
        %2468 = vmatprep.subr.bf16.mxu0 0
        %2469 = vmatpush1.bf16.msra.mxu0 0
        %2470 = vmatprep.subr.bf16.mxu0 0
        %2471 = vmatpush1.bf16.msra.mxu0 0
        %2472 = vmatprep.subr.bf16.mxu0 0
        %2473 = vmatpush1.bf16.msra.mxu0 0
        %2474 = vmatprep.subr.bf16.mxu0 0
        %2475 = vmatpush1.bf16.msra.mxu0 0
        %2476 = vmatprep.subr.bf16.mxu0 0
        %2477 = vmatpush1.bf16.msra.mxu0 0
        %2478 = vmatprep.mubr.bf16.mxu0 0
        %2479 = vmatmul.mubr.bf16.gmra.mrb[0].mxu0 %v2435
        %v2480 = vpop.f32.mrb[0].mxu0
        %v2481 = vadd.f32 %v2376, %v2480
        %v2482 = vpop.f32.mrb[0].mxu0
        %v2483 = vadd.f32 %v2378, %v2482
        %v2484 = vpop.f32.mrb[0].mxu0
        %v2485 = vadd.f32 %v2380, %v2484
        %v2486 = vpop.f32.mrb[0].mxu0
        %v2487 = vadd.f32 %v2382, %v2486
        %2488 = vmatprep.mubr.bf16.mxu0 0
        %2489 = vmatmul.mubr.bf16.gmra.mrb[0].mxu0 %v2438
        %v2490 = vpop.f32.mrb[0].mxu0
        %v2491 = vadd.f32 %v2386, %v2490
        %v2492 = vpop.f32.mrb[0].mxu0
        %v2493 = vadd.f32 %v2388, %v2492
        %v2494 = vpop.f32.mrb[0].mxu0
        %v2495 = vadd.f32 %v2390, %v2494
        %v2496 = vpop.f32.mrb[0].mxu0
        %v2497 = vadd.f32 %v2392, %v2496
        %2498 = vmatprep.mubr.bf16.mxu0 0
        %2499 = vmatmul.mubr.bf16.gmra.mrb[0].mxu0 %v2441
        %v2500 = vpop.f32.mrb[0].mxu0
        %v2501 = vadd.f32 %v2396, %v2500
        %v2502 = vpop.f32.mrb[0].mxu0
        %v2503 = vadd.f32 %v2398, %v2502
        %v2504 = vpop.f32.mrb[0].mxu0
        %v2505 = vadd.f32 %v2400, %v2504
        %v2506 = vpop.f32.mrb[0].mxu0
        %v2507 = vadd.f32 %v2402, %v2506
        %2508 = vmatprep.mubr.bf16.mxu0 0
        %2509 = vmatmul.mubr.bf16.gmra.mrb[0].mxu0 %v2444
        %v2510 = vpop.f32.mrb[0].mxu0
        %v2511 = vadd.f32 %v2406, %v2510
        %v2512 = vpop.f32.mrb[0].mxu0
        %v2513 = vadd.f32 %v2408, %v2512
        %v2514 = vpop.f32.mrb[0].mxu0
        %v2515 = vadd.f32 %v2410, %v2514
        %v2516 = vpop.f32.mrb[0].mxu0
        %v2517 = vadd.f32 %v2412, %v2516
        %2518 = vdwg.mxu0
        %v2519 = vadd.f32 %v2481, %v2485
        %v2520 = vadd.f32 %v2519, %v2491
        %v2521 = vadd.f32 %v2520, %v2495
        %v2522 = vadd.f32 %v2521, %v2501
        %v2523 = vadd.f32 %v2522, %v2505
        %v2524 = vadd.f32 %v2523, %v2511
        %v2525 = vadd.f32 %v2524, %v2515
        %v2526 = vrot.slane %v2525, 4
        %v2527 = vadd.f32 %v2525, %v2526
        %v2528 = vrot.slane %v2527, 2
        %v2529 = vadd.f32 %v2527, %v2528
        %v2530 = vrot.slane %v2529, 1
        %v2531 = vadd.f32 %v2529, %v2530
        %v2532 = vadd.f32 %v2483, %v2487
        %v2533 = vadd.f32 %v2532, %v2493
        %v2534 = vadd.f32 %v2533, %v2497
        %v2535 = vadd.f32 %v2534, %v2503
        %v2536 = vadd.f32 %v2535, %v2507
        %v2537 = vadd.f32 %v2536, %v2513
        %v2538 = vadd.f32 %v2537, %v2517
        %v2539 = vrot.slane %v2538, 4
        %v2540 = vadd.f32 %v2538, %v2539
        %v2541 = vrot.slane %v2540, 2
        %v2542 = vadd.f32 %v2540, %v2541
        %v2543 = vrot.slane %v2542, 1
        %v2544 = vadd.f32 %v2542, %v2543
        %v2545 = vmul.f32 %v2531, %v550
        %v2546 = vmul.f32 %v2544, %v550
        %v2547 = vsub.f32 %v2481, %v2545
        %v2548 = vsub.f32 %v2483, %v2546
        %v2549 = vsub.f32 %v2485, %v2545
        %v2550 = vsub.f32 %v2487, %v2546
        %v2551 = vsub.f32 %v2491, %v2545
        %v2552 = vsub.f32 %v2493, %v2546
        %v2553 = vsub.f32 %v2495, %v2545
        %v2554 = vsub.f32 %v2497, %v2546
        %v2555 = vsub.f32 %v2501, %v2545
        %v2556 = vsub.f32 %v2503, %v2546
        %v2557 = vsub.f32 %v2505, %v2545
        %v2558 = vsub.f32 %v2507, %v2546
        %v2559 = vsub.f32 %v2511, %v2545
        %v2560 = vsub.f32 %v2513, %v2546
        %v2561 = vsub.f32 %v2515, %v2545
        %v2562 = vsub.f32 %v2517, %v2546
        %v2563 = vmul.f32 %v2547, %v2547
        %v2564 = vmul.f32 %v2548, %v2548
        %v2565 = vmul.f32 %v2549, %v2549
        %v2566 = vmul.f32 %v2550, %v2550
        %v2567 = vmul.f32 %v2551, %v2551
        %v2568 = vmul.f32 %v2552, %v2552
        %v2569 = vmul.f32 %v2553, %v2553
        %v2570 = vmul.f32 %v2554, %v2554
        %v2571 = vmul.f32 %v2555, %v2555
        %v2572 = vmul.f32 %v2556, %v2556
        %v2573 = vmul.f32 %v2557, %v2557
        %v2574 = vmul.f32 %v2558, %v2558
        %v2575 = vmul.f32 %v2559, %v2559
        %v2576 = vmul.f32 %v2560, %v2560
        %v2577 = vmul.f32 %v2561, %v2561
        %v2578 = vmul.f32 %v2562, %v2562
        %v2579 = vadd.f32 %v2563, %v2565
        %v2580 = vadd.f32 %v2579, %v2567
        %v2581 = vadd.f32 %v2580, %v2569
        %v2582 = vadd.f32 %v2581, %v2571
        %v2583 = vadd.f32 %v2582, %v2573
        %v2584 = vadd.f32 %v2583, %v2575
        %v2585 = vadd.f32 %v2584, %v2577
        %v2586 = vrot.slane %v2585, 4
        %v2587 = vadd.f32 %v2585, %v2586
        %v2588 = vrot.slane %v2587, 2
        %v2589 = vadd.f32 %v2587, %v2588
        %v2590 = vrot.slane %v2589, 1
        %v2591 = vadd.f32 %v2589, %v2590
        %v2592 = vadd.f32 %v2564, %v2566
        %v2593 = vadd.f32 %v2592, %v2568
        %v2594 = vadd.f32 %v2593, %v2570
        %v2595 = vadd.f32 %v2594, %v2572
        %v2596 = vadd.f32 %v2595, %v2574
        %v2597 = vadd.f32 %v2596, %v2576
        %v2598 = vadd.f32 %v2597, %v2578
        %v2599 = vrot.slane %v2598, 4
        %v2600 = vadd.f32 %v2598, %v2599
        %v2601 = vrot.slane %v2600, 2
        %v2602 = vadd.f32 %v2600, %v2601
        %v2603 = vrot.slane %v2602, 1
        %v2604 = vadd.f32 %v2602, %v2603
        %v2605 = vmul.f32 %v2591, %v550
        %v2606 = vmul.f32 %v2604, %v550
        %v2607 = vadd.f32 %v2605, 1e-05
        %v2608 = vadd.f32 %v2606, 1e-05
        %v2609 = vrsqrt.pop %v2607
        %v2610 = vrsqrt.pop %v2608
        %v2611 = vmul.f32 %v2547, %v2609
        %v2612 = vmul.f32 %v2548, %v2610
        %v2613 = vmul.f32 %v2549, %v2609
        %v2614 = vmul.f32 %v2550, %v2610
        %v2615 = vmul.f32 %v2551, %v2609
        %v2616 = vmul.f32 %v2552, %v2610
        %v2617 = vmul.f32 %v2553, %v2609
        %v2618 = vmul.f32 %v2554, %v2610
        %v2619 = vmul.f32 %v2555, %v2609
        %v2620 = vmul.f32 %v2556, %v2610
        %v2621 = vmul.f32 %v2557, %v2609
        %v2622 = vmul.f32 %v2558, %v2610
        %v2623 = vmul.f32 %v2559, %v2609
        %v2624 = vmul.f32 %v2560, %v2610
        %v2625 = vmul.f32 %v2561, %v2609
        %v2626 = vmul.f32 %v2562, %v2610
        %2627 = vset.pattern.permute.xlu0 4
        %2628 = vperm.xlu0 %2627, %v516
        %v2629 = vpop.permute.xlu0 %2628
        %2631 = vset.pattern.permute.xlu0 4
        %2632 = vperm.xlu0 %2631, %v517
        %v2633 = vpop.permute.xlu0 %2632
        %2635 = vset.pattern.permute.xlu0 4
        %2636 = vperm.xlu0 %2635, %v518
        %v2637 = vpop.permute.xlu0 %2636
        %2639 = vset.pattern.permute.xlu0 4
        %2640 = vperm.xlu0 %2639, %v519
        %v2641 = vpop.permute.xlu0 %2640
        %2643 = vset.pattern.permute.xlu0 4
        %2644 = vperm.xlu0 %2643, %v520
        %v2645 = vpop.permute.xlu0 %2644
        %2647 = vset.pattern.permute.xlu0 4
        %2648 = vperm.xlu0 %2647, %v521
        %v2649 = vpop.permute.xlu0 %2648
        %2651 = vset.pattern.permute.xlu0 4
        %2652 = vperm.xlu0 %2651, %v522
        %v2653 = vpop.permute.xlu0 %2652
        %2655 = vset.pattern.permute.xlu0 4
        %2656 = vperm.xlu0 %2655, %v523
        %v2657 = vpop.permute.xlu0 %2656
        %v2659 = vmul.f32 %v2611, %v2629
        %v2660 = vmul.f32 %v2612, %v2629
        %v2661 = vmul.f32 %v2613, %v2633
        %v2662 = vmul.f32 %v2614, %v2633
        %v2663 = vmul.f32 %v2615, %v2637
        %v2664 = vmul.f32 %v2616, %v2637
        %v2665 = vmul.f32 %v2617, %v2641
        %v2666 = vmul.f32 %v2618, %v2641
        %v2667 = vmul.f32 %v2619, %v2645
        %v2668 = vmul.f32 %v2620, %v2645
        %v2669 = vmul.f32 %v2621, %v2649
        %v2670 = vmul.f32 %v2622, %v2649
        %v2671 = vmul.f32 %v2623, %v2653
        %v2672 = vmul.f32 %v2624, %v2653
        %v2673 = vmul.f32 %v2625, %v2657
        %v2674 = vmul.f32 %v2626, %v2657
        %2675 = vset.pattern.permute.xlu0 5
        %2676 = vperm.xlu0 %2675, %v516
        %v2677 = vpop.permute.xlu0 %2676
        %2679 = vset.pattern.permute.xlu0 5
        %2680 = vperm.xlu0 %2679, %v517
        %v2681 = vpop.permute.xlu0 %2680
        %2683 = vset.pattern.permute.xlu0 5
        %2684 = vperm.xlu0 %2683, %v518
        %v2685 = vpop.permute.xlu0 %2684
        %2687 = vset.pattern.permute.xlu0 5
        %2688 = vperm.xlu0 %2687, %v519
        %v2689 = vpop.permute.xlu0 %2688
        %2691 = vset.pattern.permute.xlu0 5
        %2692 = vperm.xlu0 %2691, %v520
        %v2693 = vpop.permute.xlu0 %2692
        %2695 = vset.pattern.permute.xlu0 5
        %2696 = vperm.xlu0 %2695, %v521
        %v2697 = vpop.permute.xlu0 %2696
        %2699 = vset.pattern.permute.xlu0 5
        %2700 = vperm.xlu0 %2699, %v522
        %v2701 = vpop.permute.xlu0 %2700
        %2703 = vset.pattern.permute.xlu0 5
        %2704 = vperm.xlu0 %2703, %v523
        %v2705 = vpop.permute.xlu0 %2704
        %v2707 = vadd.f32 %v2659, %v2677
        %v2708 = vadd.f32 %v2660, %v2677
        %v2709 = vadd.f32 %v2661, %v2681
        %v2710 = vadd.f32 %v2662, %v2681
        %v2711 = vadd.f32 %v2663, %v2685
        %v2712 = vadd.f32 %v2664, %v2685
        %v2713 = vadd.f32 %v2665, %v2689
        %v2714 = vadd.f32 %v2666, %v2689
        %v2715 = vadd.f32 %v2667, %v2693
        %v2716 = vadd.f32 %v2668, %v2693
        %v2717 = vadd.f32 %v2669, %v2697
        %v2718 = vadd.f32 %v2670, %v2697
        %v2719 = vadd.f32 %v2671, %v2701
        %v2720 = vadd.f32 %v2672, %v2701
        %v2721 = vadd.f32 %v2673, %v2705
        %v2722 = vadd.f32 %v2674, %v2705
        %v2723 = vmul.f32 %v2707, 0.5
        %v2724 = vmul.f32 %v2708, 0.5
        %v2725 = vmul.f32 %v2709, 0.5
        %v2726 = vmul.f32 %v2710, 0.5
        %v2727 = vmul.f32 %v2711, 0.5
        %v2728 = vmul.f32 %v2712, 0.5
        %v2729 = vmul.f32 %v2713, 0.5
        %v2730 = vmul.f32 %v2714, 0.5
        %v2731 = vmul.f32 %v2715, 0.5
        %v2732 = vmul.f32 %v2716, 0.5
        %v2733 = vmul.f32 %v2717, 0.5
        %v2734 = vmul.f32 %v2718, 0.5
        %v2735 = vmul.f32 %v2719, 0.5
        %v2736 = vmul.f32 %v2720, 0.5
        %v2737 = vmul.f32 %v2721, 0.5
        %v2738 = vmul.f32 %v2722, 0.5
        %v2739 = vmul.f32 %v2707, 0.70710677
        %v2740 = vmul.f32 %v2708, 0.70710677
        %v2741 = vmul.f32 %v2709, 0.70710677
        %v2742 = vmul.f32 %v2710, 0.70710677
        %v2743 = vmul.f32 %v2711, 0.70710677
        %v2744 = vmul.f32 %v2712, 0.70710677
        %v2745 = vmul.f32 %v2713, 0.70710677
        %v2746 = vmul.f32 %v2714, 0.70710677
        %v2747 = vmul.f32 %v2715, 0.70710677
        %v2748 = vmul.f32 %v2716, 0.70710677
        %v2749 = vmul.f32 %v2717, 0.70710677
        %v2750 = vmul.f32 %v2718, 0.70710677
        %v2751 = vmul.f32 %v2719, 0.70710677
        %v2752 = vmul.f32 %v2720, 0.70710677
        %v2753 = vmul.f32 %v2721, 0.70710677
        %v2754 = vmul.f32 %v2722, 0.70710677
        %vm2755 = vcmp.ge.f32.partialorder %v2739, 0.0
        %vm2756 = vcmp.ge.f32.partialorder %v2740, 0.0
        %vm2757 = vcmp.ge.f32.partialorder %v2741, 0.0
        %vm2758 = vcmp.ge.f32.partialorder %v2742, 0.0
        %vm2759 = vcmp.ge.f32.partialorder %v2743, 0.0
        %vm2760 = vcmp.ge.f32.partialorder %v2744, 0.0
        %vm2761 = vcmp.ge.f32.partialorder %v2745, 0.0
        %vm2762 = vcmp.ge.f32.partialorder %v2746, 0.0
        %vm2763 = vcmp.ge.f32.partialorder %v2747, 0.0
        %vm2764 = vcmp.ge.f32.partialorder %v2748, 0.0
        %vm2765 = vcmp.ge.f32.partialorder %v2749, 0.0
        %vm2766 = vcmp.ge.f32.partialorder %v2750, 0.0
        %vm2767 = vcmp.ge.f32.partialorder %v2751, 0.0
        %vm2768 = vcmp.ge.f32.partialorder %v2752, 0.0
        %vm2769 = vcmp.ge.f32.partialorder %v2753, 0.0
        %vm2770 = vcmp.ge.f32.partialorder %v2754, 0.0
        %v2771 = vsel %vm2755, 1.0, -1.0
        %v2772 = vsel %vm2756, 1.0, -1.0
        %v2773 = vsel %vm2757, 1.0, -1.0
        %v2774 = vsel %vm2758, 1.0, -1.0
        %v2775 = vsel %vm2759, 1.0, -1.0
        %v2776 = vsel %vm2760, 1.0, -1.0
        %v2777 = vsel %vm2761, 1.0, -1.0
        %v2778 = vsel %vm2762, 1.0, -1.0
        %v2779 = vsel %vm2763, 1.0, -1.0
        %v2780 = vsel %vm2764, 1.0, -1.0
        %v2781 = vsel %vm2765, 1.0, -1.0
        %v2782 = vsel %vm2766, 1.0, -1.0
        %v2783 = vsel %vm2767, 1.0, -1.0
        %v2784 = vsel %vm2768, 1.0, -1.0
        %v2785 = vsel %vm2769, 1.0, -1.0
        %v2786 = vsel %vm2770, 1.0, -1.0
        %v2787 = vand.u32 2147483647, %v2739
        %v2788 = vand.u32 2147483647, %v2740
        %v2789 = vand.u32 2147483647, %v2741
        %v2790 = vand.u32 2147483647, %v2742
        %v2791 = vand.u32 2147483647, %v2743
        %v2792 = vand.u32 2147483647, %v2744
        %v2793 = vand.u32 2147483647, %v2745
        %v2794 = vand.u32 2147483647, %v2746
        %v2795 = vand.u32 2147483647, %v2747
        %v2796 = vand.u32 2147483647, %v2748
        %v2797 = vand.u32 2147483647, %v2749
        %v2798 = vand.u32 2147483647, %v2750
        %v2799 = vand.u32 2147483647, %v2751
        %v2800 = vand.u32 2147483647, %v2752
        %v2801 = vand.u32 2147483647, %v2753
        %v2802 = vand.u32 2147483647, %v2754
        %v2803 = vmul.f32 %v2787, 0.3275911
        %v2804 = vmul.f32 %v2788, 0.3275911
        %v2805 = vmul.f32 %v2789, 0.3275911
        %v2806 = vmul.f32 %v2790, 0.3275911
        %v2807 = vmul.f32 %v2791, 0.3275911
        %v2808 = vmul.f32 %v2792, 0.3275911
        %v2809 = vmul.f32 %v2793, 0.3275911
        %v2810 = vmul.f32 %v2794, 0.3275911
        %v2811 = vmul.f32 %v2795, 0.3275911
        %v2812 = vmul.f32 %v2796, 0.3275911
        %v2813 = vmul.f32 %v2797, 0.3275911
        %v2814 = vmul.f32 %v2798, 0.3275911
        %v2815 = vmul.f32 %v2799, 0.3275911
        %v2816 = vmul.f32 %v2800, 0.3275911
        %v2817 = vmul.f32 %v2801, 0.3275911
        %v2818 = vmul.f32 %v2802, 0.3275911
        %v2819 = vadd.f32 %v2803, 1.0
        %v2820 = vadd.f32 %v2804, 1.0
        %v2821 = vadd.f32 %v2805, 1.0
        %v2822 = vadd.f32 %v2806, 1.0
        %v2823 = vadd.f32 %v2807, 1.0
        %v2824 = vadd.f32 %v2808, 1.0
        %v2825 = vadd.f32 %v2809, 1.0
        %v2826 = vadd.f32 %v2810, 1.0
        %v2827 = vadd.f32 %v2811, 1.0
        %v2828 = vadd.f32 %v2812, 1.0
        %v2829 = vadd.f32 %v2813, 1.0
        %v2830 = vadd.f32 %v2814, 1.0
        %v2831 = vadd.f32 %v2815, 1.0
        %v2832 = vadd.f32 %v2816, 1.0
        %v2833 = vadd.f32 %v2817, 1.0
        %v2834 = vadd.f32 %v2818, 1.0
        %v2835 = vrcp.pop %v2819
        %v2836 = vmul.f32 1.0, %v2835
        %v2837 = vrcp.pop %v2820
        %v2838 = vmul.f32 1.0, %v2837
        %v2839 = vrcp.pop %v2821
        %v2840 = vmul.f32 1.0, %v2839
        %v2841 = vrcp.pop %v2822
        %v2842 = vmul.f32 1.0, %v2841
        %v2843 = vrcp.pop %v2823
        %v2844 = vmul.f32 1.0, %v2843
        %v2845 = vrcp.pop %v2824
        %v2846 = vmul.f32 1.0, %v2845
        %v2847 = vrcp.pop %v2825
        %v2848 = vmul.f32 1.0, %v2847
        %v2849 = vrcp.pop %v2826
        %v2850 = vmul.f32 1.0, %v2849
        %v2851 = vrcp.pop %v2827
        %v2852 = vmul.f32 1.0, %v2851
        %v2853 = vrcp.pop %v2828
        %v2854 = vmul.f32 1.0, %v2853
        %v2855 = vrcp.pop %v2829
        %v2856 = vmul.f32 1.0, %v2855
        %v2857 = vrcp.pop %v2830
        %v2858 = vmul.f32 1.0, %v2857
        %v2859 = vrcp.pop %v2831
        %v2860 = vmul.f32 1.0, %v2859
        %v2861 = vrcp.pop %v2832
        %v2862 = vmul.f32 1.0, %v2861
        %v2863 = vrcp.pop %v2833
        %v2864 = vmul.f32 1.0, %v2863
        %v2865 = vrcp.pop %v2834
        %v2866 = vmul.f32 1.0, %v2865
        %v2867 = vmul.f32 %v2836, 1.0614054
        %v2868 = vmul.f32 %v2838, 1.0614054
        %v2869 = vmul.f32 %v2840, 1.0614054
        %v2870 = vmul.f32 %v2842, 1.0614054
        %v2871 = vmul.f32 %v2844, 1.0614054
        %v2872 = vmul.f32 %v2846, 1.0614054
        %v2873 = vmul.f32 %v2848, 1.0614054
        %v2874 = vmul.f32 %v2850, 1.0614054
        %v2875 = vmul.f32 %v2852, 1.0614054
        %v2876 = vmul.f32 %v2854, 1.0614054
        %v2877 = vmul.f32 %v2856, 1.0614054
        %v2878 = vmul.f32 %v2858, 1.0614054
        %v2879 = vmul.f32 %v2860, 1.0614054
        %v2880 = vmul.f32 %v2862, 1.0614054
        %v2881 = vmul.f32 %v2864, 1.0614054
        %v2882 = vmul.f32 %v2866, 1.0614054
        %v2883 = vadd.f32 %v2867, -1.4531521
        %v2884 = vadd.f32 %v2868, -1.4531521
        %v2885 = vadd.f32 %v2869, -1.4531521
        %v2886 = vadd.f32 %v2870, -1.4531521
        %v2887 = vadd.f32 %v2871, -1.4531521
        %v2888 = vadd.f32 %v2872, -1.4531521
        %v2889 = vadd.f32 %v2873, -1.4531521
        %v2890 = vadd.f32 %v2874, -1.4531521
        %v2891 = vadd.f32 %v2875, -1.4531521
        %v2892 = vadd.f32 %v2876, -1.4531521
        %v2893 = vadd.f32 %v2877, -1.4531521
        %v2894 = vadd.f32 %v2878, -1.4531521
        %v2895 = vadd.f32 %v2879, -1.4531521
        %v2896 = vadd.f32 %v2880, -1.4531521
        %v2897 = vadd.f32 %v2881, -1.4531521
        %v2898 = vadd.f32 %v2882, -1.4531521
        %v2899 = vmul.f32 %v2883, %v2836
        %v2900 = vmul.f32 %v2884, %v2838
        %v2901 = vmul.f32 %v2885, %v2840
        %v2902 = vmul.f32 %v2886, %v2842
        %v2903 = vmul.f32 %v2887, %v2844
        %v2904 = vmul.f32 %v2888, %v2846
        %v2905 = vmul.f32 %v2889, %v2848
        %v2906 = vmul.f32 %v2890, %v2850
        %v2907 = vmul.f32 %v2891, %v2852
        %v2908 = vmul.f32 %v2892, %v2854
        %v2909 = vmul.f32 %v2893, %v2856
        %v2910 = vmul.f32 %v2894, %v2858
        %v2911 = vmul.f32 %v2895, %v2860
        %v2912 = vmul.f32 %v2896, %v2862
        %v2913 = vmul.f32 %v2897, %v2864
        %v2914 = vmul.f32 %v2898, %v2866
        %v2915 = vadd.f32 %v2899, 1.4214138
        %v2916 = vadd.f32 %v2900, 1.4214138
        %v2917 = vadd.f32 %v2901, 1.4214138
        %v2918 = vadd.f32 %v2902, 1.4214138
        %v2919 = vadd.f32 %v2903, 1.4214138
        %v2920 = vadd.f32 %v2904, 1.4214138
        %v2921 = vadd.f32 %v2905, 1.4214138
        %v2922 = vadd.f32 %v2906, 1.4214138
        %v2923 = vadd.f32 %v2907, 1.4214138
        %v2924 = vadd.f32 %v2908, 1.4214138
        %v2925 = vadd.f32 %v2909, 1.4214138
        %v2926 = vadd.f32 %v2910, 1.4214138
        %v2927 = vadd.f32 %v2911, 1.4214138
        %v2928 = vadd.f32 %v2912, 1.4214138
        %v2929 = vadd.f32 %v2913, 1.4214138
        %v2930 = vadd.f32 %v2914, 1.4214138
        %v2931 = vmul.f32 %v2915, %v2836
        %v2932 = vmul.f32 %v2916, %v2838
        %v2933 = vmul.f32 %v2917, %v2840
        %v2934 = vmul.f32 %v2918, %v2842
        %v2935 = vmul.f32 %v2919, %v2844
        %v2936 = vmul.f32 %v2920, %v2846
        %v2937 = vmul.f32 %v2921, %v2848
        %v2938 = vmul.f32 %v2922, %v2850
        %v2939 = vmul.f32 %v2923, %v2852
        %v2940 = vmul.f32 %v2924, %v2854
        %v2941 = vmul.f32 %v2925, %v2856
        %v2942 = vmul.f32 %v2926, %v2858
        %v2943 = vmul.f32 %v2927, %v2860
        %v2944 = vmul.f32 %v2928, %v2862
        %v2945 = vmul.f32 %v2929, %v2864
        %v2946 = vmul.f32 %v2930, %v2866
        %v2947 = vadd.f32 %v2931, -0.28449672
        %v2948 = vadd.f32 %v2932, -0.28449672
        %v2949 = vadd.f32 %v2933, -0.28449672
        %v2950 = vadd.f32 %v2934, -0.28449672
        %v2951 = vadd.f32 %v2935, -0.28449672
        %v2952 = vadd.f32 %v2936, -0.28449672
        %v2953 = vadd.f32 %v2937, -0.28449672
        %v2954 = vadd.f32 %v2938, -0.28449672
        %v2955 = vadd.f32 %v2939, -0.28449672
        %v2956 = vadd.f32 %v2940, -0.28449672
        %v2957 = vadd.f32 %v2941, -0.28449672
        %v2958 = vadd.f32 %v2942, -0.28449672
        %v2959 = vadd.f32 %v2943, -0.28449672
        %v2960 = vadd.f32 %v2944, -0.28449672
        %v2961 = vadd.f32 %v2945, -0.28449672
        %v2962 = vadd.f32 %v2946, -0.28449672
        %v2963 = vmul.f32 %v2947, %v2836
        %v2964 = vmul.f32 %v2948, %v2838
        %v2965 = vmul.f32 %v2949, %v2840
        %v2966 = vmul.f32 %v2950, %v2842
        %v2967 = vmul.f32 %v2951, %v2844
        %v2968 = vmul.f32 %v2952, %v2846
        %v2969 = vmul.f32 %v2953, %v2848
        %v2970 = vmul.f32 %v2954, %v2850
        %v2971 = vmul.f32 %v2955, %v2852
        %v2972 = vmul.f32 %v2956, %v2854
        %v2973 = vmul.f32 %v2957, %v2856
        %v2974 = vmul.f32 %v2958, %v2858
        %v2975 = vmul.f32 %v2959, %v2860
        %v2976 = vmul.f32 %v2960, %v2862
        %v2977 = vmul.f32 %v2961, %v2864
        %v2978 = vmul.f32 %v2962, %v2866
        %v2979 = vadd.f32 %v2963, 0.2548296
        %v2980 = vadd.f32 %v2964, 0.2548296
        %v2981 = vadd.f32 %v2965, 0.2548296
        %v2982 = vadd.f32 %v2966, 0.2548296
        %v2983 = vadd.f32 %v2967, 0.2548296
        %v2984 = vadd.f32 %v2968, 0.2548296
        %v2985 = vadd.f32 %v2969, 0.2548296
        %v2986 = vadd.f32 %v2970, 0.2548296
        %v2987 = vadd.f32 %v2971, 0.2548296
        %v2988 = vadd.f32 %v2972, 0.2548296
        %v2989 = vadd.f32 %v2973, 0.2548296
        %v2990 = vadd.f32 %v2974, 0.2548296
        %v2991 = vadd.f32 %v2975, 0.2548296
        %v2992 = vadd.f32 %v2976, 0.2548296
        %v2993 = vadd.f32 %v2977, 0.2548296
        %v2994 = vadd.f32 %v2978, 0.2548296
        %v2995 = vmul.f32 %v2979, %v2836
        %v2996 = vmul.f32 %v2980, %v2838
        %v2997 = vmul.f32 %v2981, %v2840
        %v2998 = vmul.f32 %v2982, %v2842
        %v2999 = vmul.f32 %v2983, %v2844
        %v3000 = vmul.f32 %v2984, %v2846
        %v3001 = vmul.f32 %v2985, %v2848
        %v3002 = vmul.f32 %v2986, %v2850
        %v3003 = vmul.f32 %v2987, %v2852
        %v3004 = vmul.f32 %v2988, %v2854
        %v3005 = vmul.f32 %v2989, %v2856
        %v3006 = vmul.f32 %v2990, %v2858
        %v3007 = vmul.f32 %v2991, %v2860
        %v3008 = vmul.f32 %v2992, %v2862
        %v3009 = vmul.f32 %v2993, %v2864
        %v3010 = vmul.f32 %v2994, %v2866
        %v3011 = vsub.f32 0.0, %v2787
        %v3012 = vsub.f32 0.0, %v2788
        %v3013 = vsub.f32 0.0, %v2789
        %v3014 = vsub.f32 0.0, %v2790
        %v3015 = vsub.f32 0.0, %v2791
        %v3016 = vsub.f32 0.0, %v2792
        %v3017 = vsub.f32 0.0, %v2793
        %v3018 = vsub.f32 0.0, %v2794
        %v3019 = vsub.f32 0.0, %v2795
        %v3020 = vsub.f32 0.0, %v2796
        %v3021 = vsub.f32 0.0, %v2797
        %v3022 = vsub.f32 0.0, %v2798
        %v3023 = vsub.f32 0.0, %v2799
        %v3024 = vsub.f32 0.0, %v2800
        %v3025 = vsub.f32 0.0, %v2801
        %v3026 = vsub.f32 0.0, %v2802
        %v3027 = vmul.f32 %v3011, %v2787
        %v3028 = vmul.f32 %v3012, %v2788
        %v3029 = vmul.f32 %v3013, %v2789
        %v3030 = vmul.f32 %v3014, %v2790
        %v3031 = vmul.f32 %v3015, %v2791
        %v3032 = vmul.f32 %v3016, %v2792
        %v3033 = vmul.f32 %v3017, %v2793
        %v3034 = vmul.f32 %v3018, %v2794
        %v3035 = vmul.f32 %v3019, %v2795
        %v3036 = vmul.f32 %v3020, %v2796
        %v3037 = vmul.f32 %v3021, %v2797
        %v3038 = vmul.f32 %v3022, %v2798
        %v3039 = vmul.f32 %v3023, %v2799
        %v3040 = vmul.f32 %v3024, %v2800
        %v3041 = vmul.f32 %v3025, %v2801
        %v3042 = vmul.f32 %v3026, %v2802
        %v3043 = vmul.f32 %v3027, 1.442695
        %v3044 = vpow.pop %v3043
        %v3045 = vmul.f32 %v3028, 1.442695
        %v3046 = vpow.pop %v3045
        %v3047 = vmul.f32 %v3029, 1.442695
        %v3048 = vpow.pop %v3047
        %v3049 = vmul.f32 %v3030, 1.442695
        %v3050 = vpow.pop %v3049
        %v3051 = vmul.f32 %v3031, 1.442695
        %v3052 = vpow.pop %v3051
        %v3053 = vmul.f32 %v3032, 1.442695
        %v3054 = vpow.pop %v3053
        %v3055 = vmul.f32 %v3033, 1.442695
        %v3056 = vpow.pop %v3055
        %v3057 = vmul.f32 %v3034, 1.442695
        %v3058 = vpow.pop %v3057
        %v3059 = vmul.f32 %v3035, 1.442695
        %v3060 = vpow.pop %v3059
        %v3061 = vmul.f32 %v3036, 1.442695
        %v3062 = vpow.pop %v3061
        %v3063 = vmul.f32 %v3037, 1.442695
        %v3064 = vpow.pop %v3063
        %v3065 = vmul.f32 %v3038, 1.442695
        %v3066 = vpow.pop %v3065
        %v3067 = vmul.f32 %v3039, 1.442695
        %v3068 = vpow.pop %v3067
        %v3069 = vmul.f32 %v3040, 1.442695
        %v3070 = vpow.pop %v3069
        %v3071 = vmul.f32 %v3041, 1.442695
        %v3072 = vpow.pop %v3071
        %v3073 = vmul.f32 %v3042, 1.442695
        %v3074 = vpow.pop %v3073
        %v3075 = vmul.f32 %v2995, %v3044
        %v3076 = vmul.f32 %v2996, %v3046
        %v3077 = vmul.f32 %v2997, %v3048
        %v3078 = vmul.f32 %v2998, %v3050
        %v3079 = vmul.f32 %v2999, %v3052
        %v3080 = vmul.f32 %v3000, %v3054
        %v3081 = vmul.f32 %v3001, %v3056
        %v3082 = vmul.f32 %v3002, %v3058
        %v3083 = vmul.f32 %v3003, %v3060
        %v3084 = vmul.f32 %v3004, %v3062
        %v3085 = vmul.f32 %v3005, %v3064
        %v3086 = vmul.f32 %v3006, %v3066
        %v3087 = vmul.f32 %v3007, %v3068
        %v3088 = vmul.f32 %v3008, %v3070
        %v3089 = vmul.f32 %v3009, %v3072
        %v3090 = vmul.f32 %v3010, %v3074
        %v3091 = vsub.f32 1.0, %v3075
        %v3092 = vsub.f32 1.0, %v3076
        %v3093 = vsub.f32 1.0, %v3077
        %v3094 = vsub.f32 1.0, %v3078
        %v3095 = vsub.f32 1.0, %v3079
        %v3096 = vsub.f32 1.0, %v3080
        %v3097 = vsub.f32 1.0, %v3081
        %v3098 = vsub.f32 1.0, %v3082
        %v3099 = vsub.f32 1.0, %v3083
        %v3100 = vsub.f32 1.0, %v3084
        %v3101 = vsub.f32 1.0, %v3085
        %v3102 = vsub.f32 1.0, %v3086
        %v3103 = vsub.f32 1.0, %v3087
        %v3104 = vsub.f32 1.0, %v3088
        %v3105 = vsub.f32 1.0, %v3089
        %v3106 = vsub.f32 1.0, %v3090
        %v3107 = vmul.f32 %v2771, %v3091
        %v3108 = vmul.f32 %v2772, %v3092
        %v3109 = vmul.f32 %v2773, %v3093
        %v3110 = vmul.f32 %v2774, %v3094
        %v3111 = vmul.f32 %v2775, %v3095
        %v3112 = vmul.f32 %v2776, %v3096
        %v3113 = vmul.f32 %v2777, %v3097
        %v3114 = vmul.f32 %v2778, %v3098
        %v3115 = vmul.f32 %v2779, %v3099
        %v3116 = vmul.f32 %v2780, %v3100
        %v3117 = vmul.f32 %v2781, %v3101
        %v3118 = vmul.f32 %v2782, %v3102
        %v3119 = vmul.f32 %v2783, %v3103
        %v3120 = vmul.f32 %v2784, %v3104
        %v3121 = vmul.f32 %v2785, %v3105
        %v3122 = vmul.f32 %v2786, %v3106
        %v3123 = vadd.f32 %v3107, 1.0
        %v3124 = vadd.f32 %v3108, 1.0
        %v3125 = vadd.f32 %v3109, 1.0
        %v3126 = vadd.f32 %v3110, 1.0
        %v3127 = vadd.f32 %v3111, 1.0
        %v3128 = vadd.f32 %v3112, 1.0
        %v3129 = vadd.f32 %v3113, 1.0
        %v3130 = vadd.f32 %v3114, 1.0
        %v3131 = vadd.f32 %v3115, 1.0
        %v3132 = vadd.f32 %v3116, 1.0
        %v3133 = vadd.f32 %v3117, 1.0
        %v3134 = vadd.f32 %v3118, 1.0
        %v3135 = vadd.f32 %v3119, 1.0
        %v3136 = vadd.f32 %v3120, 1.0
        %v3137 = vadd.f32 %v3121, 1.0
        %v3138 = vadd.f32 %v3122, 1.0
        %v3139 = vmul.f32 %v2723, %v3123
        %v3140 = vmul.f32 %v2724, %v3124
        %v3141 = vmul.f32 %v2725, %v3125
        %v3142 = vmul.f32 %v2726, %v3126
        %v3143 = vmul.f32 %v2727, %v3127
        %v3144 = vmul.f32 %v2728, %v3128
        %v3145 = vmul.f32 %v2729, %v3129
        %v3146 = vmul.f32 %v2730, %v3130
        %v3147 = vmul.f32 %v2731, %v3131
        %v3148 = vmul.f32 %v2732, %v3132
        %v3149 = vmul.f32 %v2733, %v3133
        %v3150 = vmul.f32 %v2734, %v3134
        %v3151 = vmul.f32 %v2735, %v3135
        %v3152 = vmul.f32 %v2736, %v3136
        %v3153 = vmul.f32 %v2737, %v3137
        %v3154 = vmul.f32 %v2738, %v3138
        %v3155 = vpack.c.bf16 %v3141, %v3139
        %v3156 = vpack.c.bf16 %v3142, %v3140
        %v3157 = vpack.c.bf16 %v3145, %v3143
        %v3158 = vpack.c.bf16 %v3146, %v3144
        %v3159 = vpack.c.bf16 %v3149, %v3147
        %v3160 = vpack.c.bf16 %v3150, %v3148
        %v3161 = vpack.c.bf16 %v3153, %v3151
        %v3162 = vpack.c.bf16 %v3154, %v3152
        %v3163 = vld [vmem:[#allocation9 + $0x30] sm:$0xf]
        %v3164 = vld [vmem:[#allocation9 + $0x34] sm:$0xf]
        %v3165 = vld [vmem:[#allocation9 + $0x38] sm:$0xf]
        %v3166 = vld [vmem:[#allocation9 + $0x3c] sm:$0xf]
        %v3167 = vld [vmem:[#allocation9 + $0x40] sm:$0xf]
        %v3168 = vld [vmem:[#allocation9 + $0x44] sm:$0xf]
        %v3175 = vunpack.c.l.b16 %v3163
        %v3176 = vunpack.c.l.b16 %v3164
        %v3177 = vunpack.c.l.b16 %v3165
        %v3178 = vunpack.c.l.b16 %v3166
        %v3179 = vunpack.c.l.b16 %v3167
        %v3180 = vunpack.c.l.b16 %v3168
        %v3181 = vpack.c.b16 %v3176, %v3175
        %v3182 = vpack.c.b16 %v3178, %v3177
        %v3183 = vpack.c.b16 %v3180, %v3179
        %v3185 = vsel %vm430, %v3181, 0
        %v3188 = vsel %vm430, %v3182, 0
        %v3191 = vsel %vm430, %v3183, 0
        %3193 = vmatprep.subr.bf16.mxu0 %v3156
        %3194 = vmatpush1.bf16.msra.mxu0 %v3155
        %3195 = vmatprep.subr.bf16.mxu0 %v3158
        %3196 = vmatpush1.bf16.msra.mxu0 %v3157
        %3197 = vmatprep.subr.bf16.mxu0 %v3160
        %3198 = vmatpush1.bf16.msra.mxu0 %v3159
        %3199 = vmatprep.subr.bf16.mxu0 %v3162
        %3200 = vmatpush1.bf16.msra.mxu0 %v3161
        %3201 = vmatprep.subr.bf16.mxu0 0
        %3202 = vmatpush1.bf16.msra.mxu0 0
        %3203 = vmatprep.subr.bf16.mxu0 0
        %3204 = vmatpush1.bf16.msra.mxu0 0
        %3205 = vmatprep.subr.bf16.mxu0 0
        %3206 = vmatpush1.bf16.msra.mxu0 0
        %3207 = vmatprep.subr.bf16.mxu0 0
        %3208 = vmatpush1.bf16.msra.mxu0 0
        %3209 = vmatprep.subr.bf16.mxu0 0
        %3210 = vmatpush1.bf16.msra.mxu0 0
        %3211 = vmatprep.subr.bf16.mxu0 0
        %3212 = vmatpush1.bf16.msra.mxu0 0
        %3213 = vmatprep.subr.bf16.mxu0 0
        %3214 = vmatpush1.bf16.msra.mxu0 0
        %3215 = vmatprep.subr.bf16.mxu0 0
        %3216 = vmatpush1.bf16.msra.mxu0 0
        %3217 = vmatprep.subr.bf16.mxu0 0
        %3218 = vmatpush1.bf16.msra.mxu0 0
        %3219 = vmatprep.subr.bf16.mxu0 0
        %3220 = vmatpush1.bf16.msra.mxu0 0
        %3221 = vmatprep.subr.bf16.mxu0 0
        %3222 = vmatpush1.bf16.msra.mxu0 0
        %3223 = vmatprep.subr.bf16.mxu0 0
        %3224 = vmatpush1.bf16.msra.mxu0 0
        %3225 = vmatprep.mubr.bf16.mxu0 0
        %3226 = vmatmul.mubr.bf16.gmra.mrb[0].mxu0 %v3185
        %v3227 = vpop.f32.mrb[0].mxu0
        %v3228 = vadd.f32 0.0, %v3227
        %v3229 = vpop.f32.mrb[0].mxu0
        %v3230 = vadd.f32 0.0, %v3229
        %v3231 = vpop.f32.mrb[0].mxu0
        %v3232 = vadd.f32 0.0, %v3231
        %v3233 = vpop.f32.mrb[0].mxu0
        %v3234 = vadd.f32 0.0, %v3233
        %3235 = vmatprep.mubr.bf16.mxu0 0
        %3236 = vmatmul.mubr.bf16.gmra.mrb[0].mxu0 %v3188
        %v3237 = vpop.f32.mrb[0].mxu0
        %v3238 = vadd.f32 0.0, %v3237
        %v3239 = vpop.f32.mrb[0].mxu0
        %v3240 = vadd.f32 0.0, %v3239
        %v3241 = vpop.f32.mrb[0].mxu0
        %v3242 = vadd.f32 0.0, %v3241
        %v3243 = vpop.f32.mrb[0].mxu0
        %v3244 = vadd.f32 0.0, %v3243
        %3245 = vmatprep.mubr.bf16.mxu0 0
        %3246 = vmatmul.mubr.bf16.gmra.mrb[0].mxu0 %v3191
        %v3247 = vpop.f32.mrb[0].mxu0
        %v3248 = vadd.f32 0.0, %v3247
        %v3249 = vpop.f32.mrb[0].mxu0
        %v3250 = vadd.f32 0.0, %v3249
        %v3251 = vpop.f32.mrb[0].mxu0
        %v3252 = vadd.f32 0.0, %v3251
        %v3253 = vpop.f32.mrb[0].mxu0
        %v3254 = vadd.f32 0.0, %v3253
        %3255 = vdwg.mxu0
        %v3256 = vadd.f32 %v2281, %v3228
        %v3257 = vadd.f32 %v2282, %v3230
        %v3258 = vadd.f32 %v2283, %v3232
        %v3259 = vadd.f32 %v2284, %v3234
        %v3260 = vadd.f32 %v2285, %v3238
        %v3261 = vadd.f32 %v2286, %v3240
        %v3262 = vadd.f32 %v2287, %v3242
        %v3263 = vadd.f32 %v2288, %v3244
        %v3264 = vadd.f32 %v2289, %v3248
        %v3265 = vadd.f32 %v2290, %v3250
        %v3266 = vadd.f32 %v2291, %v3252
        %v3267 = vadd.f32 %v2292, %v3254
        %v3268 = vld [vmem:[#allocation4 + $0x60] sm:$0xf]
        %v3269 = vld [vmem:[#allocation4 + $0x64] sm:$0xf]
        %v3270 = vld [vmem:[#allocation4 + $0x68] sm:$0xf]
        %v3271 = vld [vmem:[#allocation4 + $0x6c] sm:$0xf]
        %v3272 = vld [vmem:[#allocation4 + $0x70] sm:$0xf]
        %v3273 = vld [vmem:[#allocation4 + $0x74] sm:$0xf]
        %v3274 = vld [vmem:[#allocation4 + $0x78] sm:$0xf]
        %v3275 = vld [vmem:[#allocation4 + $0x7c] sm:$0xf]
        %v3276 = vld [vmem:[#allocation6 + $0x40] sm:$0xf]
        %v3277 = vld [vmem:[#allocation6 + $0x44] sm:$0xf]
        %v3278 = vld [vmem:[#allocation6 + $0x48] sm:$0xf]
        %v3279 = vld [vmem:[#allocation6 + $0x4c] sm:$0xf]
        %v3280 = vld [vmem:[#allocation6 + $0x50] sm:$0xf]
        %v3281 = vld [vmem:[#allocation6 + $0x54] sm:$0xf]
        %v3282 = vld [vmem:[#allocation6 + $0x58] sm:$0xf]
        %v3283 = vld [vmem:[#allocation6 + $0x5c] sm:$0xf]
        %v3292 = vunpack.c.l.b16 %v3276
        %v3293 = vunpack.c.l.b16 %v3277
        %v3294 = vunpack.c.l.b16 %v3278
        %v3295 = vunpack.c.l.b16 %v3279
        %v3296 = vunpack.c.l.b16 %v3280
        %v3297 = vunpack.c.l.b16 %v3281
        %v3298 = vunpack.c.l.b16 %v3282
        %v3299 = vunpack.c.l.b16 %v3283
        %v3300 = vpack.c.b16 %v3293, %v3292
        %v3301 = vpack.c.b16 %v3295, %v3294
        %v3302 = vpack.c.b16 %v3297, %v3296
        %v3303 = vpack.c.b16 %v3299, %v3298
        %v3305 = vsel %vm430, %v3300, 0
        %v3308 = vsel %vm430, %v3301, 0
        %v3311 = vsel %vm430, %v3302, 0
        %v3314 = vsel %vm430, %v3303, 0
        %3316 = vmatprep.subr.bf16.mxu0 %v3156
        %3317 = vmatpush1.bf16.msra.mxu0 %v3155
        %3318 = vmatprep.subr.bf16.mxu0 %v3158
        %3319 = vmatpush1.bf16.msra.mxu0 %v3157
        %3320 = vmatprep.subr.bf16.mxu0 %v3160
        %3321 = vmatpush1.bf16.msra.mxu0 %v3159
        %3322 = vmatprep.subr.bf16.mxu0 %v3162
        %3323 = vmatpush1.bf16.msra.mxu0 %v3161
        %3324 = vmatprep.subr.bf16.mxu0 0
        %3325 = vmatpush1.bf16.msra.mxu0 0
        %3326 = vmatprep.subr.bf16.mxu0 0
        %3327 = vmatpush1.bf16.msra.mxu0 0
        %3328 = vmatprep.subr.bf16.mxu0 0
        %3329 = vmatpush1.bf16.msra.mxu0 0
        %3330 = vmatprep.subr.bf16.mxu0 0
        %3331 = vmatpush1.bf16.msra.mxu0 0
        %3332 = vmatprep.subr.bf16.mxu0 0
        %3333 = vmatpush1.bf16.msra.mxu0 0
        %3334 = vmatprep.subr.bf16.mxu0 0
        %3335 = vmatpush1.bf16.msra.mxu0 0
        %3336 = vmatprep.subr.bf16.mxu0 0
        %3337 = vmatpush1.bf16.msra.mxu0 0
        %3338 = vmatprep.subr.bf16.mxu0 0
        %3339 = vmatpush1.bf16.msra.mxu0 0
        %3340 = vmatprep.subr.bf16.mxu0 0
        %3341 = vmatpush1.bf16.msra.mxu0 0
        %3342 = vmatprep.subr.bf16.mxu0 0
        %3343 = vmatpush1.bf16.msra.mxu0 0
        %3344 = vmatprep.subr.bf16.mxu0 0
        %3345 = vmatpush1.bf16.msra.mxu0 0
        %3346 = vmatprep.subr.bf16.mxu0 0
        %3347 = vmatpush1.bf16.msra.mxu0 0
        %3348 = vmatprep.mubr.bf16.mxu0 0
        %3349 = vmatmul.mubr.bf16.gmra.mrb[0].mxu0 %v3305
        %v3350 = vpop.f32.mrb[0].mxu0
        %v3351 = vadd.f32 0.0, %v3350
        %v3352 = vpop.f32.mrb[0].mxu0
        %v3353 = vadd.f32 0.0, %v3352
        %v3354 = vpop.f32.mrb[0].mxu0
        %v3355 = vadd.f32 0.0, %v3354
        %v3356 = vpop.f32.mrb[0].mxu0
        %v3357 = vadd.f32 0.0, %v3356
        %3358 = vmatprep.mubr.bf16.mxu0 0
        %3359 = vmatmul.mubr.bf16.gmra.mrb[0].mxu0 %v3308
        %v3360 = vpop.f32.mrb[0].mxu0
        %v3361 = vadd.f32 0.0, %v3360
        %v3362 = vpop.f32.mrb[0].mxu0
        %v3363 = vadd.f32 0.0, %v3362
        %v3364 = vpop.f32.mrb[0].mxu0
        %v3365 = vadd.f32 0.0, %v3364
        %v3366 = vpop.f32.mrb[0].mxu0
        %v3367 = vadd.f32 0.0, %v3366
        %3368 = vmatprep.mubr.bf16.mxu0 0
        %3369 = vmatmul.mubr.bf16.gmra.mrb[0].mxu0 %v3311
        %v3370 = vpop.f32.mrb[0].mxu0
        %v3371 = vadd.f32 0.0, %v3370
        %v3372 = vpop.f32.mrb[0].mxu0
        %v3373 = vadd.f32 0.0, %v3372
        %v3374 = vpop.f32.mrb[0].mxu0
        %v3375 = vadd.f32 0.0, %v3374
        %v3376 = vpop.f32.mrb[0].mxu0
        %v3377 = vadd.f32 0.0, %v3376
        %3378 = vmatprep.mubr.bf16.mxu0 0
        %3379 = vmatmul.mubr.bf16.gmra.mrb[0].mxu0 %v3314
        %v3380 = vpop.f32.mrb[0].mxu0
        %v3381 = vadd.f32 0.0, %v3380
        %v3382 = vpop.f32.mrb[0].mxu0
        %v3383 = vadd.f32 0.0, %v3382
        %v3384 = vpop.f32.mrb[0].mxu0
        %v3385 = vadd.f32 0.0, %v3384
        %v3386 = vpop.f32.mrb[0].mxu0
        %v3387 = vadd.f32 0.0, %v3386
        %3388 = vdwg.mxu0
        %v3397 = vunpack.c.l.b16 %v3268
        %v3398 = vunpack.c.l.b16 %v3269
        %v3399 = vunpack.c.l.b16 %v3270
        %v3400 = vunpack.c.l.b16 %v3271
        %v3401 = vunpack.c.l.b16 %v3272
        %v3402 = vunpack.c.l.b16 %v3273
        %v3403 = vunpack.c.l.b16 %v3274
        %v3404 = vunpack.c.l.b16 %v3275
        %v3405 = vpack.c.b16 %v3398, %v3397
        %v3406 = vpack.c.b16 %v3400, %v3399
        %v3407 = vpack.c.b16 %v3402, %v3401
        %v3408 = vpack.c.b16 %v3404, %v3403
        %v3410 = vsel %vm430, %v3405, 0
        %v3413 = vsel %vm430, %v3406, 0
        %v3416 = vsel %vm430, %v3407, 0
        %v3419 = vsel %vm430, %v3408, 0
        %3421 = vmatprep.subr.bf16.mxu0 %v395
        %3422 = vmatpush1.bf16.msra.mxu0 %v394
        %3423 = vmatprep.subr.bf16.mxu0 %v397
        %3424 = vmatpush1.bf16.msra.mxu0 %v396
        %3425 = vmatprep.subr.bf16.mxu0 %v399
        %3426 = vmatpush1.bf16.msra.mxu0 %v398
        %3427 = vmatprep.subr.bf16.mxu0 %v401
        %3428 = vmatpush1.bf16.msra.mxu0 %v400
        %3429 = vmatprep.subr.bf16.mxu0 0
        %3430 = vmatpush1.bf16.msra.mxu0 0
        %3431 = vmatprep.subr.bf16.mxu0 0
        %3432 = vmatpush1.bf16.msra.mxu0 0
        %3433 = vmatprep.subr.bf16.mxu0 0
        %3434 = vmatpush1.bf16.msra.mxu0 0
        %3435 = vmatprep.subr.bf16.mxu0 0
        %3436 = vmatpush1.bf16.msra.mxu0 0
        %3437 = vmatprep.subr.bf16.mxu0 0
        %3438 = vmatpush1.bf16.msra.mxu0 0
        %3439 = vmatprep.subr.bf16.mxu0 0
        %3440 = vmatpush1.bf16.msra.mxu0 0
        %3441 = vmatprep.subr.bf16.mxu0 0
        %3442 = vmatpush1.bf16.msra.mxu0 0
        %3443 = vmatprep.subr.bf16.mxu0 0
        %3444 = vmatpush1.bf16.msra.mxu0 0
        %3445 = vmatprep.subr.bf16.mxu0 0
        %3446 = vmatpush1.bf16.msra.mxu0 0
        %3447 = vmatprep.subr.bf16.mxu0 0
        %3448 = vmatpush1.bf16.msra.mxu0 0
        %3449 = vmatprep.subr.bf16.mxu0 0
        %3450 = vmatpush1.bf16.msra.mxu0 0
        %3451 = vmatprep.subr.bf16.mxu0 0
        %3452 = vmatpush1.bf16.msra.mxu0 0
        %3453 = vmatprep.mubr.bf16.mxu0 0
        %3454 = vmatmul.mubr.bf16.gmra.mrb[0].mxu0 %v3410
        %v3455 = vpop.f32.mrb[0].mxu0
        %v3456 = vadd.f32 %v3351, %v3455
        %v3457 = vpop.f32.mrb[0].mxu0
        %v3458 = vadd.f32 %v3353, %v3457
        %v3459 = vpop.f32.mrb[0].mxu0
        %v3460 = vadd.f32 %v3355, %v3459
        %v3461 = vpop.f32.mrb[0].mxu0
        %v3462 = vadd.f32 %v3357, %v3461
        %3463 = vmatprep.mubr.bf16.mxu0 0
        %3464 = vmatmul.mubr.bf16.gmra.mrb[0].mxu0 %v3413
        %v3465 = vpop.f32.mrb[0].mxu0
        %v3466 = vadd.f32 %v3361, %v3465
        %v3467 = vpop.f32.mrb[0].mxu0
        %v3468 = vadd.f32 %v3363, %v3467
        %v3469 = vpop.f32.mrb[0].mxu0
        %v3470 = vadd.f32 %v3365, %v3469
        %v3471 = vpop.f32.mrb[0].mxu0
        %v3472 = vadd.f32 %v3367, %v3471
        %3473 = vmatprep.mubr.bf16.mxu0 0
        %3474 = vmatmul.mubr.bf16.gmra.mrb[0].mxu0 %v3416
        %v3475 = vpop.f32.mrb[0].mxu0
        %v3476 = vadd.f32 %v3371, %v3475
        %v3477 = vpop.f32.mrb[0].mxu0
        %v3478 = vadd.f32 %v3373, %v3477
        %v3479 = vpop.f32.mrb[0].mxu0
        %v3480 = vadd.f32 %v3375, %v3479
        %v3481 = vpop.f32.mrb[0].mxu0
        %v3482 = vadd.f32 %v3377, %v3481
        %3483 = vmatprep.mubr.bf16.mxu0 0
        %3484 = vmatmul.mubr.bf16.gmra.mrb[0].mxu0 %v3419
        %v3485 = vpop.f32.mrb[0].mxu0
        %v3486 = vadd.f32 %v3381, %v3485
        %v3487 = vpop.f32.mrb[0].mxu0
        %v3488 = vadd.f32 %v3383, %v3487
        %v3489 = vpop.f32.mrb[0].mxu0
        %v3490 = vadd.f32 %v3385, %v3489
        %v3491 = vpop.f32.mrb[0].mxu0
        %v3492 = vadd.f32 %v3387, %v3491
        %3493 = vdwg.mxu0
        %v3494 = vadd.f32 %v3456, %v3460
        %v3495 = vadd.f32 %v3494, %v3466
        %v3496 = vadd.f32 %v3495, %v3470
        %v3497 = vadd.f32 %v3496, %v3476
        %v3498 = vadd.f32 %v3497, %v3480
        %v3499 = vadd.f32 %v3498, %v3486
        %v3500 = vadd.f32 %v3499, %v3490
        %v3501 = vrot.slane %v3500, 4
        %v3502 = vadd.f32 %v3500, %v3501
        %v3503 = vrot.slane %v3502, 2
        %v3504 = vadd.f32 %v3502, %v3503
        %v3505 = vrot.slane %v3504, 1
        %v3506 = vadd.f32 %v3504, %v3505
        %v3507 = vadd.f32 %v3458, %v3462
        %v3508 = vadd.f32 %v3507, %v3468
        %v3509 = vadd.f32 %v3508, %v3472
        %v3510 = vadd.f32 %v3509, %v3478
        %v3511 = vadd.f32 %v3510, %v3482
        %v3512 = vadd.f32 %v3511, %v3488
        %v3513 = vadd.f32 %v3512, %v3492
        %v3514 = vrot.slane %v3513, 4
        %v3515 = vadd.f32 %v3513, %v3514
        %v3516 = vrot.slane %v3515, 2
        %v3517 = vadd.f32 %v3515, %v3516
        %v3518 = vrot.slane %v3517, 1
        %v3519 = vadd.f32 %v3517, %v3518
        %v3520 = vmul.f32 %v3506, %v550
        %v3521 = vmul.f32 %v3519, %v550
        %v3522 = vsub.f32 %v3456, %v3520
        %v3523 = vsub.f32 %v3458, %v3521
        %v3524 = vsub.f32 %v3460, %v3520
        %v3525 = vsub.f32 %v3462, %v3521
        %v3526 = vsub.f32 %v3466, %v3520
        %v3527 = vsub.f32 %v3468, %v3521
        %v3528 = vsub.f32 %v3470, %v3520
        %v3529 = vsub.f32 %v3472, %v3521
        %v3530 = vsub.f32 %v3476, %v3520
        %v3531 = vsub.f32 %v3478, %v3521
        %v3532 = vsub.f32 %v3480, %v3520
        %v3533 = vsub.f32 %v3482, %v3521
        %v3534 = vsub.f32 %v3486, %v3520
        %v3535 = vsub.f32 %v3488, %v3521
        %v3536 = vsub.f32 %v3490, %v3520
        %v3537 = vsub.f32 %v3492, %v3521
        %v3538 = vmul.f32 %v3522, %v3522
        %v3539 = vmul.f32 %v3523, %v3523
        %v3540 = vmul.f32 %v3524, %v3524
        %v3541 = vmul.f32 %v3525, %v3525
        %v3542 = vmul.f32 %v3526, %v3526
        %v3543 = vmul.f32 %v3527, %v3527
        %v3544 = vmul.f32 %v3528, %v3528
        %v3545 = vmul.f32 %v3529, %v3529
        %v3546 = vmul.f32 %v3530, %v3530
        %v3547 = vmul.f32 %v3531, %v3531
        %v3548 = vmul.f32 %v3532, %v3532
        %v3549 = vmul.f32 %v3533, %v3533
        %v3550 = vmul.f32 %v3534, %v3534
        %v3551 = vmul.f32 %v3535, %v3535
        %v3552 = vmul.f32 %v3536, %v3536
        %v3553 = vmul.f32 %v3537, %v3537
        %v3554 = vadd.f32 %v3538, %v3540
        %v3555 = vadd.f32 %v3554, %v3542
        %v3556 = vadd.f32 %v3555, %v3544
        %v3557 = vadd.f32 %v3556, %v3546
        %v3558 = vadd.f32 %v3557, %v3548
        %v3559 = vadd.f32 %v3558, %v3550
        %v3560 = vadd.f32 %v3559, %v3552
        %v3561 = vrot.slane %v3560, 4
        %v3562 = vadd.f32 %v3560, %v3561
        %v3563 = vrot.slane %v3562, 2
        %v3564 = vadd.f32 %v3562, %v3563
        %v3565 = vrot.slane %v3564, 1
        %v3566 = vadd.f32 %v3564, %v3565
        %v3567 = vadd.f32 %v3539, %v3541
        %v3568 = vadd.f32 %v3567, %v3543
        %v3569 = vadd.f32 %v3568, %v3545
        %v3570 = vadd.f32 %v3569, %v3547
        %v3571 = vadd.f32 %v3570, %v3549
        %v3572 = vadd.f32 %v3571, %v3551
        %v3573 = vadd.f32 %v3572, %v3553
        %v3574 = vrot.slane %v3573, 4
        %v3575 = vadd.f32 %v3573, %v3574
        %v3576 = vrot.slane %v3575, 2
        %v3577 = vadd.f32 %v3575, %v3576
        %v3578 = vrot.slane %v3577, 1
        %v3579 = vadd.f32 %v3577, %v3578
        %v3580 = vmul.f32 %v3566, %v550
        %v3581 = vmul.f32 %v3579, %v550
        %v3582 = vadd.f32 %v3580, 1e-05
        %v3583 = vadd.f32 %v3581, 1e-05
        %v3584 = vrsqrt.pop %v3582
        %v3585 = vrsqrt.pop %v3583
        %v3586 = vmul.f32 %v3522, %v3584
        %v3587 = vmul.f32 %v3523, %v3585
        %v3588 = vmul.f32 %v3524, %v3584
        %v3589 = vmul.f32 %v3525, %v3585
        %v3590 = vmul.f32 %v3526, %v3584
        %v3591 = vmul.f32 %v3527, %v3585
        %v3592 = vmul.f32 %v3528, %v3584
        %v3593 = vmul.f32 %v3529, %v3585
        %v3594 = vmul.f32 %v3530, %v3584
        %v3595 = vmul.f32 %v3531, %v3585
        %v3596 = vmul.f32 %v3532, %v3584
        %v3597 = vmul.f32 %v3533, %v3585
        %v3598 = vmul.f32 %v3534, %v3584
        %v3599 = vmul.f32 %v3535, %v3585
        %v3600 = vmul.f32 %v3536, %v3584
        %v3601 = vmul.f32 %v3537, %v3585
        %3602 = vset.pattern.permute.xlu0 6
        %3603 = vperm.xlu0 %3602, %v516
        %v3604 = vpop.permute.xlu0 %3603
        %3606 = vset.pattern.permute.xlu0 6
        %3607 = vperm.xlu0 %3606, %v517
        %v3608 = vpop.permute.xlu0 %3607
        %3610 = vset.pattern.permute.xlu0 6
        %3611 = vperm.xlu0 %3610, %v518
        %v3612 = vpop.permute.xlu0 %3611
        %3614 = vset.pattern.permute.xlu0 6
        %3615 = vperm.xlu0 %3614, %v519
        %v3616 = vpop.permute.xlu0 %3615
        %3618 = vset.pattern.permute.xlu0 6
        %3619 = vperm.xlu0 %3618, %v520
        %v3620 = vpop.permute.xlu0 %3619
        %3622 = vset.pattern.permute.xlu0 6
        %3623 = vperm.xlu0 %3622, %v521
        %v3624 = vpop.permute.xlu0 %3623
        %3626 = vset.pattern.permute.xlu0 6
        %3627 = vperm.xlu0 %3626, %v522
        %v3628 = vpop.permute.xlu0 %3627
        %3630 = vset.pattern.permute.xlu0 6
        %3631 = vperm.xlu0 %3630, %v523
        %v3632 = vpop.permute.xlu0 %3631
        %v3634 = vmul.f32 %v3586, %v3604
        %v3635 = vmul.f32 %v3587, %v3604
        %v3636 = vmul.f32 %v3588, %v3608
        %v3637 = vmul.f32 %v3589, %v3608
        %v3638 = vmul.f32 %v3590, %v3612
        %v3639 = vmul.f32 %v3591, %v3612
        %v3640 = vmul.f32 %v3592, %v3616
        %v3641 = vmul.f32 %v3593, %v3616
        %v3642 = vmul.f32 %v3594, %v3620
        %v3643 = vmul.f32 %v3595, %v3620
        %v3644 = vmul.f32 %v3596, %v3624
        %v3645 = vmul.f32 %v3597, %v3624
        %v3646 = vmul.f32 %v3598, %v3628
        %v3647 = vmul.f32 %v3599, %v3628
        %v3648 = vmul.f32 %v3600, %v3632
        %v3649 = vmul.f32 %v3601, %v3632
        %3650 = vset.pattern.permute.xlu0 7
        %3651 = vperm.xlu0 %3650, %v516
        %v3652 = vpop.permute.xlu0 %3651
        %3654 = vset.pattern.permute.xlu0 7
        %3655 = vperm.xlu0 %3654, %v517
        %v3656 = vpop.permute.xlu0 %3655
        %3658 = vset.pattern.permute.xlu0 7
        %3659 = vperm.xlu0 %3658, %v518
        %v3660 = vpop.permute.xlu0 %3659
        %3662 = vset.pattern.permute.xlu0 7
        %3663 = vperm.xlu0 %3662, %v519
        %v3664 = vpop.permute.xlu0 %3663
        %3666 = vset.pattern.permute.xlu0 7
        %3667 = vperm.xlu0 %3666, %v520
        %v3668 = vpop.permute.xlu0 %3667
        %3670 = vset.pattern.permute.xlu0 7
        %3671 = vperm.xlu0 %3670, %v521
        %v3672 = vpop.permute.xlu0 %3671
        %3674 = vset.pattern.permute.xlu0 7
        %3675 = vperm.xlu0 %3674, %v522
        %v3676 = vpop.permute.xlu0 %3675
        %3678 = vset.pattern.permute.xlu0 7
        %3679 = vperm.xlu0 %3678, %v523
        %v3680 = vpop.permute.xlu0 %3679
        %v3682 = vadd.f32 %v3634, %v3652
        %v3683 = vadd.f32 %v3635, %v3652
        %v3684 = vadd.f32 %v3636, %v3656
        %v3685 = vadd.f32 %v3637, %v3656
        %v3686 = vadd.f32 %v3638, %v3660
        %v3687 = vadd.f32 %v3639, %v3660
        %v3688 = vadd.f32 %v3640, %v3664
        %v3689 = vadd.f32 %v3641, %v3664
        %v3690 = vadd.f32 %v3642, %v3668
        %v3691 = vadd.f32 %v3643, %v3668
        %v3692 = vadd.f32 %v3644, %v3672
        %v3693 = vadd.f32 %v3645, %v3672
        %v3694 = vadd.f32 %v3646, %v3676
        %v3695 = vadd.f32 %v3647, %v3676
        %v3696 = vadd.f32 %v3648, %v3680
        %v3697 = vadd.f32 %v3649, %v3680
        %v3698 = vmul.f32 %v3682, 0.5
        %v3699 = vmul.f32 %v3683, 0.5
        %v3700 = vmul.f32 %v3684, 0.5
        %v3701 = vmul.f32 %v3685, 0.5
        %v3702 = vmul.f32 %v3686, 0.5
        %v3703 = vmul.f32 %v3687, 0.5
        %v3704 = vmul.f32 %v3688, 0.5
        %v3705 = vmul.f32 %v3689, 0.5
        %v3706 = vmul.f32 %v3690, 0.5
        %v3707 = vmul.f32 %v3691, 0.5
        %v3708 = vmul.f32 %v3692, 0.5
        %v3709 = vmul.f32 %v3693, 0.5
        %v3710 = vmul.f32 %v3694, 0.5
        %v3711 = vmul.f32 %v3695, 0.5
        %v3712 = vmul.f32 %v3696, 0.5
        %v3713 = vmul.f32 %v3697, 0.5
        %v3714 = vmul.f32 %v3682, 0.70710677
        %v3715 = vmul.f32 %v3683, 0.70710677
        %v3716 = vmul.f32 %v3684, 0.70710677
        %v3717 = vmul.f32 %v3685, 0.70710677
        %v3718 = vmul.f32 %v3686, 0.70710677
        %v3719 = vmul.f32 %v3687, 0.70710677
        %v3720 = vmul.f32 %v3688, 0.70710677
        %v3721 = vmul.f32 %v3689, 0.70710677
        %v3722 = vmul.f32 %v3690, 0.70710677
        %v3723 = vmul.f32 %v3691, 0.70710677
        %v3724 = vmul.f32 %v3692, 0.70710677
        %v3725 = vmul.f32 %v3693, 0.70710677
        %v3726 = vmul.f32 %v3694, 0.70710677
        %v3727 = vmul.f32 %v3695, 0.70710677
        %v3728 = vmul.f32 %v3696, 0.70710677
        %v3729 = vmul.f32 %v3697, 0.70710677
        %vm3730 = vcmp.ge.f32.partialorder %v3714, 0.0
        %vm3731 = vcmp.ge.f32.partialorder %v3715, 0.0
        %vm3732 = vcmp.ge.f32.partialorder %v3716, 0.0
        %vm3733 = vcmp.ge.f32.partialorder %v3717, 0.0
        %vm3734 = vcmp.ge.f32.partialorder %v3718, 0.0
        %vm3735 = vcmp.ge.f32.partialorder %v3719, 0.0
        %vm3736 = vcmp.ge.f32.partialorder %v3720, 0.0
        %vm3737 = vcmp.ge.f32.partialorder %v3721, 0.0
        %vm3738 = vcmp.ge.f32.partialorder %v3722, 0.0
        %vm3739 = vcmp.ge.f32.partialorder %v3723, 0.0
        %vm3740 = vcmp.ge.f32.partialorder %v3724, 0.0
        %vm3741 = vcmp.ge.f32.partialorder %v3725, 0.0
        %vm3742 = vcmp.ge.f32.partialorder %v3726, 0.0
        %vm3743 = vcmp.ge.f32.partialorder %v3727, 0.0
        %vm3744 = vcmp.ge.f32.partialorder %v3728, 0.0
        %vm3745 = vcmp.ge.f32.partialorder %v3729, 0.0
        %v3746 = vsel %vm3730, 1.0, -1.0
        %v3747 = vsel %vm3731, 1.0, -1.0
        %v3748 = vsel %vm3732, 1.0, -1.0
        %v3749 = vsel %vm3733, 1.0, -1.0
        %v3750 = vsel %vm3734, 1.0, -1.0
        %v3751 = vsel %vm3735, 1.0, -1.0
        %v3752 = vsel %vm3736, 1.0, -1.0
        %v3753 = vsel %vm3737, 1.0, -1.0
        %v3754 = vsel %vm3738, 1.0, -1.0
        %v3755 = vsel %vm3739, 1.0, -1.0
        %v3756 = vsel %vm3740, 1.0, -1.0
        %v3757 = vsel %vm3741, 1.0, -1.0
        %v3758 = vsel %vm3742, 1.0, -1.0
        %v3759 = vsel %vm3743, 1.0, -1.0
        %v3760 = vsel %vm3744, 1.0, -1.0
        %v3761 = vsel %vm3745, 1.0, -1.0
        %v3762 = vand.u32 2147483647, %v3714
        %v3763 = vand.u32 2147483647, %v3715
        %v3764 = vand.u32 2147483647, %v3716
        %v3765 = vand.u32 2147483647, %v3717
        %v3766 = vand.u32 2147483647, %v3718
        %v3767 = vand.u32 2147483647, %v3719
        %v3768 = vand.u32 2147483647, %v3720
        %v3769 = vand.u32 2147483647, %v3721
        %v3770 = vand.u32 2147483647, %v3722
        %v3771 = vand.u32 2147483647, %v3723
        %v3772 = vand.u32 2147483647, %v3724
        %v3773 = vand.u32 2147483647, %v3725
        %v3774 = vand.u32 2147483647, %v3726
        %v3775 = vand.u32 2147483647, %v3727
        %v3776 = vand.u32 2147483647, %v3728
        %v3777 = vand.u32 2147483647, %v3729
        %v3778 = vmul.f32 %v3762, 0.3275911
        %v3779 = vmul.f32 %v3763, 0.3275911
        %v3780 = vmul.f32 %v3764, 0.3275911
        %v3781 = vmul.f32 %v3765, 0.3275911
        %v3782 = vmul.f32 %v3766, 0.3275911
        %v3783 = vmul.f32 %v3767, 0.3275911
        %v3784 = vmul.f32 %v3768, 0.3275911
        %v3785 = vmul.f32 %v3769, 0.3275911
        %v3786 = vmul.f32 %v3770, 0.3275911
        %v3787 = vmul.f32 %v3771, 0.3275911
        %v3788 = vmul.f32 %v3772, 0.3275911
        %v3789 = vmul.f32 %v3773, 0.3275911
        %v3790 = vmul.f32 %v3774, 0.3275911
        %v3791 = vmul.f32 %v3775, 0.3275911
        %v3792 = vmul.f32 %v3776, 0.3275911
        %v3793 = vmul.f32 %v3777, 0.3275911
        %v3794 = vadd.f32 %v3778, 1.0
        %v3795 = vadd.f32 %v3779, 1.0
        %v3796 = vadd.f32 %v3780, 1.0
        %v3797 = vadd.f32 %v3781, 1.0
        %v3798 = vadd.f32 %v3782, 1.0
        %v3799 = vadd.f32 %v3783, 1.0
        %v3800 = vadd.f32 %v3784, 1.0
        %v3801 = vadd.f32 %v3785, 1.0
        %v3802 = vadd.f32 %v3786, 1.0
        %v3803 = vadd.f32 %v3787, 1.0
        %v3804 = vadd.f32 %v3788, 1.0
        %v3805 = vadd.f32 %v3789, 1.0
        %v3806 = vadd.f32 %v3790, 1.0
        %v3807 = vadd.f32 %v3791, 1.0
        %v3808 = vadd.f32 %v3792, 1.0
        %v3809 = vadd.f32 %v3793, 1.0
        %v3810 = vrcp.pop %v3794
        %v3811 = vmul.f32 1.0, %v3810
        %v3812 = vrcp.pop %v3795
        %v3813 = vmul.f32 1.0, %v3812
        %v3814 = vrcp.pop %v3796
        %v3815 = vmul.f32 1.0, %v3814
        %v3816 = vrcp.pop %v3797
        %v3817 = vmul.f32 1.0, %v3816
        %v3818 = vrcp.pop %v3798
        %v3819 = vmul.f32 1.0, %v3818
        %v3820 = vrcp.pop %v3799
        %v3821 = vmul.f32 1.0, %v3820
        %v3822 = vrcp.pop %v3800
        %v3823 = vmul.f32 1.0, %v3822
        %v3824 = vrcp.pop %v3801
        %v3825 = vmul.f32 1.0, %v3824
        %v3826 = vrcp.pop %v3802
        %v3827 = vmul.f32 1.0, %v3826
        %v3828 = vrcp.pop %v3803
        %v3829 = vmul.f32 1.0, %v3828
        %v3830 = vrcp.pop %v3804
        %v3831 = vmul.f32 1.0, %v3830
        %v3832 = vrcp.pop %v3805
        %v3833 = vmul.f32 1.0, %v3832
        %v3834 = vrcp.pop %v3806
        %v3835 = vmul.f32 1.0, %v3834
        %v3836 = vrcp.pop %v3807
        %v3837 = vmul.f32 1.0, %v3836
        %v3838 = vrcp.pop %v3808
        %v3839 = vmul.f32 1.0, %v3838
        %v3840 = vrcp.pop %v3809
        %v3841 = vmul.f32 1.0, %v3840
        %v3842 = vmul.f32 %v3811, 1.0614054
        %v3843 = vmul.f32 %v3813, 1.0614054
        %v3844 = vmul.f32 %v3815, 1.0614054
        %v3845 = vmul.f32 %v3817, 1.0614054
        %v3846 = vmul.f32 %v3819, 1.0614054
        %v3847 = vmul.f32 %v3821, 1.0614054
        %v3848 = vmul.f32 %v3823, 1.0614054
        %v3849 = vmul.f32 %v3825, 1.0614054
        %v3850 = vmul.f32 %v3827, 1.0614054
        %v3851 = vmul.f32 %v3829, 1.0614054
        %v3852 = vmul.f32 %v3831, 1.0614054
        %v3853 = vmul.f32 %v3833, 1.0614054
        %v3854 = vmul.f32 %v3835, 1.0614054
        %v3855 = vmul.f32 %v3837, 1.0614054
        %v3856 = vmul.f32 %v3839, 1.0614054
        %v3857 = vmul.f32 %v3841, 1.0614054
        %v3858 = vadd.f32 %v3842, -1.4531521
        %v3859 = vadd.f32 %v3843, -1.4531521
        %v3860 = vadd.f32 %v3844, -1.4531521
        %v3861 = vadd.f32 %v3845, -1.4531521
        %v3862 = vadd.f32 %v3846, -1.4531521
        %v3863 = vadd.f32 %v3847, -1.4531521
        %v3864 = vadd.f32 %v3848, -1.4531521
        %v3865 = vadd.f32 %v3849, -1.4531521
        %v3866 = vadd.f32 %v3850, -1.4531521
        %v3867 = vadd.f32 %v3851, -1.4531521
        %v3868 = vadd.f32 %v3852, -1.4531521
        %v3869 = vadd.f32 %v3853, -1.4531521
        %v3870 = vadd.f32 %v3854, -1.4531521
        %v3871 = vadd.f32 %v3855, -1.4531521
        %v3872 = vadd.f32 %v3856, -1.4531521
        %v3873 = vadd.f32 %v3857, -1.4531521
        %v3874 = vmul.f32 %v3858, %v3811
        %v3875 = vmul.f32 %v3859, %v3813
        %v3876 = vmul.f32 %v3860, %v3815
        %v3877 = vmul.f32 %v3861, %v3817
        %v3878 = vmul.f32 %v3862, %v3819
        %v3879 = vmul.f32 %v3863, %v3821
        %v3880 = vmul.f32 %v3864, %v3823
        %v3881 = vmul.f32 %v3865, %v3825
        %v3882 = vmul.f32 %v3866, %v3827
        %v3883 = vmul.f32 %v3867, %v3829
        %v3884 = vmul.f32 %v3868, %v3831
        %v3885 = vmul.f32 %v3869, %v3833
        %v3886 = vmul.f32 %v3870, %v3835
        %v3887 = vmul.f32 %v3871, %v3837
        %v3888 = vmul.f32 %v3872, %v3839
        %v3889 = vmul.f32 %v3873, %v3841
        %v3890 = vadd.f32 %v3874, 1.4214138
        %v3891 = vadd.f32 %v3875, 1.4214138
        %v3892 = vadd.f32 %v3876, 1.4214138
        %v3893 = vadd.f32 %v3877, 1.4214138
        %v3894 = vadd.f32 %v3878, 1.4214138
        %v3895 = vadd.f32 %v3879, 1.4214138
        %v3896 = vadd.f32 %v3880, 1.4214138
        %v3897 = vadd.f32 %v3881, 1.4214138
        %v3898 = vadd.f32 %v3882, 1.4214138
        %v3899 = vadd.f32 %v3883, 1.4214138
        %v3900 = vadd.f32 %v3884, 1.4214138
        %v3901 = vadd.f32 %v3885, 1.4214138
        %v3902 = vadd.f32 %v3886, 1.4214138
        %v3903 = vadd.f32 %v3887, 1.4214138
        %v3904 = vadd.f32 %v3888, 1.4214138
        %v3905 = vadd.f32 %v3889, 1.4214138
        %v3906 = vmul.f32 %v3890, %v3811
        %v3907 = vmul.f32 %v3891, %v3813
        %v3908 = vmul.f32 %v3892, %v3815
        %v3909 = vmul.f32 %v3893, %v3817
        %v3910 = vmul.f32 %v3894, %v3819
        %v3911 = vmul.f32 %v3895, %v3821
        %v3912 = vmul.f32 %v3896, %v3823
        %v3913 = vmul.f32 %v3897, %v3825
        %v3914 = vmul.f32 %v3898, %v3827
        %v3915 = vmul.f32 %v3899, %v3829
        %v3916 = vmul.f32 %v3900, %v3831
        %v3917 = vmul.f32 %v3901, %v3833
        %v3918 = vmul.f32 %v3902, %v3835
        %v3919 = vmul.f32 %v3903, %v3837
        %v3920 = vmul.f32 %v3904, %v3839
        %v3921 = vmul.f32 %v3905, %v3841
        %v3922 = vadd.f32 %v3906, -0.28449672
        %v3923 = vadd.f32 %v3907, -0.28449672
        %v3924 = vadd.f32 %v3908, -0.28449672
        %v3925 = vadd.f32 %v3909, -0.28449672
        %v3926 = vadd.f32 %v3910, -0.28449672
        %v3927 = vadd.f32 %v3911, -0.28449672
        %v3928 = vadd.f32 %v3912, -0.28449672
        %v3929 = vadd.f32 %v3913, -0.28449672
        %v3930 = vadd.f32 %v3914, -0.28449672
        %v3931 = vadd.f32 %v3915, -0.28449672
        %v3932 = vadd.f32 %v3916, -0.28449672
        %v3933 = vadd.f32 %v3917, -0.28449672
        %v3934 = vadd.f32 %v3918, -0.28449672
        %v3935 = vadd.f32 %v3919, -0.28449672
        %v3936 = vadd.f32 %v3920, -0.28449672
        %v3937 = vadd.f32 %v3921, -0.28449672
        %v3938 = vmul.f32 %v3922, %v3811
        %v3939 = vmul.f32 %v3923, %v3813
        %v3940 = vmul.f32 %v3924, %v3815
        %v3941 = vmul.f32 %v3925, %v3817
        %v3942 = vmul.f32 %v3926, %v3819
        %v3943 = vmul.f32 %v3927, %v3821
        %v3944 = vmul.f32 %v3928, %v3823
        %v3945 = vmul.f32 %v3929, %v3825
        %v3946 = vmul.f32 %v3930, %v3827
        %v3947 = vmul.f32 %v3931, %v3829
        %v3948 = vmul.f32 %v3932, %v3831
        %v3949 = vmul.f32 %v3933, %v3833
        %v3950 = vmul.f32 %v3934, %v3835
        %v3951 = vmul.f32 %v3935, %v3837
        %v3952 = vmul.f32 %v3936, %v3839
        %v3953 = vmul.f32 %v3937, %v3841
        %v3954 = vadd.f32 %v3938, 0.2548296
        %v3955 = vadd.f32 %v3939, 0.2548296
        %v3956 = vadd.f32 %v3940, 0.2548296
        %v3957 = vadd.f32 %v3941, 0.2548296
        %v3958 = vadd.f32 %v3942, 0.2548296
        %v3959 = vadd.f32 %v3943, 0.2548296
        %v3960 = vadd.f32 %v3944, 0.2548296
        %v3961 = vadd.f32 %v3945, 0.2548296
        %v3962 = vadd.f32 %v3946, 0.2548296
        %v3963 = vadd.f32 %v3947, 0.2548296
        %v3964 = vadd.f32 %v3948, 0.2548296
        %v3965 = vadd.f32 %v3949, 0.2548296
        %v3966 = vadd.f32 %v3950, 0.2548296
        %v3967 = vadd.f32 %v3951, 0.2548296
        %v3968 = vadd.f32 %v3952, 0.2548296
        %v3969 = vadd.f32 %v3953, 0.2548296
        %v3970 = vmul.f32 %v3954, %v3811
        %v3971 = vmul.f32 %v3955, %v3813
        %v3972 = vmul.f32 %v3956, %v3815
        %v3973 = vmul.f32 %v3957, %v3817
        %v3974 = vmul.f32 %v3958, %v3819
        %v3975 = vmul.f32 %v3959, %v3821
        %v3976 = vmul.f32 %v3960, %v3823
        %v3977 = vmul.f32 %v3961, %v3825
        %v3978 = vmul.f32 %v3962, %v3827
        %v3979 = vmul.f32 %v3963, %v3829
        %v3980 = vmul.f32 %v3964, %v3831
        %v3981 = vmul.f32 %v3965, %v3833
        %v3982 = vmul.f32 %v3966, %v3835
        %v3983 = vmul.f32 %v3967, %v3837
        %v3984 = vmul.f32 %v3968, %v3839
        %v3985 = vmul.f32 %v3969, %v3841
        %v3986 = vsub.f32 0.0, %v3762
        %v3987 = vsub.f32 0.0, %v3763
        %v3988 = vsub.f32 0.0, %v3764
        %v3989 = vsub.f32 0.0, %v3765
        %v3990 = vsub.f32 0.0, %v3766
        %v3991 = vsub.f32 0.0, %v3767
        %v3992 = vsub.f32 0.0, %v3768
        %v3993 = vsub.f32 0.0, %v3769
        %v3994 = vsub.f32 0.0, %v3770
        %v3995 = vsub.f32 0.0, %v3771
        %v3996 = vsub.f32 0.0, %v3772
        %v3997 = vsub.f32 0.0, %v3773
        %v3998 = vsub.f32 0.0, %v3774
        %v3999 = vsub.f32 0.0, %v3775
        %v4000 = vsub.f32 0.0, %v3776
        %v4001 = vsub.f32 0.0, %v3777
        %v4002 = vmul.f32 %v3986, %v3762
        %v4003 = vmul.f32 %v3987, %v3763
        %v4004 = vmul.f32 %v3988, %v3764
        %v4005 = vmul.f32 %v3989, %v3765
        %v4006 = vmul.f32 %v3990, %v3766
        %v4007 = vmul.f32 %v3991, %v3767
        %v4008 = vmul.f32 %v3992, %v3768
        %v4009 = vmul.f32 %v3993, %v3769
        %v4010 = vmul.f32 %v3994, %v3770
        %v4011 = vmul.f32 %v3995, %v3771
        %v4012 = vmul.f32 %v3996, %v3772
        %v4013 = vmul.f32 %v3997, %v3773
        %v4014 = vmul.f32 %v3998, %v3774
        %v4015 = vmul.f32 %v3999, %v3775
        %v4016 = vmul.f32 %v4000, %v3776
        %v4017 = vmul.f32 %v4001, %v3777
        %v4018 = vmul.f32 %v4002, 1.442695
        %v4019 = vpow.pop %v4018
        %v4020 = vmul.f32 %v4003, 1.442695
        %v4021 = vpow.pop %v4020
        %v4022 = vmul.f32 %v4004, 1.442695
        %v4023 = vpow.pop %v4022
        %v4024 = vmul.f32 %v4005, 1.442695
        %v4025 = vpow.pop %v4024
        %v4026 = vmul.f32 %v4006, 1.442695
        %v4027 = vpow.pop %v4026
        %v4028 = vmul.f32 %v4007, 1.442695
        %v4029 = vpow.pop %v4028
        %v4030 = vmul.f32 %v4008, 1.442695
        %v4031 = vpow.pop %v4030
        %v4032 = vmul.f32 %v4009, 1.442695
        %v4033 = vpow.pop %v4032
        %v4034 = vmul.f32 %v4010, 1.442695
        %v4035 = vpow.pop %v4034
        %v4036 = vmul.f32 %v4011, 1.442695
        %v4037 = vpow.pop %v4036
        %v4038 = vmul.f32 %v4012, 1.442695
        %v4039 = vpow.pop %v4038
        %v4040 = vmul.f32 %v4013, 1.442695
        %v4041 = vpow.pop %v4040
        %v4042 = vmul.f32 %v4014, 1.442695
        %v4043 = vpow.pop %v4042
        %v4044 = vmul.f32 %v4015, 1.442695
        %v4045 = vpow.pop %v4044
        %v4046 = vmul.f32 %v4016, 1.442695
        %v4047 = vpow.pop %v4046
        %v4048 = vmul.f32 %v4017, 1.442695
        %v4049 = vpow.pop %v4048
        %v4050 = vmul.f32 %v3970, %v4019
        %v4051 = vmul.f32 %v3971, %v4021
        %v4052 = vmul.f32 %v3972, %v4023
        %v4053 = vmul.f32 %v3973, %v4025
        %v4054 = vmul.f32 %v3974, %v4027
        %v4055 = vmul.f32 %v3975, %v4029
        %v4056 = vmul.f32 %v3976, %v4031
        %v4057 = vmul.f32 %v3977, %v4033
        %v4058 = vmul.f32 %v3978, %v4035
        %v4059 = vmul.f32 %v3979, %v4037
        %v4060 = vmul.f32 %v3980, %v4039
        %v4061 = vmul.f32 %v3981, %v4041
        %v4062 = vmul.f32 %v3982, %v4043
        %v4063 = vmul.f32 %v3983, %v4045
        %v4064 = vmul.f32 %v3984, %v4047
        %v4065 = vmul.f32 %v3985, %v4049
        %v4066 = vsub.f32 1.0, %v4050
        %v4067 = vsub.f32 1.0, %v4051
        %v4068 = vsub.f32 1.0, %v4052
        %v4069 = vsub.f32 1.0, %v4053
        %v4070 = vsub.f32 1.0, %v4054
        %v4071 = vsub.f32 1.0, %v4055
        %v4072 = vsub.f32 1.0, %v4056
        %v4073 = vsub.f32 1.0, %v4057
        %v4074 = vsub.f32 1.0, %v4058
        %v4075 = vsub.f32 1.0, %v4059
        %v4076 = vsub.f32 1.0, %v4060
        %v4077 = vsub.f32 1.0, %v4061
        %v4078 = vsub.f32 1.0, %v4062
        %v4079 = vsub.f32 1.0, %v4063
        %v4080 = vsub.f32 1.0, %v4064
        %v4081 = vsub.f32 1.0, %v4065
        %v4082 = vmul.f32 %v3746, %v4066
        %v4083 = vmul.f32 %v3747, %v4067
        %v4084 = vmul.f32 %v3748, %v4068
        %v4085 = vmul.f32 %v3749, %v4069
        %v4086 = vmul.f32 %v3750, %v4070
        %v4087 = vmul.f32 %v3751, %v4071
        %v4088 = vmul.f32 %v3752, %v4072
        %v4089 = vmul.f32 %v3753, %v4073
        %v4090 = vmul.f32 %v3754, %v4074
        %v4091 = vmul.f32 %v3755, %v4075
        %v4092 = vmul.f32 %v3756, %v4076
        %v4093 = vmul.f32 %v3757, %v4077
        %v4094 = vmul.f32 %v3758, %v4078
        %v4095 = vmul.f32 %v3759, %v4079
        %v4096 = vmul.f32 %v3760, %v4080
        %v4097 = vmul.f32 %v3761, %v4081
        %v4098 = vadd.f32 %v4082, 1.0
        %v4099 = vadd.f32 %v4083, 1.0
        %v4100 = vadd.f32 %v4084, 1.0
        %v4101 = vadd.f32 %v4085, 1.0
        %v4102 = vadd.f32 %v4086, 1.0
        %v4103 = vadd.f32 %v4087, 1.0
        %v4104 = vadd.f32 %v4088, 1.0
        %v4105 = vadd.f32 %v4089, 1.0
        %v4106 = vadd.f32 %v4090, 1.0
        %v4107 = vadd.f32 %v4091, 1.0
        %v4108 = vadd.f32 %v4092, 1.0
        %v4109 = vadd.f32 %v4093, 1.0
        %v4110 = vadd.f32 %v4094, 1.0
        %v4111 = vadd.f32 %v4095, 1.0
        %v4112 = vadd.f32 %v4096, 1.0
        %v4113 = vadd.f32 %v4097, 1.0
        %v4114 = vmul.f32 %v3698, %v4098
        %v4115 = vmul.f32 %v3699, %v4099
        %v4116 = vmul.f32 %v3700, %v4100
        %v4117 = vmul.f32 %v3701, %v4101
        %v4118 = vmul.f32 %v3702, %v4102
        %v4119 = vmul.f32 %v3703, %v4103
        %v4120 = vmul.f32 %v3704, %v4104
        %v4121 = vmul.f32 %v3705, %v4105
        %v4122 = vmul.f32 %v3706, %v4106
        %v4123 = vmul.f32 %v3707, %v4107
        %v4124 = vmul.f32 %v3708, %v4108
        %v4125 = vmul.f32 %v3709, %v4109
        %v4126 = vmul.f32 %v3710, %v4110
        %v4127 = vmul.f32 %v3711, %v4111
        %v4128 = vmul.f32 %v3712, %v4112
        %v4129 = vmul.f32 %v3713, %v4113
        %v4130 = vpack.c.bf16 %v4116, %v4114
        %v4131 = vpack.c.bf16 %v4117, %v4115
        %v4132 = vpack.c.bf16 %v4120, %v4118
        %v4133 = vpack.c.bf16 %v4121, %v4119
        %v4134 = vpack.c.bf16 %v4124, %v4122
        %v4135 = vpack.c.bf16 %v4125, %v4123
        %v4136 = vpack.c.bf16 %v4128, %v4126
        %v4137 = vpack.c.bf16 %v4129, %v4127
        %v4138 = vld [vmem:[#allocation9 + $0x48] sm:$0xf]
        %v4139 = vld [vmem:[#allocation9 + $0x4c] sm:$0xf]
        %v4140 = vld [vmem:[#allocation9 + $0x50] sm:$0xf]
        %v4141 = vld [vmem:[#allocation9 + $0x54] sm:$0xf]
        %v4142 = vld [vmem:[#allocation9 + $0x58] sm:$0xf]
        %v4143 = vld [vmem:[#allocation9 + $0x5c] sm:$0xf]
        %v4150 = vunpack.c.l.b16 %v4138
        %v4151 = vunpack.c.l.b16 %v4139
        %v4152 = vunpack.c.l.b16 %v4140
        %v4153 = vunpack.c.l.b16 %v4141
        %v4154 = vunpack.c.l.b16 %v4142
        %v4155 = vunpack.c.l.b16 %v4143
        %v4156 = vpack.c.b16 %v4151, %v4150
        %v4157 = vpack.c.b16 %v4153, %v4152
        %v4158 = vpack.c.b16 %v4155, %v4154
        %v4160 = vsel %vm430, %v4156, 0
        %v4163 = vsel %vm430, %v4157, 0
        %v4166 = vsel %vm430, %v4158, 0
        %4168 = vmatprep.subr.bf16.mxu0 %v4131
        %4169 = vmatpush1.bf16.msra.mxu0 %v4130
        %4170 = vmatprep.subr.bf16.mxu0 %v4133
        %4171 = vmatpush1.bf16.msra.mxu0 %v4132
        %4172 = vmatprep.subr.bf16.mxu0 %v4135
        %4173 = vmatpush1.bf16.msra.mxu0 %v4134
        %4174 = vmatprep.subr.bf16.mxu0 %v4137
        %4175 = vmatpush1.bf16.msra.mxu0 %v4136
        %4176 = vmatprep.subr.bf16.mxu0 0
        %4177 = vmatpush1.bf16.msra.mxu0 0
        %4178 = vmatprep.subr.bf16.mxu0 0
        %4179 = vmatpush1.bf16.msra.mxu0 0
        %4180 = vmatprep.subr.bf16.mxu0 0
        %4181 = vmatpush1.bf16.msra.mxu0 0
        %4182 = vmatprep.subr.bf16.mxu0 0
        %4183 = vmatpush1.bf16.msra.mxu0 0
        %4184 = vmatprep.subr.bf16.mxu0 0
        %4185 = vmatpush1.bf16.msra.mxu0 0
        %4186 = vmatprep.subr.bf16.mxu0 0
        %4187 = vmatpush1.bf16.msra.mxu0 0
        %4188 = vmatprep.subr.bf16.mxu0 0
        %4189 = vmatpush1.bf16.msra.mxu0 0
        %4190 = vmatprep.subr.bf16.mxu0 0
        %4191 = vmatpush1.bf16.msra.mxu0 0
        %4192 = vmatprep.subr.bf16.mxu0 0
        %4193 = vmatpush1.bf16.msra.mxu0 0
        %4194 = vmatprep.subr.bf16.mxu0 0
        %4195 = vmatpush1.bf16.msra.mxu0 0
        %4196 = vmatprep.subr.bf16.mxu0 0
        %4197 = vmatpush1.bf16.msra.mxu0 0
        %4198 = vmatprep.subr.bf16.mxu0 0
        %4199 = vmatpush1.bf16.msra.mxu0 0
        %4200 = vmatprep.mubr.bf16.mxu0 0
        %4201 = vmatmul.mubr.bf16.gmra.mrb[0].mxu0 %v4160
        %v4202 = vpop.f32.mrb[0].mxu0
        %v4203 = vadd.f32 0.0, %v4202
        %v4204 = vpop.f32.mrb[0].mxu0
        %v4205 = vadd.f32 0.0, %v4204
        %v4206 = vpop.f32.mrb[0].mxu0
        %v4207 = vadd.f32 0.0, %v4206
        %v4208 = vpop.f32.mrb[0].mxu0
        %v4209 = vadd.f32 0.0, %v4208
        %4210 = vmatprep.mubr.bf16.mxu0 0
        %4211 = vmatmul.mubr.bf16.gmra.mrb[0].mxu0 %v4163
        %v4212 = vpop.f32.mrb[0].mxu0
        %v4213 = vadd.f32 0.0, %v4212
        %v4214 = vpop.f32.mrb[0].mxu0
        %v4215 = vadd.f32 0.0, %v4214
        %v4216 = vpop.f32.mrb[0].mxu0
        %v4217 = vadd.f32 0.0, %v4216
        %v4218 = vpop.f32.mrb[0].mxu0
        %v4219 = vadd.f32 0.0, %v4218
        %4220 = vmatprep.mubr.bf16.mxu0 0
        %4221 = vmatmul.mubr.bf16.gmra.mrb[0].mxu0 %v4166
        %v4222 = vpop.f32.mrb[0].mxu0
        %v4223 = vadd.f32 0.0, %v4222
        %v4224 = vpop.f32.mrb[0].mxu0
        %v4225 = vadd.f32 0.0, %v4224
        %v4226 = vpop.f32.mrb[0].mxu0
        %v4227 = vadd.f32 0.0, %v4226
        %v4228 = vpop.f32.mrb[0].mxu0
        %v4229 = vadd.f32 0.0, %v4228
        %4230 = vdwg.mxu0
        %v4231 = vadd.f32 %v3256, %v4203
        %v4232 = vadd.f32 %v3257, %v4205
        %v4233 = vadd.f32 %v3258, %v4207
        %v4234 = vadd.f32 %v3259, %v4209
        %v4235 = vadd.f32 %v3260, %v4213
        %v4236 = vadd.f32 %v3261, %v4215
        %v4237 = vadd.f32 %v3262, %v4217
        %v4238 = vadd.f32 %v3263, %v4219
        %v4239 = vadd.f32 %v3264, %v4223
        %v4240 = vadd.f32 %v3265, %v4225
        %v4241 = vadd.f32 %v3266, %v4227
        %v4242 = vadd.f32 %v3267, %v4229
        %v4243 = vld [vmem:[%s371] sm:$0x77]
        %v4244 = vlaneseq
        %v4245 = vshrl.u32 %v4244, 7
        %v4246 = vcvt.s32.f32 %v4245
        %v4247 = vrot.slane %v4241, 4
        %v4248 = vmax.f32 %v4241, %v4247
        %v4249 = vrot.slane %v4248, 2
        %v4250 = vmax.f32 %v4248, %v4249
        %v4251 = vrot.slane %v4250, 1
        %v4252 = vmax.f32 %v4250, %v4251
        %v4253 = vrot.slane %v4242, 4
        %v4254 = vmax.f32 %v4242, %v4253
        %v4255 = vrot.slane %v4254, 2
        %v4256 = vmax.f32 %v4254, %v4255
        %v4257 = vrot.slane %v4256, 1
        %v4258 = vmax.f32 %v4256, %v4257
        %vm4259 = vcmp.eq.f32.partialorder %v4241, %v4252
        %vm4260 = vcmp.eq.f32.partialorder %v4242, %v4258
        %v4261 = vsel %vm4259, %v4246, 8.0
        %v4262 = vsel %vm4260, %v4246, 8.0
        %v4263 = vrot.slane %v4261, 4
        %v4264 = vmin.f32 %v4261, %v4263
        %v4265 = vrot.slane %v4264, 2
        %v4266 = vmin.f32 %v4264, %v4265
        %v4267 = vrot.slane %v4266, 1
        %v4268 = vmin.f32 %v4266, %v4267
        %v4269 = vrot.slane %v4262, 4
        %v4270 = vmin.f32 %v4262, %v4269
        %v4271 = vrot.slane %v4270, 2
        %v4272 = vmin.f32 %v4270, %v4271
        %v4273 = vrot.slane %v4272, 1
        %v4274 = vmin.f32 %v4272, %v4273
        %vm4275 = vcmp.eq.f32.partialorder %v4268, 0.0
        %vm4276 = vcmp.eq.f32.partialorder %v4274, 0.0
        %v4277 = vsel %vm4275, 1, 0
        %v4278 = vsel %vm4276, 1, 0
        %v4279 = vcvt.s32.f32 %v4277
        %v4280 = vcvt.s32.f32 %v4278
        %v4281 = vmul.f32 %v4279, 3.9
        %v4282 = vmul.f32 %v4280, 3.9
        %v4283 = vadd.f32 %v4281, 0.0
        %v4284 = vadd.f32 %v4282, 0.0
        %v4285 = vmul.f32 %v4279, 1.6
        %v4286 = vmul.f32 %v4280, 1.6
        %v4287 = vadd.f32 %v4285, 0.0
        %v4288 = vadd.f32 %v4286, 0.0
        %v4289 = vmul.f32 %v4279, 1.56
        %v4290 = vmul.f32 %v4280, 1.56
        %v4291 = vadd.f32 %v4289, 0.0
        %v4292 = vadd.f32 %v4290, 0.0
        %vm4293 = vcmp.eq.f32.partialorder %v4268, 1.0
        %vm4294 = vcmp.eq.f32.partialorder %v4274, 1.0
        %v4295 = vsel %vm4293, 1, 0
        %v4296 = vsel %vm4294, 1, 0
        %v4297 = vcvt.s32.f32 %v4295
        %v4298 = vcvt.s32.f32 %v4296
        %v4299 = vmul.f32 %v4297, 0.8
        %v4300 = vmul.f32 %v4298, 0.8
        %v4301 = vadd.f32 %v4283, %v4299
        %v4302 = vadd.f32 %v4284, %v4300
        %v4303 = vmul.f32 %v4297, 0.6
        %v4304 = vmul.f32 %v4298, 0.6
        %v4305 = vadd.f32 %v4287, %v4303
        %v4306 = vadd.f32 %v4288, %v4304
        %v4307 = vmul.f32 %v4297, 1.73
        %v4308 = vmul.f32 %v4298, 1.73
        %v4309 = vadd.f32 %v4291, %v4307
        %v4310 = vadd.f32 %v4292, %v4308
        %vm4311 = vcmp.eq.f32.partialorder %v4268, 2.0
        %vm4312 = vcmp.eq.f32.partialorder %v4274, 2.0
        %v4313 = vsel %vm4311, 1, 0
        %v4314 = vsel %vm4312, 1, 0
        %v4315 = vcvt.s32.f32 %v4313
        %v4316 = vcvt.s32.f32 %v4314
        %v4317 = vmul.f32 %v4315, 1.76
        %v4318 = vmul.f32 %v4316, 1.76
        %v4319 = vadd.f32 %v4301, %v4317
        %v4320 = vadd.f32 %v4302, %v4318
        %v4321 = vmul.f32 %v4315, 0.6
        %v4322 = vmul.f32 %v4316, 0.6
        %v4323 = vadd.f32 %v4305, %v4321
        %v4324 = vadd.f32 %v4306, %v4322
        %v4325 = vmul.f32 %v4315, 1.73
        %v4326 = vmul.f32 %v4316, 1.73
        %v4327 = vadd.f32 %v4309, %v4325
        %v4328 = vadd.f32 %v4310, %v4326
        %vm4329 = vcmask 1040384
        %v4330 = vsel %vm4329, %v4319, %v4323
        %v4331 = vsel %vm4329, %v4320, %v4324
        %vm4332 = vcmask 1041408
        %v4333 = vsel %vm4332, %v4330, %v4327
        %v4334 = vsel %vm4332, %v4331, %v4328
        %v4335 = vmul.f32 %v4319, %v4319
        %v4336 = vmul.f32 %v4320, %v4320
        %v4337 = vmul.f32 %v4323, %v4323
        %v4338 = vmul.f32 %v4324, %v4324
        %v4339 = vadd.f32 %v4335, %v4337
        %v4340 = vadd.f32 %v4336, %v4338
        %v4341 = vrsqrt.pop %v4339
        %v4342 = vmul.f32 %v4339, %v4341
        %vm4343 = vcmp.eq.f32.partialorder %v4339, inf
        %v4344 = vsel %vm4343, %v4339, %v4342
        %vm4345 = vcmp.eq.f32.partialorder %v4339, 0.0
        %v4346 = vand.u32 %v4339, 2147483648
        %v4347 = vsel %vm4345, %v4346, %v4344
        %v4348 = vrsqrt.pop %v4340
        %v4349 = vmul.f32 %v4340, %v4348
        %vm4350 = vcmp.eq.f32.partialorder %v4340, inf
        %v4351 = vsel %vm4350, %v4340, %v4349
        %vm4352 = vcmp.eq.f32.partialorder %v4340, 0.0
        %v4353 = vand.u32 %v4340, 2147483648
        %v4354 = vsel %vm4352, %v4353, %v4351
        %v4355 = vsel %vm4332, %v4347, %v4327
        %v4356 = vsel %vm4332, %v4354, %v4328
        %v4357 = vmul.f32 %v4231, %v4355
        %v4358 = vmul.f32 %v4232, %v4356
        %v4360 = vcombine.high %v4243, %v4243
        %v4362 = vadd.f32 %v4357, %v4243
        %v4363 = vadd.f32 %v4358, %v4360
        %v4364 = vmul.f32 %v4231, 1.442695
        %v4365 = vpow.pop %v4364
        %v4366 = vmul.f32 %v4232, 1.442695
        %v4367 = vpow.pop %v4366
        %v4370 = vrot.slane %v4333, 5
        %v4371 = vrot.slane %v4334, 5
        %v4374 = vmul.f32 %v4365, %v4370
        %v4375 = vmul.f32 %v4367, %v4371
        %v4376 = vadd.s32 %v4245, 8
        %v4377 = vcvt.s32.f32 %v4376
        %v4378 = vmax.f32 %v4233, %v4235
        %v4379 = vrot.slane %v4378, 4
        %v4380 = vmax.f32 %v4378, %v4379
        %v4381 = vrot.slane %v4380, 2
        %v4382 = vmax.f32 %v4380, %v4381
        %v4383 = vrot.slane %v4382, 1
        %v4384 = vmax.f32 %v4382, %v4383
        %v4385 = vmax.f32 %v4234, %v4236
        %v4386 = vrot.slane %v4385, 4
        %v4387 = vmax.f32 %v4385, %v4386
        %v4388 = vrot.slane %v4387, 2
        %v4389 = vmax.f32 %v4387, %v4388
        %v4390 = vrot.slane %v4389, 1
        %v4391 = vmax.f32 %v4389, %v4390
        %vm4392 = vcmp.eq.f32.partialorder %v4233, %v4384
        %vm4393 = vcmp.eq.f32.partialorder %v4234, %v4391
        %vm4394 = vcmp.eq.f32.partialorder %v4235, %v4384
        %vm4395 = vcmp.eq.f32.partialorder %v4236, %v4391
        %v4396 = vsel %vm4392, %v4246, 16.0
        %v4397 = vsel %vm4393, %v4246, 16.0
        %v4398 = vsel %vm4394, %v4377, 16.0
        %v4399 = vsel %vm4395, %v4377, 16.0
        %v4400 = vmin.f32 %v4396, %v4398
        %v4401 = vrot.slane %v4400, 4
        %v4402 = vmin.f32 %v4400, %v4401
        %v4403 = vrot.slane %v4402, 2
        %v4404 = vmin.f32 %v4402, %v4403
        %v4405 = vrot.slane %v4404, 1
        %v4406 = vmin.f32 %v4404, %v4405
        %v4407 = vmin.f32 %v4397, %v4399
        %v4408 = vrot.slane %v4407, 4
        %v4409 = vmin.f32 %v4407, %v4408
        %v4410 = vrot.slane %v4409, 2
        %v4411 = vmin.f32 %v4409, %v4410
        %v4412 = vrot.slane %v4411, 1
        %v4413 = vmin.f32 %v4411, %v4412
        %vm4414 = vcmp.eq.f32.partialorder %v4246, %v4406
        %vm4415 = vcmp.eq.f32.partialorder %v4246, %v4413
        %vm4416 = vcmp.eq.f32.partialorder %v4377, %v4406
        %vm4417 = vcmp.eq.f32.partialorder %v4377, %v4413
        %v4418 = vsel %vm4414, 1, 0
        %v4419 = vsel %vm4415, 1, 0
        %v4420 = vsel %vm4416, 1, 0
        %v4421 = vsel %vm4417, 1, 0
        %v4422 = vcvt.s32.f32 %v4418
        %v4423 = vcvt.s32.f32 %v4419
        %v4424 = vcvt.s32.f32 %v4420
        %v4425 = vcvt.s32.f32 %v4421
        %v4426 = vmul.f32 %v4422, %v4237
        %v4427 = vmul.f32 %v4423, %v4238
        %v4428 = vmul.f32 %v4424, %v4239
        %v4429 = vmul.f32 %v4425, %v4240
        %v4430 = vadd.f32 %v4426, %v4428
        %v4431 = vrot.slane %v4430, 4
        %v4432 = vadd.f32 %v4430, %v4431
        %v4433 = vrot.slane %v4432, 2
        %v4434 = vadd.f32 %v4432, %v4433
        %v4435 = vrot.slane %v4434, 1
        %v4436 = vadd.f32 %v4434, %v4435
        %v4437 = vadd.f32 %v4427, %v4429
        %v4438 = vrot.slane %v4437, 4
        %v4439 = vadd.f32 %v4437, %v4438
        %v4440 = vrot.slane %v4439, 2
        %v4441 = vadd.f32 %v4439, %v4440
        %v4442 = vrot.slane %v4441, 1
        %v4443 = vadd.f32 %v4441, %v4442
        %v4444 = vmul.f32 %v4406, 0.5235988
        %v4445 = vmul.f32 %v4413, 0.5235988
        %v4446 = vsub.f32 %v4444, 3.1415927
        %v4447 = vsub.f32 %v4445, 3.1415927
        %v4448 = vadd.f32 %v4446, 0.2617994
        %v4449 = vadd.f32 %v4447, 0.2617994
        %v4450 = vadd.f32 %v4448, %v4436
        %v4451 = vadd.f32 %v4449, %v4443
        %vm4456 = vcmask 1045504
        %v4457 = vrot.slane %v4233, 2
        %v4458 = vrot.slane %v4234, 2
        %v4459 = vrot.slane %v4235, 2
        %v4460 = vsel %vm4456, %v4457, %v4459
        %v4461 = vrot.slane %v4236, 2
        %v4462 = vsel %vm4456, %v4458, %v4461
        %v4473 = vrot.slane %v4237, 6
        %v4474 = vrot.slane %v4238, 6
        %v4475 = vrot.slane %v4239, 6
        %v4476 = vsel %vm4332, %v4473, %v4475
        %v4477 = vrot.slane %v4240, 6
        %v4478 = vsel %vm4332, %v4474, %v4477
        %v4485 = vrot.slane %v4241, 2
        %v4486 = vrot.slane %v4242, 2
        %v4491 = vrot.slane %v4362, 7
        %v4492 = vrot.slane %v4363, 7
        %v4497 = vrot.slane %v4374, 7
        %v4498 = vrot.slane %v4375, 7
        %v4501 = vsel %vm4456, %v4231, %v4457
        %v4502 = vsel %vm4456, %v4232, %v4458
        %v4503 = vsel %vm4332, %v4459, %v4473
        %v4504 = vsel %vm4332, %v4461, %v4474
        %v4505 = vsel %vm4456, %v4476, %v4485
        %v4506 = vsel %vm4456, %v4478, %v4486
        %v4507 = vsel %vm4329, %v4485, %v4491
        %v4508 = vsel %vm4329, %v4486, %v4492
        %vm4509 = vcmask 1043456
        %v4510 = vsel %vm4509, %v4507, %v4497
        %v4511 = vsel %vm4509, %v4508, %v4498
        %vm4512 = vcmask 1046528
        %v4513 = vsel %vm4512, %v4510, %v4450
        %v4514 = vsel %vm4512, %v4511, %v4451
        %4515 = vst [vmem:[%s376] sm:$0xff] %v4501
        %4516 = vst [vmem:[%s376 + $0x8] sm:$0xff] %v4502
        %4517 = vst [vmem:[%s376 + $0x10] sm:$0xff] %v4460
        %4518 = vst [vmem:[%s376 + $0x18] sm:$0xff] %v4462
        %4519 = vst [vmem:[%s376 + $0x20] sm:$0xff] %v4503
        %4520 = vst [vmem:[%s376 + $0x28] sm:$0xff] %v4504
        %4521 = vst [vmem:[%s376 + $0x30] sm:$0xff] %v4505
        %4522 = vst [vmem:[%s376 + $0x38] sm:$0xff] %v4506
        %4523 = vst [vmem:[%s376 + $0x40] sm:$0xff] %v4513
        %4524 = vst [vmem:[%s376 + $0x48] sm:$0xff] %v4514
        %p4525 = scmp.lt.s32.totalorder %s23, 1
        %s4526 = scalar_select %p4525, %s23, 1
        %s4527 = smul.addr %s4526, 10
        %s4528 = smul.addr %s4527, 8
        %s4529 = scalar_lea.vmem %s7, %s4528
        // Predicated region
        $region69: #{forward.1} parent=47 // pred_check
          %p4530 = pneg %p198
        $region70: #{forward.1} parent=47 // pred_check_branch
          %4532 = sbr.rel (%p4530) target = $region72
        $region71: #{forward.1} parent=47 // pred_region
          _
        $region72: #{forward.1} parent=47 // pred_fallthru
          _
      $region48: #{forward.1} parent=5 // pred_fallthru
        _
      %p4533 = scmp.le.s32.totalorder 2, %s18
      // Predicated region
      $region73: #{forward.1} parent=5 // pred_check
        %p4534 = pneg %p4533
      $region74: #{forward.1} parent=5 // pred_check_branch
        %4536 = sbr.rel (%p4534) target = $region76
      $region75: #{forward.1} parent=5 // pred_region
        %s4537 = ssub.s32 %s18, 2
        // Predicated region
        $region77: #{forward.1} parent=75 // pred_check
          %p4538 = pneg %p204
        $region78: #{forward.1} parent=75 // pred_check_branch
          %4540 = sbr.rel (%p4538) target = $region80
        $region79: #{forward.1} parent=75 // pred_region
          %p4541 = scmp.lt.s32.totalorder %s24, 1
          %s4542 = scalar_select %p4541, %s24, 1
          %s4543 = smul.addr %s4542, 10
          %s4544 = smul.addr %s4543, 8
          %s4545 = scalar_lea.vmem %s7, %s4544
        $region80: #{forward.1} parent=75 // pred_fallthru
          _
      $region76: #{forward.1} parent=5 // pred_fallthru
        _
    $region6: #{forward.1} parent=1 // loop_footer
      %s22 = sadd.s32 1, %s18
    $region7: #{forward.1} parent=1 // loop_footer_branch
      %17 = sbr.rel target = $region3
    $region8: #{forward.1} parent=1 // loop_exit
      _
    %4546 = vsyncpa [#allocation3], 1
    %s4547 = scalar_lea.sflag [#allocation3], 1
    %4548 = vsyncpa %s4547, 1
    %4549 = vsyncpa [#allocation5], 1
    %4550 = vsyncpa [#allocation8], 1

</llo_original>
